<compile_context>
chip_gen: v7x
topology: tpu7x:2x2x1
jax: 0.10.0
libtpu: 0.0.40
codegen_flags: <defaults>
</compile_context>

<pallas_src>
import math
import numpy as np
import jax
import jax.numpy as jnp
from jax.experimental import pallas as pl
from jax.experimental.pallas import tpu as pltpu


def _round_up(x, m):
    return ((x + m - 1) // m) * m


def _tpu_vmem_capacity_bytes(default_bytes=64 * 2**20):
    """Per-core VMEM capacity; conservative (v7x-sized) fallback if query fails."""
    try:
        return int(pltpu.get_tpu_info().vmem_capacity_bytes)
    except Exception:
        return default_bytes


def _hann_window(win_length):
    # torch.hann_window default is periodic=True
    n = np.arange(win_length, dtype=np.float64)
    return 0.5 * (1.0 - np.cos(2.0 * np.pi * n / win_length))


def _reflect_index(p, length):
    if p < 0:
        return -p
    if p >= length:
        return 2 * length - 2 - p
    return p


def make_griffin_lim_operators(n_fft, hop_length, win_length, n_frames,
                               operator_dtype=jnp.bfloat16):
    """Precompute the fully composed linear operators of one GL iteration."""
    N = n_fft
    F = N // 2 + 1
    T = n_frames
    pad = N // 2
    L = (T - 1) * hop_length      # torch.istft output length (center=True, length=None)
    Lpad = L + N                  # overlap-add buffer length before center trimming
    FT = F * T

    # single-reflection validity of the precomputed reflect-pad gather
    assert pad <= L - 1, f"reflect pad requires n_fft//2 <= L-1 (pad={pad}, L={L})"
    if FT > 4096:
        # Host-side guard only (keeps the numpy composition < a few GiB); the
        # real, per-generation VMEM gate lives in griffin_lim_pallas().
        raise ValueError("dense composed Griffin-Lim operator only supports small F*T; "
                         "use the factored per-frame formulation for production STFT sizes")

    # Hann window of win_length, zero-padded (centered) to n_fft like torch does.
    w = np.zeros(N, dtype=np.float64)
    left = (N - win_length) // 2
    w[left:left + win_length] = _hann_window(win_length)

    k = np.arange(F, dtype=np.float64)[:, None]
    n = np.arange(N, dtype=np.float64)[None, :]
    ang = 2.0 * np.pi * k * n / N
    c = np.full((F, 1), 2.0)
    c[0, 0] = 1.0
    if N % 2 == 0:
        c[-1, 0] = 1.0

    # ISTFT basis: irfft (includes 1/N) * sqrt(N) (normalized=True) * synthesis window.
    AW = (c * np.cos(ang) / N) * math.sqrt(N) * w[None, :]
    BW = (-c * np.sin(ang) / N) * math.sqrt(N) * w[None, :]
    # STFT basis: analysis window * rfft / sqrt(N) (normalized=True).
    CW = (w[:, None] * np.cos(ang.T)) / math.sqrt(N)
    DW = (-w[:, None] * np.sin(ang.T)) / math.sqrt(N)

    # Squared-window overlap-add envelope used by torch.istft for normalisation.
    env = np.zeros(Lpad)
    for t in range(T):
        env[t * hop_length:t * hop_length + N] += w * w
    inv_env = np.where(env > 1e-11, 1.0 / np.maximum(env, 1e-30), 0.0)

    # (F*T, Lpad): spectrum -> windowed IDFT frames, overlap-added.
    istft_r = np.zeros((F, T, Lpad))
    istft_i = np.zeros((F, T, Lpad))
    for t in range(T):
        istft_r[:, t, t * hop_length:t * hop_length + N] = AW
        istft_i[:, t, t * hop_length:t * hop_length + N] = BW
    istft_r = istft_r.reshape(FT, Lpad)
    istft_i = istft_i.reshape(FT, Lpad)

    # (Lpad, T*N): envelope-divide + center-trim + reflect-pad + frame extraction.
    gather = np.zeros((Lpad, T * N))
    for t in range(T):
        for j in range(N):
            p = t * hop_length + j - pad
            src = _reflect_index(p, L) + pad
            gather[src, t * N + j] += inv_env[src]

    # (T*N, F*T): windowed frames -> one-sided DFT (real / imag parts).
    stft_r = np.zeros((T, N, F, T))
    stft_i = np.zeros((T, N, F, T))
    for t in range(T):
        stft_r[t, :, :, t] = CW
        stft_i[t, :, :, t] = DW
    stft_r = stft_r.reshape(T * N, FT)
    stft_i = stft_i.reshape(T * N, FT)

    # (Lpad, L): final envelope-divide + center-trim to the output waveform.
    finalize = np.zeros((Lpad, L))
    for j in range(L):
        finalize[j + pad, j] = inv_env[j + pad]

    # ---- offline composition: one GL iteration == one (2FT, 2FT) operator ----
    istft_stack = np.vstack([istft_r, istft_i])          # (2FT, Lpad)
    proj = gather @ np.hstack([stft_r, stft_i])          # (Lpad, 2FT)
    A = istft_stack @ proj                               # (2FT, 2FT)
    H = istft_stack @ finalize                           # (2FT, L)   (epilogue)

    # ---- pad to lane-dense (128-multiple) shapes ----
    FT_pad = _round_up(FT, 128)
    L_pad = _round_up(L, 128)
    A_pad = np.zeros((2 * FT_pad, 2 * FT_pad))
    H_pad = np.zeros((2 * FT_pad, L_pad))
    for rb, rs in ((0, 0), (FT_pad, FT)):
        for cb, cs in ((0, 0), (FT_pad, FT)):
            A_pad[rb:rb + FT, cb:cb + FT] = A[rs:rs + FT, cs:cs + FT]
        H_pad[rb:rb + FT, :L] = H[rs:rs + FT, :]

    return dict(
        # row-split operators: A_top acts on Re(s), A_bot on Im(s)
        A_top=jnp.asarray(A_pad[:FT_pad], dtype=operator_dtype),
        A_bot=jnp.asarray(A_pad[FT_pad:], dtype=operator_dtype),
        H_r=jnp.asarray(H_pad[:FT_pad], dtype=operator_dtype),
        H_i=jnp.asarray(H_pad[FT_pad:], dtype=operator_dtype),
        window=jnp.asarray(w, jnp.float32),
        inv_env=jnp.asarray(inv_env, jnp.float32),
        L=L, Lpad=Lpad, pad=pad, F=F, T=T, N=N,
        FT=FT, FT_pad=FT_pad, L_pad=L_pad,
    )


# --------------------------------- kernels ---------------------------------

def _gl_iteration_kernel(n_iter, ft_pad, op_dtype, unroll):
    """n_iter Griffin-Lim iterations; (sr, si) carried as a value tuple."""
    def kernel(sr0_ref, si0_ref, mag_ref, a_top_ref, a_bot_ref,
               sr_out_ref, si_out_ref):
        mag = mag_ref[...]                                  # (BB, FT_pad) f32

        def body(_, carry):
            sr, si = carry
            # Two MXU pushes accumulating into one f32 result (no concatenate):
            #   z = [sr | si] @ A  ==  sr @ A_top + si @ A_bot
            z = jnp.dot(sr.astype(op_dtype), a_top_ref[...],
                        preferred_element_type=jnp.float32)
            z = z + jnp.dot(si.astype(op_dtype), a_bot_ref[...],
                            preferred_element_type=jnp.float32)
            zr = z[:, :ft_pad]
            zi = z[:, ft_pad:]
            # phase renorm mag * z / |z| in f32 (rsqrt -> EUP, free slot)
            inv = jax.lax.rsqrt(zr * zr + zi * zi + 1e-30)
            return (mag * zr * inv, mag * zi * inv)

        sr, si = jax.lax.fori_loop(0, n_iter, body,
                                   (sr0_ref[...], si0_ref[...]), unroll=unroll)
        sr_out_ref[...] = sr
        si_out_ref[...] = si

    return kernel


def _gl_epilogue_kernel(op_dtype):
    """Final istft + envelope-divide + center-trim: out = sr @ H_r + si @ H_i."""
    def kernel(sr_ref, si_ref, hr_ref, hi_ref, out_ref):
        out_ref[...] = (
            jnp.dot(sr_ref[...].astype(op_dtype), hr_ref[...],
                    preferred_element_type=jnp.float32)
            + jnp.dot(si_ref[...].astype(op_dtype), hi_ref[...],
                      preferred_element_type=jnp.float32))
    return kernel


# --------------------------------- wrapper ----------------------------------

def griffin_lim_pallas(magnitude, *, n_fft, hop_length, win_length, n_iter, key,
                       operator_dtype=jnp.bfloat16, unroll=None):
    B, F, T = magnitude.shape
    assert F == n_fft // 2 + 1
    if hop_length >= win_length:            # same guard as the PyTorch module
        hop_length = win_length // 4
    ops = make_griffin_lim_operators(n_fft, hop_length, win_length, T,
                                     operator_dtype=operator_dtype)
    ft, ft_pad = ops["FT"], ops["FT_pad"]
    L, l_pad = ops["L"], ops["L_pad"]

    mag = jnp.clip(magnitude.astype(jnp.float32), 1e-8, 100.0)
    # TODO(synk): torch.rand_like RNG stream cannot be reproduced bit-exactly; use JAX PRNG.
    phase = jax.random.uniform(key, magnitude.shape, jnp.float32,
                               minval=-math.pi, maxval=math.pi)
    sr0 = mag * jnp.cos(phase)              # (B, F, T)
    si0 = mag * jnp.sin(phase)

    # Batch block: M=256 matches v6e/v7x MXU (on v5e it is just two 128-row
    # passes).  For small B the kernel is weight-streaming bound on A, so batch
    # more utterances per call when possible.
    BB = min(256, _round_up(B, 8))
    B_pad = _round_up(B, BB)
    sr0_p = jnp.zeros((B_pad, ft_pad), jnp.float32).at[:B, :ft].set(sr0.reshape(B, ft))
    si0_p = jnp.zeros((B_pad, ft_pad), jnp.float32).at[:B, :ft].set(si0.reshape(B, ft))
    mag_p = jnp.zeros((B_pad, ft_pad), jnp.float32).at[:B, :ft].set(mag.reshape(B, ft))

    # ---------------- per-generation VMEM budgeting / size gate ----------------
    op_item = jnp.dtype(operator_dtype).itemsize
    a_bytes = (2 * ft_pad) * (2 * ft_pad) * op_item      # A_top + A_bot total
    io_bytes = (5 * BB * ft_pad * 4) * 2                 # 3 inputs + 2 outputs, double-buffered
    tmp_bytes = 6 * BB * (2 * ft_pad) * 4                # in-loop z / renorm temporaries (generous)
    headroom = 4 * 2**20                                 # compiler internal scratch
    vmem_cap = _tpu_vmem_capacity_bytes()                # 128 MiB v5e/v6e, 64 MiB v7x

    def _iter_vmem_need(op_buffers):
        return op_buffers * a_bytes + io_bytes + tmp_bytes + headroom

    # TODO(synk): when this trips, switch to the factored per-frame formulation
    # (frames @ DFT + explicit overlap-add) instead of the dense composition.
    if _iter_vmem_need(1) > vmem_cap:
        raise ValueError(
            f"dense composed Griffin-Lim operator needs "
            f"{_iter_vmem_need(1) / 2**20:.1f} MiB VMEM "
            f"(A={a_bytes / 2**20:.1f} MiB at FT_pad={ft_pad}, "
            f"dtype={jnp.dtype(operator_dtype).name}) but this TPU core has "
            f"{vmem_cap / 2**20:.1f} MiB; use a smaller STFT, a narrower operator "
            f"dtype, or the factored per-frame formulation.")

    if unroll is None:
        # MXU-bound loop: full unroll only for short loops; otherwise modest
        # unroll keeps instruction memory / compile time under control.
        unroll = True if n_iter <= 8 else 4

    iter_cost = pl.CostEstimate(
        flops=int(n_iter) * int(B_pad) * (2 * ft_pad) * (2 * ft_pad) * 2,
        transcendentals=int(n_iter) * int(B_pad) * ft_pad,
        bytes_accessed=int(a_bytes + 5 * B_pad * ft_pad * 4))

    def _run_iteration(single_buffer_ops):
        # Constant operator blocks never change across grid steps -> single
        # buffer them (halves the dominant VMEM term).
        op_kw = dict(pipeline_mode=pl.Buffered(1)) if single_buffer_ops else {}
        op_buffers = 1 if single_buffer_ops else 2
        vmem_limit = int(min(max(vmem_cap - 2 * 2**20, 16 * 2**20),
                             max(_iter_vmem_need(op_buffers), 16 * 2**20)))
        return pl.pallas_call(
            _gl_iteration_kernel(n_iter, ft_pad, operator_dtype, unroll),
            out_shape=(jax.ShapeDtypeStruct((B_pad, ft_pad), jnp.float32),
                       jax.ShapeDtypeStruct((B_pad, ft_pad), jnp.float32)),
            grid=(B_pad // BB,),
            in_specs=[
                pl.BlockSpec((BB, ft_pad), lambda b: (b, 0)),                    # Re(S0)
                pl.BlockSpec((BB, ft_pad), lambda b: (b, 0)),                    # Im(S0)
                pl.BlockSpec((BB, ft_pad), lambda b: (b, 0)),                    # |S|
                pl.BlockSpec((ft_pad, 2 * ft_pad), lambda b: (0, 0), **op_kw),   # A_top
                pl.BlockSpec((ft_pad, 2 * ft_pad), lambda b: (0, 0), **op_kw),   # A_bot
            ],
            out_specs=(pl.BlockSpec((BB, ft_pad), lambda b: (b, 0)),
                       pl.BlockSpec((BB, ft_pad), lambda b: (b, 0))),
            compiler_params=pltpu.CompilerParams(
                dimension_semantics=("parallel",),   # batch blocks shard across TCs on v7x
                vmem_limit_bytes=vmem_limit),
            cost_estimate=iter_cost,
        )(sr0_p, si0_p, mag_p, ops["A_top"], ops["A_bot"])

    try:
        sr_f, si_f = _run_iteration(True)
    except Exception:
        # Fallback for jax builds where pipeline_mode / pl.Buffered(1) is unsupported.
        sr_f, si_f = _run_iteration(False)

    # ---------------- epilogue: stream H in column tiles (separate call) ----------------
    tl = l_pad
    for cand in (1024, 512, 256, 128):
        if l_pad % cand == 0:
            tl = cand
            break
    h_tile_bytes = 2 * ft_pad * tl * op_item
    epi_vmem = int(min(max(vmem_cap - 2 * 2**20, 16 * 2**20),
                       max(2 * h_tile_bytes + 2 * 4 * BB * (2 * ft_pad + tl) + headroom,
                           16 * 2**20)))
    epi_cost = pl.CostEstimate(
        flops=int(B_pad) * 2 * ft_pad * l_pad * 2,
        transcendentals=0,
        bytes_accessed=int(2 * ft_pad * l_pad * op_item + B_pad * (2 * ft_pad + l_pad) * 4))

    out_pad = pl.pallas_call(
        _gl_epilogue_kernel(operator_dtype),
        out_shape=jax.ShapeDtypeStruct((B_pad, l_pad), jnp.float32),
        grid=(B_pad // BB, l_pad // tl),
        in_specs=[
            pl.BlockSpec((BB, ft_pad), lambda b, j: (b, 0)),    # Re(S) final
            pl.BlockSpec((BB, ft_pad), lambda b, j: (b, 0)),    # Im(S) final
            pl.BlockSpec((ft_pad, tl), lambda b, j: (0, j)),    # H_r column tile
            pl.BlockSpec((ft_pad, tl), lambda b, j: (0, j)),    # H_i column tile
        ],
        out_specs=pl.BlockSpec((BB, tl), lambda b, j: (b, j)),
        compiler_params=pltpu.CompilerParams(
            dimension_semantics=("parallel", "parallel"),
            vmem_limit_bytes=epi_vmem),
        cost_estimate=epi_cost,
    )(sr_f, si_f, ops["H_r"], ops["H_i"])

    wave = out_pad[:B, :L]
    aux = dict(mag=mag, sr0=sr0, si0=si0, sr0_p=sr0_p, si0_p=si0_p, mag_p=mag_p,
               ops=ops, hop=hop_length, B_pad=B_pad)
    return wave, aux


# ----------------------------- references (pure JAX) -----------------------------

def griffin_lim_fft_reference(mag, sr0, si0, ops, hop, n_iter):
    """f32 FFT-based reference reproducing torch.stft/istft math (no Pallas)."""
    B, F, T = mag.shape
    N, pad, L, Lpad = ops["N"], ops["pad"], ops["L"], ops["Lpad"]
    w, inv_env = ops["window"], ops["inv_env"]

    def istft_ola(sr, si):
        spec = (sr + 1j * si).transpose(0, 2, 1)                    # (B, T, F)
        frames = jnp.fft.irfft(spec, n=N, axis=-1) * jnp.sqrt(float(N))
        frames = frames * w[None, None, :]
        y = jnp.zeros((B, Lpad), jnp.float32)
        for t in range(T):
            y = y.at[:, t * hop:t * hop + N].add(frames[:, t, :].astype(jnp.float32))
        return y

    def stft(x):
        xp = jnp.pad(x, ((0, 0), (pad, pad)), mode="reflect")
        frames = jnp.stack([xp[:, t * hop:t * hop + N] for t in range(T)], axis=1)
        frames = frames * w[None, None, :]
        spec = jnp.fft.rfft(frames, n=N, axis=-1) / jnp.sqrt(float(N))
        return spec.transpose(0, 2, 1)                              # (B, F, T)

    sr, si = sr0, si0
    for _ in range(n_iter):
        y = istft_ola(sr, si)
        x = (y * inv_env[None, :])[:, pad:pad + L]
        S = stft(x)
        srp = jnp.real(S).astype(jnp.float32)
        sip = jnp.imag(S).astype(jnp.float32)
        inv = jax.lax.rsqrt(srp * srp + sip * sip + 1e-30)
        sr, si = mag * srp * inv, mag * sip * inv
    y = istft_ola(sr, si)
    return (y * inv_env[None, :])[:, pad:pad + L]


def griffin_lim_composed_reference(sr0_p, si0_p, mag_p, ops, n_iter, op_dtype):
    """Quantization-matched pure-JAX mirror of the in-kernel composed-operator math."""
    ft_pad = ops["FT_pad"]
    a_top, a_bot = ops["A_top"], ops["A_bot"]
    h_r, h_i = ops["H_r"], ops["H_i"]

    def body(_, carry):
        sr, si = carry
        z = (jnp.dot(sr.astype(op_dtype), a_top, preferred_element_type=jnp.float32)
             + jnp.dot(si.astype(op_dtype), a_bot, preferred_element_type=jnp.float32))
        zr, zi = z[:, :ft_pad], z[:, ft_pad:]
        inv = jax.lax.rsqrt(zr * zr + zi * zi + 1e-30)
        return (mag_p * zr * inv, mag_p * zi * inv)

    sr, si = jax.lax.fori_loop(0, n_iter, body, (sr0_p, si0_p))
    return (jnp.dot(sr.astype(op_dtype), h_r, preferred_element_type=jnp.float32)
            + jnp.dot(si.astype(op_dtype), h_i, preferred_element_type=jnp.float32))


if __name__ == "__main__":
    n_fft, hop_length, win_length, n_iter = 16, 4, 16, 8
    B, F, T = 2, n_fft // 2 + 1, 8            # magnitude: (2, 9, 8)

    key = jax.random.PRNGKey(0)
    k_mag, k_phase = jax.random.split(key)
    magnitude = jax.random.uniform(k_mag, (B, F, T), jnp.float32, minval=0.0, maxval=2.0)

    # --- f32 operators: validate full Griffin-Lim semantics against FFT reference ---
    wave32, aux32 = griffin_lim_pallas(
        magnitude, n_fft=n_fft, hop_length=hop_length, win_length=win_length,
        n_iter=n_iter, key=k_phase, operator_dtype=jnp.float32)
    wave32 = jax.block_until_ready(wave32)
    used_hop = aux32["hop"]
    assert wave32.shape == (B, (T - 1) * used_hop), wave32.shape
    assert bool(jnp.all(jnp.isfinite(wave32)))

    ref_fft = griffin_lim_fft_reference(aux32["mag"], aux32["sr0"], aux32["si0"],
                                        aux32["ops"], used_hop, n_iter)
    err32 = float(jnp.max(jnp.abs(wave32 - ref_fft)))
    assert err32 < 5e-3, f"f32 kernel vs FFT reference max abs err = {err32}"

    # --- bf16 operators (fast path): validate against quantization-matched reference ---
    wave_bf, aux_bf = griffin_lim_pallas(
        magnitude, n_fft=n_fft, hop_length=hop_length, win_length=win_length,
        n_iter=n_iter, key=k_phase, operator_dtype=jnp.bfloat16)
    wave_bf = jax.block_until_ready(wave_bf)
    assert wave_bf.shape == (B, (T - 1) * used_hop)
    assert bool(jnp.all(jnp.isfinite(wave_bf)))

    ops_bf = aux_bf["ops"]
    ref_bf = griffin_lim_composed_reference(
        aux_bf["sr0_p"], aux_bf["si0_p"], aux_bf["mag_p"], ops_bf, n_iter,
        jnp.bfloat16)[:B, :ops_bf["L"]]
    err_bf = float(jnp.max(jnp.abs(wave_bf - ref_bf)))
    assert err_bf < 2e-2, f"bf16 kernel vs matched composed reference max abs err = {err_bf}"

    print("KERNEL_OK")
</pallas_src>

<mosaic_0001>
module attributes {stable_mosaic.version = 11 : i64} {
  func.func @kernel(%arg0: i32, %arg1: memref<8x128xf32, #tpu.memory_space<vmem>>, %arg2: memref<8x128xf32, #tpu.memory_space<vmem>>, %arg3: memref<8x128xf32, #tpu.memory_space<vmem>>, %arg4: memref<128x256xf32, #tpu.memory_space<vmem>>, %arg5: memref<128x256xf32, #tpu.memory_space<vmem>>, %arg6: memref<8x128xf32, #tpu.memory_space<vmem>>, %arg7: memref<8x128xf32, #tpu.memory_space<vmem>>) attributes {dimension_semantics = [#tpu.dimension_semantics<parallel>], iteration_bounds = array<i64: 1>, scalar_prefetch = 0 : i64, scratch_operands = 0 : i64, tpu.core_type = #tpu.core_type<tc>, window_params = [{transform_indices = @transform_0, window_bounds = array<i64: 8, 128>}, {transform_indices = @transform_1, window_bounds = array<i64: 8, 128>}, {transform_indices = @transform_2, window_bounds = array<i64: 8, 128>}, {pipeline_mode = #tpu.pipeline_mode<synchronous>, transform_indices = @transform_3, window_bounds = array<i64: 128, 256>}, {pipeline_mode = #tpu.pipeline_mode<synchronous>, transform_indices = @transform_4, window_bounds = array<i64: 128, 256>}, {transform_indices = @transform_5, window_bounds = array<i64: 8, 128>}, {transform_indices = @transform_6, window_bounds = array<i64: 8, 128>}]} {
    %c0 = arith.constant 0 : index
    %c0_0 = arith.constant 0 : index
    %0 = vector.load %arg3[%c0, %c0_0] : memref<8x128xf32, #tpu.memory_space<vmem>>, vector<8x128xf32>
    %c0_1 = arith.constant 0 : index
    %c0_2 = arith.constant 0 : index
    %1 = vector.load %arg1[%c0_1, %c0_2] : memref<8x128xf32, #tpu.memory_space<vmem>>, vector<8x128xf32>
    %c0_3 = arith.constant 0 : index
    %c0_4 = arith.constant 0 : index
    %2 = vector.load %arg2[%c0_3, %c0_4] : memref<8x128xf32, #tpu.memory_space<vmem>>, vector<8x128xf32>
    %c0_i32 = arith.constant 0 : i32
    %c0_5 = arith.constant 0 : index
    %c0_6 = arith.constant 0 : index
    %3 = vector.load %arg4[%c0_5, %c0_6] : memref<128x256xf32, #tpu.memory_space<vmem>>, vector<128x256xf32>
    %cst = arith.constant dense<0.000000e+00> : vector<8x256xf32>
    %4 = tpu.matmul %1, %3, %cst {dimension_numbers = #tpu.dot_dimension_numbers<[1], [0], [0], [1], [0, 0, 1, 1], [], []>} : vector<8x128xf32>, vector<128x256xf32>, vector<8x256xf32> -> vector<8x256xf32>
    %c0_7 = arith.constant 0 : index
    %c0_8 = arith.constant 0 : index
    %5 = vector.load %arg5[%c0_7, %c0_8] : memref<128x256xf32, #tpu.memory_space<vmem>>, vector<128x256xf32>
    %cst_9 = arith.constant dense<0.000000e+00> : vector<8x256xf32>
    %6 = tpu.matmul %2, %5, %cst_9 {dimension_numbers = #tpu.dot_dimension_numbers<[1], [0], [0], [1], [0, 0, 1, 1], [], []>} : vector<8x128xf32>, vector<128x256xf32>, vector<8x256xf32> -> vector<8x256xf32>
    %7 = arith.addf %4, %6 : vector<8x256xf32>
    %8 = vector.extract_strided_slice %7 {offsets = [0, 0], sizes = [8, 128], strides = [1, 1]} : vector<8x256xf32> to vector<8x128xf32>
    %9 = vector.extract_strided_slice %7 {offsets = [0, 128], sizes = [8, 128], strides = [1, 1]} : vector<8x256xf32> to vector<8x128xf32>
    %10 = arith.mulf %8, %8 : vector<8x128xf32>
    %11 = arith.mulf %9, %9 : vector<8x128xf32>
    %12 = arith.addf %10, %11 : vector<8x128xf32>
    %cst_10 = arith.constant 1.000000e-30 : f32
    %13 = vector.broadcast %cst_10 : f32 to vector<8x128xf32>
    %14 = arith.addf %12, %13 : vector<8x128xf32>
    %15 = math.rsqrt %14 : vector<8x128xf32>
    %16 = arith.mulf %0, %8 : vector<8x128xf32>
    %17 = arith.mulf %16, %15 : vector<8x128xf32>
    %18 = arith.mulf %0, %9 : vector<8x128xf32>
    %19 = arith.mulf %18, %15 : vector<8x128xf32>
    %c1_i32 = arith.constant 1 : i32
    %c0_11 = arith.constant 0 : index
    %c0_12 = arith.constant 0 : index
    %20 = vector.load %arg4[%c0_11, %c0_12] : memref<128x256xf32, #tpu.memory_space<vmem>>, vector<128x256xf32>
    %cst_13 = arith.constant dense<0.000000e+00> : vector<8x256xf32>
    %21 = tpu.matmul %17, %20, %cst_13 {dimension_numbers = #tpu.dot_dimension_numbers<[1], [0], [0], [1], [0, 0, 1, 1], [], []>} : vector<8x128xf32>, vector<128x256xf32>, vector<8x256xf32> -> vector<8x256xf32>
    %c0_14 = arith.constant 0 : index
    %c0_15 = arith.constant 0 : index
    %22 = vector.load %arg5[%c0_14, %c0_15] : memref<128x256xf32, #tpu.memory_space<vmem>>, vector<128x256xf32>
    %cst_16 = arith.constant dense<0.000000e+00> : vector<8x256xf32>
    %23 = tpu.matmul %19, %22, %cst_16 {dimension_numbers = #tpu.dot_dimension_numbers<[1], [0], [0], [1], [0, 0, 1, 1], [], []>} : vector<8x128xf32>, vector<128x256xf32>, vector<8x256xf32> -> vector<8x256xf32>
    %24 = arith.addf %21, %23 : vector<8x256xf32>
    %25 = vector.extract_strided_slice %24 {offsets = [0, 0], sizes = [8, 128], strides = [1, 1]} : vector<8x256xf32> to vector<8x128xf32>
    %26 = vector.extract_strided_slice %24 {offsets = [0, 128], sizes = [8, 128], strides = [1, 1]} : vector<8x256xf32> to vector<8x128xf32>
    %27 = arith.mulf %25, %25 : vector<8x128xf32>
    %28 = arith.mulf %26, %26 : vector<8x128xf32>
    %29 = arith.addf %27, %28 : vector<8x128xf32>
    %cst_17 = arith.constant 1.000000e-30 : f32
    %30 = vector.broadcast %cst_17 : f32 to vector<8x128xf32>
    %31 = arith.addf %29, %30 : vector<8x128xf32>
    %32 = math.rsqrt %31 : vector<8x128xf32>
    %33 = arith.mulf %0, %25 : vector<8x128xf32>
    %34 = arith.mulf %33, %32 : vector<8x128xf32>
    %35 = arith.mulf %0, %26 : vector<8x128xf32>
    %36 = arith.mulf %35, %32 : vector<8x128xf32>
    %c2_i32 = arith.constant 2 : i32
    %c0_18 = arith.constant 0 : index
    %c0_19 = arith.constant 0 : index
    %37 = vector.load %arg4[%c0_18, %c0_19] : memref<128x256xf32, #tpu.memory_space<vmem>>, vector<128x256xf32>
    %cst_20 = arith.constant dense<0.000000e+00> : vector<8x256xf32>
    %38 = tpu.matmul %34, %37, %cst_20 {dimension_numbers = #tpu.dot_dimension_numbers<[1], [0], [0], [1], [0, 0, 1, 1], [], []>} : vector<8x128xf32>, vector<128x256xf32>, vector<8x256xf32> -> vector<8x256xf32>
    %c0_21 = arith.constant 0 : index
    %c0_22 = arith.constant 0 : index
    %39 = vector.load %arg5[%c0_21, %c0_22] : memref<128x256xf32, #tpu.memory_space<vmem>>, vector<128x256xf32>
    %cst_23 = arith.constant dense<0.000000e+00> : vector<8x256xf32>
    %40 = tpu.matmul %36, %39, %cst_23 {dimension_numbers = #tpu.dot_dimension_numbers<[1], [0], [0], [1], [0, 0, 1, 1], [], []>} : vector<8x128xf32>, vector<128x256xf32>, vector<8x256xf32> -> vector<8x256xf32>
    %41 = arith.addf %38, %40 : vector<8x256xf32>
    %42 = vector.extract_strided_slice %41 {offsets = [0, 0], sizes = [8, 128], strides = [1, 1]} : vector<8x256xf32> to vector<8x128xf32>
    %43 = vector.extract_strided_slice %41 {offsets = [0, 128], sizes = [8, 128], strides = [1, 1]} : vector<8x256xf32> to vector<8x128xf32>
    %44 = arith.mulf %42, %42 : vector<8x128xf32>
    %45 = arith.mulf %43, %43 : vector<8x128xf32>
    %46 = arith.addf %44, %45 : vector<8x128xf32>
    %cst_24 = arith.constant 1.000000e-30 : f32
    %47 = vector.broadcast %cst_24 : f32 to vector<8x128xf32>
    %48 = arith.addf %46, %47 : vector<8x128xf32>
    %49 = math.rsqrt %48 : vector<8x128xf32>
    %50 = arith.mulf %0, %42 : vector<8x128xf32>
    %51 = arith.mulf %50, %49 : vector<8x128xf32>
    %52 = arith.mulf %0, %43 : vector<8x128xf32>
    %53 = arith.mulf %52, %49 : vector<8x128xf32>
    %c3_i32 = arith.constant 3 : i32
    %c0_25 = arith.constant 0 : index
    %c0_26 = arith.constant 0 : index
    %54 = vector.load %arg4[%c0_25, %c0_26] : memref<128x256xf32, #tpu.memory_space<vmem>>, vector<128x256xf32>
    %cst_27 = arith.constant dense<0.000000e+00> : vector<8x256xf32>
    %55 = tpu.matmul %51, %54, %cst_27 {dimension_numbers = #tpu.dot_dimension_numbers<[1], [0], [0], [1], [0, 0, 1, 1], [], []>} : vector<8x128xf32>, vector<128x256xf32>, vector<8x256xf32> -> vector<8x256xf32>
    %c0_28 = arith.constant 0 : index
    %c0_29 = arith.constant 0 : index
    %56 = vector.load %arg5[%c0_28, %c0_29] : memref<128x256xf32, #tpu.memory_space<vmem>>, vector<128x256xf32>
    %cst_30 = arith.constant dense<0.000000e+00> : vector<8x256xf32>
    %57 = tpu.matmul %53, %56, %cst_30 {dimension_numbers = #tpu.dot_dimension_numbers<[1], [0], [0], [1], [0, 0, 1, 1], [], []>} : vector<8x128xf32>, vector<128x256xf32>, vector<8x256xf32> -> vector<8x256xf32>
    %58 = arith.addf %55, %57 : vector<8x256xf32>
    %59 = vector.extract_strided_slice %58 {offsets = [0, 0], sizes = [8, 128], strides = [1, 1]} : vector<8x256xf32> to vector<8x128xf32>
    %60 = vector.extract_strided_slice %58 {offsets = [0, 128], sizes = [8, 128], strides = [1, 1]} : vector<8x256xf32> to vector<8x128xf32>
    %61 = arith.mulf %59, %59 : vector<8x128xf32>
    %62 = arith.mulf %60, %60 : vector<8x128xf32>
    %63 = arith.addf %61, %62 : vector<8x128xf32>
    %cst_31 = arith.constant 1.000000e-30 : f32
    %64 = vector.broadcast %cst_31 : f32 to vector<8x128xf32>
    %65 = arith.addf %63, %64 : vector<8x128xf32>
    %66 = math.rsqrt %65 : vector<8x128xf32>
    %67 = arith.mulf %0, %59 : vector<8x128xf32>
    %68 = arith.mulf %67, %66 : vector<8x128xf32>
    %69 = arith.mulf %0, %60 : vector<8x128xf32>
    %70 = arith.mulf %69, %66 : vector<8x128xf32>
    %c4_i32 = arith.constant 4 : i32
    %c0_32 = arith.constant 0 : index
    %c0_33 = arith.constant 0 : index
    %71 = vector.load %arg4[%c0_32, %c0_33] : memref<128x256xf32, #tpu.memory_space<vmem>>, vector<128x256xf32>
    %cst_34 = arith.constant dense<0.000000e+00> : vector<8x256xf32>
    %72 = tpu.matmul %68, %71, %cst_34 {dimension_numbers = #tpu.dot_dimension_numbers<[1], [0], [0], [1], [0, 0, 1, 1], [], []>} : vector<8x128xf32>, vector<128x256xf32>, vector<8x256xf32> -> vector<8x256xf32>
    %c0_35 = arith.constant 0 : index
    %c0_36 = arith.constant 0 : index
    %73 = vector.load %arg5[%c0_35, %c0_36] : memref<128x256xf32, #tpu.memory_space<vmem>>, vector<128x256xf32>
    %cst_37 = arith.constant dense<0.000000e+00> : vector<8x256xf32>
    %74 = tpu.matmul %70, %73, %cst_37 {dimension_numbers = #tpu.dot_dimension_numbers<[1], [0], [0], [1], [0, 0, 1, 1], [], []>} : vector<8x128xf32>, vector<128x256xf32>, vector<8x256xf32> -> vector<8x256xf32>
    %75 = arith.addf %72, %74 : vector<8x256xf32>
    %76 = vector.extract_strided_slice %75 {offsets = [0, 0], sizes = [8, 128], strides = [1, 1]} : vector<8x256xf32> to vector<8x128xf32>
    %77 = vector.extract_strided_slice %75 {offsets = [0, 128], sizes = [8, 128], strides = [1, 1]} : vector<8x256xf32> to vector<8x128xf32>
    %78 = arith.mulf %76, %76 : vector<8x128xf32>
    %79 = arith.mulf %77, %77 : vector<8x128xf32>
    %80 = arith.addf %78, %79 : vector<8x128xf32>
    %cst_38 = arith.constant 1.000000e-30 : f32
    %81 = vector.broadcast %cst_38 : f32 to vector<8x128xf32>
    %82 = arith.addf %80, %81 : vector<8x128xf32>
    %83 = math.rsqrt %82 : vector<8x128xf32>
    %84 = arith.mulf %0, %76 : vector<8x128xf32>
    %85 = arith.mulf %84, %83 : vector<8x128xf32>
    %86 = arith.mulf %0, %77 : vector<8x128xf32>
    %87 = arith.mulf %86, %83 : vector<8x128xf32>
    %c5_i32 = arith.constant 5 : i32
    %c0_39 = arith.constant 0 : index
    %c0_40 = arith.constant 0 : index
    %88 = vector.load %arg4[%c0_39, %c0_40] : memref<128x256xf32, #tpu.memory_space<vmem>>, vector<128x256xf32>
    %cst_41 = arith.constant dense<0.000000e+00> : vector<8x256xf32>
    %89 = tpu.matmul %85, %88, %cst_41 {dimension_numbers = #tpu.dot_dimension_numbers<[1], [0], [0], [1], [0, 0, 1, 1], [], []>} : vector<8x128xf32>, vector<128x256xf32>, vector<8x256xf32> -> vector<8x256xf32>
    %c0_42 = arith.constant 0 : index
    %c0_43 = arith.constant 0 : index
    %90 = vector.load %arg5[%c0_42, %c0_43] : memref<128x256xf32, #tpu.memory_space<vmem>>, vector<128x256xf32>
    %cst_44 = arith.constant dense<0.000000e+00> : vector<8x256xf32>
    %91 = tpu.matmul %87, %90, %cst_44 {dimension_numbers = #tpu.dot_dimension_numbers<[1], [0], [0], [1], [0, 0, 1, 1], [], []>} : vector<8x128xf32>, vector<128x256xf32>, vector<8x256xf32> -> vector<8x256xf32>
    %92 = arith.addf %89, %91 : vector<8x256xf32>
    %93 = vector.extract_strided_slice %92 {offsets = [0, 0], sizes = [8, 128], strides = [1, 1]} : vector<8x256xf32> to vector<8x128xf32>
    %94 = vector.extract_strided_slice %92 {offsets = [0, 128], sizes = [8, 128], strides = [1, 1]} : vector<8x256xf32> to vector<8x128xf32>
    %95 = arith.mulf %93, %93 : vector<8x128xf32>
    %96 = arith.mulf %94, %94 : vector<8x128xf32>
    %97 = arith.addf %95, %96 : vector<8x128xf32>
    %cst_45 = arith.constant 1.000000e-30 : f32
    %98 = vector.broadcast %cst_45 : f32 to vector<8x128xf32>
    %99 = arith.addf %97, %98 : vector<8x128xf32>
    %100 = math.rsqrt %99 : vector<8x128xf32>
    %101 = arith.mulf %0, %93 : vector<8x128xf32>
    %102 = arith.mulf %101, %100 : vector<8x128xf32>
    %103 = arith.mulf %0, %94 : vector<8x128xf32>
    %104 = arith.mulf %103, %100 : vector<8x128xf32>
    %c6_i32 = arith.constant 6 : i32
    %c0_46 = arith.constant 0 : index
    %c0_47 = arith.constant 0 : index
    %105 = vector.load %arg4[%c0_46, %c0_47] : memref<128x256xf32, #tpu.memory_space<vmem>>, vector<128x256xf32>
    %cst_48 = arith.constant dense<0.000000e+00> : vector<8x256xf32>
    %106 = tpu.matmul %102, %105, %cst_48 {dimension_numbers = #tpu.dot_dimension_numbers<[1], [0], [0], [1], [0, 0, 1, 1], [], []>} : vector<8x128xf32>, vector<128x256xf32>, vector<8x256xf32> -> vector<8x256xf32>
    %c0_49 = arith.constant 0 : index
    %c0_50 = arith.constant 0 : index
    %107 = vector.load %arg5[%c0_49, %c0_50] : memref<128x256xf32, #tpu.memory_space<vmem>>, vector<128x256xf32>
    %cst_51 = arith.constant dense<0.000000e+00> : vector<8x256xf32>
    %108 = tpu.matmul %104, %107, %cst_51 {dimension_numbers = #tpu.dot_dimension_numbers<[1], [0], [0], [1], [0, 0, 1, 1], [], []>} : vector<8x128xf32>, vector<128x256xf32>, vector<8x256xf32> -> vector<8x256xf32>
    %109 = arith.addf %106, %108 : vector<8x256xf32>
    %110 = vector.extract_strided_slice %109 {offsets = [0, 0], sizes = [8, 128], strides = [1, 1]} : vector<8x256xf32> to vector<8x128xf32>
    %111 = vector.extract_strided_slice %109 {offsets = [0, 128], sizes = [8, 128], strides = [1, 1]} : vector<8x256xf32> to vector<8x128xf32>
    %112 = arith.mulf %110, %110 : vector<8x128xf32>
    %113 = arith.mulf %111, %111 : vector<8x128xf32>
    %114 = arith.addf %112, %113 : vector<8x128xf32>
    %cst_52 = arith.constant 1.000000e-30 : f32
    %115 = vector.broadcast %cst_52 : f32 to vector<8x128xf32>
    %116 = arith.addf %114, %115 : vector<8x128xf32>
    %117 = math.rsqrt %116 : vector<8x128xf32>
    %118 = arith.mulf %0, %110 : vector<8x128xf32>
    %119 = arith.mulf %118, %117 : vector<8x128xf32>
    %120 = arith.mulf %0, %111 : vector<8x128xf32>
    %121 = arith.mulf %120, %117 : vector<8x128xf32>
    %c7_i32 = arith.constant 7 : i32
    %c0_53 = arith.constant 0 : index
    %c0_54 = arith.constant 0 : index
    %122 = vector.load %arg4[%c0_53, %c0_54] : memref<128x256xf32, #tpu.memory_space<vmem>>, vector<128x256xf32>
    %cst_55 = arith.constant dense<0.000000e+00> : vector<8x256xf32>
    %123 = tpu.matmul %119, %122, %cst_55 {dimension_numbers = #tpu.dot_dimension_numbers<[1], [0], [0], [1], [0, 0, 1, 1], [], []>} : vector<8x128xf32>, vector<128x256xf32>, vector<8x256xf32> -> vector<8x256xf32>
    %c0_56 = arith.constant 0 : index
    %c0_57 = arith.constant 0 : index
    %124 = vector.load %arg5[%c0_56, %c0_57] : memref<128x256xf32, #tpu.memory_space<vmem>>, vector<128x256xf32>
    %cst_58 = arith.constant dense<0.000000e+00> : vector<8x256xf32>
    %125 = tpu.matmul %121, %124, %cst_58 {dimension_numbers = #tpu.dot_dimension_numbers<[1], [0], [0], [1], [0, 0, 1, 1], [], []>} : vector<8x128xf32>, vector<128x256xf32>, vector<8x256xf32> -> vector<8x256xf32>
    %126 = arith.addf %123, %125 : vector<8x256xf32>
    %127 = vector.extract_strided_slice %126 {offsets = [0, 0], sizes = [8, 128], strides = [1, 1]} : vector<8x256xf32> to vector<8x128xf32>
    %128 = vector.extract_strided_slice %126 {offsets = [0, 128], sizes = [8, 128], strides = [1, 1]} : vector<8x256xf32> to vector<8x128xf32>
    %129 = arith.mulf %127, %127 : vector<8x128xf32>
    %130 = arith.mulf %128, %128 : vector<8x128xf32>
    %131 = arith.addf %129, %130 : vector<8x128xf32>
    %cst_59 = arith.constant 1.000000e-30 : f32
    %132 = vector.broadcast %cst_59 : f32 to vector<8x128xf32>
    %133 = arith.addf %131, %132 : vector<8x128xf32>
    %134 = math.rsqrt %133 : vector<8x128xf32>
    %135 = arith.mulf %0, %127 : vector<8x128xf32>
    %136 = arith.mulf %135, %134 : vector<8x128xf32>
    %137 = arith.mulf %0, %128 : vector<8x128xf32>
    %138 = arith.mulf %137, %134 : vector<8x128xf32>
    %c0_60 = arith.constant 0 : index
    %c0_61 = arith.constant 0 : index
    %139 = vector.load %arg6[%c0_60, %c0_61] : memref<8x128xf32, #tpu.memory_space<vmem>>, vector<8x128xf32>
    tpu.vector_store %arg6[%c0_60, %c0_61], %136 {strides = array<i32>} : memref<8x128xf32, #tpu.memory_space<vmem>>, vector<8x128xf32>,
    %c0_62 = arith.constant 0 : index
    %c0_63 = arith.constant 0 : index
    %140 = vector.load %arg7[%c0_62, %c0_63] : memref<8x128xf32, #tpu.memory_space<vmem>>, vector<8x128xf32>
    tpu.vector_store %arg7[%c0_62, %c0_63], %138 {strides = array<i32>} : memref<8x128xf32, #tpu.memory_space<vmem>>, vector<8x128xf32>,
    return
  }
  func.func @transform_0(%arg0: i32) -> (i32, i32) {
    %c0_i32 = arith.constant 0 : i32
    %c0_i32_0 = arith.constant 0 : i32
    return %arg0, %c0_i32 : i32, i32
  }
  func.func @transform_1(%arg0: i32) -> (i32, i32) {
    %c0_i32 = arith.constant 0 : i32
    %c0_i32_0 = arith.constant 0 : i32
    return %arg0, %c0_i32 : i32, i32
  }
  func.func @transform_2(%arg0: i32) -> (i32, i32) {
    %c0_i32 = arith.constant 0 : i32
    %c0_i32_0 = arith.constant 0 : i32
    return %arg0, %c0_i32 : i32, i32
  }
  func.func @transform_3(%arg0: i32) -> (i32, i32) {
    %c0_i32 = arith.constant 0 : i32
    %c0_i32_0 = arith.constant 0 : i32
    %c0_i32_1 = arith.constant 0 : i32
    return %c0_i32, %c0_i32_0 : i32, i32
  }
  func.func @transform_4(%arg0: i32) -> (i32, i32) {
    %c0_i32 = arith.constant 0 : i32
    %c0_i32_0 = arith.constant 0 : i32
    %c0_i32_1 = arith.constant 0 : i32
    return %c0_i32, %c0_i32_0 : i32, i32
  }
  func.func @transform_5(%arg0: i32) -> (i32, i32) {
    %c0_i32 = arith.constant 0 : i32
    %c0_i32_0 = arith.constant 0 : i32
    return %arg0, %c0_i32 : i32, i32
  }
  func.func @transform_6(%arg0: i32) -> (i32, i32) {
    %c0_i32 = arith.constant 0 : i32
    %c0_i32_0 = arith.constant 0 : i32
    return %arg0, %c0_i32 : i32, i32
  }
}

module attributes {stable_mosaic.version = 11 : i64} {
  func.func @kernel(%arg0: i32, %arg1: memref<8x128xf32, #tpu.memory_space<vmem>>, %arg2: memref<8x128xf32, #tpu.memory_space<vmem>>, %arg3: memref<8x128xf32, #tpu.memory_space<vmem>>, %arg4: memref<128x256xf32, #tpu.memory_space<vmem>>, %arg5: memref<128x256xf32, #tpu.memory_space<vmem>>, %arg6: memref<8x128xf32, #tpu.memory_space<vmem>>, %arg7: memref<8x128xf32, #tpu.memory_space<vmem>>) attributes {dimension_semantics = [#tpu.dimension_semantics<parallel>], iteration_bounds = array<i64: 1>, scalar_prefetch = 0 : i64, scratch_operands = 0 : i64, tpu.core_type = #tpu.core_type<tc>, window_params = [{transform_indices = @transform_0, window_bounds = array<i64: 8, 128>}, {transform_indices = @transform_1, window_bounds = array<i64: 8, 128>}, {transform_indices = @transform_2, window_bounds = array<i64: 8, 128>}, {pipeline_mode = #tpu.pipeline_mode<synchronous>, transform_indices = @transform_3, window_bounds = array<i64: 128, 256>}, {pipeline_mode = #tpu.pipeline_mode<synchronous>, transform_indices = @transform_4, window_bounds = array<i64: 128, 256>}, {transform_indices = @transform_5, window_bounds = array<i64: 8, 128>}, {transform_indices = @transform_6, window_bounds = array<i64: 8, 128>}]} {
    %c0 = arith.constant 0 : index
    %c0_0 = arith.constant 0 : index
    %0 = vector.load %arg3[%c0, %c0_0] : memref<8x128xf32, #tpu.memory_space<vmem>>, vector<8x128xf32>
    %c0_1 = arith.constant 0 : index
    %c0_2 = arith.constant 0 : index
    %1 = vector.load %arg1[%c0_1, %c0_2] : memref<8x128xf32, #tpu.memory_space<vmem>>, vector<8x128xf32>
    %c0_3 = arith.constant 0 : index
    %c0_4 = arith.constant 0 : index
    %2 = vector.load %arg2[%c0_3, %c0_4] : memref<8x128xf32, #tpu.memory_space<vmem>>, vector<8x128xf32>
    %c0_i32 = arith.constant 0 : i32
    %c0_5 = arith.constant 0 : index
    %c0_6 = arith.constant 0 : index
    %3 = vector.load %arg4[%c0_5, %c0_6] : memref<128x256xf32, #tpu.memory_space<vmem>>, vector<128x256xf32>
    %cst = arith.constant dense<0.000000e+00> : vector<8x256xf32>
    %4 = tpu.matmul %1, %3, %cst {dimension_numbers = #tpu.dot_dimension_numbers<[1], [0], [0], [1], [0, 0, 1, 1], [], []>} : vector<8x128xf32>, vector<128x256xf32>, vector<8x256xf32> -> vector<8x256xf32>
    %c0_7 = arith.constant 0 : index
    %c0_8 = arith.constant 0 : index
    %5 = vector.load %arg5[%c0_7, %c0_8] : memref<128x256xf32, #tpu.memory_space<vmem>>, vector<128x256xf32>
    %cst_9 = arith.constant dense<0.000000e+00> : vector<8x256xf32>
    %6 = tpu.matmul %2, %5, %cst_9 {dimension_numbers = #tpu.dot_dimension_numbers<[1], [0], [0], [1], [0, 0, 1, 1], [], []>} : vector<8x128xf32>, vector<128x256xf32>, vector<8x256xf32> -> vector<8x256xf32>
    %7 = arith.addf %4, %6 : vector<8x256xf32>
    %8 = vector.extract_strided_slice %7 {offsets = [0, 0], sizes = [8, 128], strides = [1, 1]} : vector<8x256xf32> to vector<8x128xf32>
    %9 = vector.extract_strided_slice %7 {offsets = [0, 128], sizes = [8, 128], strides = [1, 1]} : vector<8x256xf32> to vector<8x128xf32>
    %10 = arith.mulf %8, %8 : vector<8x128xf32>
    %11 = arith.mulf %9, %9 : vector<8x128xf32>
    %12 = arith.addf %10, %11 : vector<8x128xf32>
    %cst_10 = arith.constant 1.000000e-30 : f32
    %13 = vector.broadcast %cst_10 : f32 to vector<8x128xf32>
    %14 = arith.addf %12, %13 : vector<8x128xf32>
    %15 = math.rsqrt %14 : vector<8x128xf32>
    %16 = arith.mulf %0, %8 : vector<8x128xf32>
    %17 = arith.mulf %16, %15 : vector<8x128xf32>
    %18 = arith.mulf %0, %9 : vector<8x128xf32>
    %19 = arith.mulf %18, %15 : vector<8x128xf32>
    %c1_i32 = arith.constant 1 : i32
    %c0_11 = arith.constant 0 : index
    %c0_12 = arith.constant 0 : index
    %20 = vector.load %arg4[%c0_11, %c0_12] : memref<128x256xf32, #tpu.memory_space<vmem>>, vector<128x256xf32>
    %cst_13 = arith.constant dense<0.000000e+00> : vector<8x256xf32>
    %21 = tpu.matmul %17, %20, %cst_13 {dimension_numbers = #tpu.dot_dimension_numbers<[1], [0], [0], [1], [0, 0, 1, 1], [], []>} : vector<8x128xf32>, vector<128x256xf32>, vector<8x256xf32> -> vector<8x256xf32>
    %c0_14 = arith.constant 0 : index
    %c0_15 = arith.constant 0 : index
    %22 = vector.load %arg5[%c0_14, %c0_15] : memref<128x256xf32, #tpu.memory_space<vmem>>, vector<128x256xf32>
    %cst_16 = arith.constant dense<0.000000e+00> : vector<8x256xf32>
    %23 = tpu.matmul %19, %22, %cst_16 {dimension_numbers = #tpu.dot_dimension_numbers<[1], [0], [0], [1], [0, 0, 1, 1], [], []>} : vector<8x128xf32>, vector<128x256xf32>, vector<8x256xf32> -> vector<8x256xf32>
    %24 = arith.addf %21, %23 : vector<8x256xf32>
    %25 = vector.extract_strided_slice %24 {offsets = [0, 0], sizes = [8, 128], strides = [1, 1]} : vector<8x256xf32> to vector<8x128xf32>
    %26 = vector.extract_strided_slice %24 {offsets = [0, 128], sizes = [8, 128], strides = [1, 1]} : vector<8x256xf32> to vector<8x128xf32>
    %27 = arith.mulf %25, %25 : vector<8x128xf32>
    %28 = arith.mulf %26, %26 : vector<8x128xf32>
    %29 = arith.addf %27, %28 : vector<8x128xf32>
    %cst_17 = arith.constant 1.000000e-30 : f32
    %30 = vector.broadcast %cst_17 : f32 to vector<8x128xf32>
    %31 = arith.addf %29, %30 : vector<8x128xf32>
    %32 = math.rsqrt %31 : vector<8x128xf32>
    %33 = arith.mulf %0, %25 : vector<8x128xf32>
    %34 = arith.mulf %33, %32 : vector<8x128xf32>
    %35 = arith.mulf %0, %26 : vector<8x128xf32>
    %36 = arith.mulf %35, %32 : vector<8x128xf32>
    %c2_i32 = arith.constant 2 : i32
    %c0_18 = arith.constant 0 : index
    %c0_19 = arith.constant 0 : index
    %37 = vector.load %arg4[%c0_18, %c0_19] : memref<128x256xf32, #tpu.memory_space<vmem>>, vector<128x256xf32>
    %cst_20 = arith.constant dense<0.000000e+00> : vector<8x256xf32>
    %38 = tpu.matmul %34, %37, %cst_20 {dimension_numbers = #tpu.dot_dimension_numbers<[1], [0], [0], [1], [0, 0, 1, 1], [], []>} : vector<8x128xf32>, vector<128x256xf32>, vector<8x256xf32> -> vector<8x256xf32>
    %c0_21 = arith.constant 0 : index
    %c0_22 = arith.constant 0 : index
    %39 = vector.load %arg5[%c0_21, %c0_22] : memref<128x256xf32, #tpu.memory_space<vmem>>, vector<128x256xf32>
    %cst_23 = arith.constant dense<0.000000e+00> : vector<8x256xf32>
    %40 = tpu.matmul %36, %39, %cst_23 {dimension_numbers = #tpu.dot_dimension_numbers<[1], [0], [0], [1], [0, 0, 1, 1], [], []>} : vector<8x128xf32>, vector<128x256xf32>, vector<8x256xf32> -> vector<8x256xf32>
    %41 = arith.addf %38, %40 : vector<8x256xf32>
    %42 = vector.extract_strided_slice %41 {offsets = [0, 0], sizes = [8, 128], strides = [1, 1]} : vector<8x256xf32> to vector<8x128xf32>
    %43 = vector.extract_strided_slice %41 {offsets = [0, 128], sizes = [8, 128], strides = [1, 1]} : vector<8x256xf32> to vector<8x128xf32>
    %44 = arith.mulf %42, %42 : vector<8x128xf32>
    %45 = arith.mulf %43, %43 : vector<8x128xf32>
    %46 = arith.addf %44, %45 : vector<8x128xf32>
    %cst_24 = arith.constant 1.000000e-30 : f32
    %47 = vector.broadcast %cst_24 : f32 to vector<8x128xf32>
    %48 = arith.addf %46, %47 : vector<8x128xf32>
    %49 = math.rsqrt %48 : vector<8x128xf32>
    %50 = arith.mulf %0, %42 : vector<8x128xf32>
    %51 = arith.mulf %50, %49 : vector<8x128xf32>
    %52 = arith.mulf %0, %43 : vector<8x128xf32>
    %53 = arith.mulf %52, %49 : vector<8x128xf32>
    %c3_i32 = arith.constant 3 : i32
    %c0_25 = arith.constant 0 : index
    %c0_26 = arith.constant 0 : index
    %54 = vector.load %arg4[%c0_25, %c0_26] : memref<128x256xf32, #tpu.memory_space<vmem>>, vector<128x256xf32>
    %cst_27 = arith.constant dense<0.000000e+00> : vector<8x256xf32>
    %55 = tpu.matmul %51, %54, %cst_27 {dimension_numbers = #tpu.dot_dimension_numbers<[1], [0], [0], [1], [0, 0, 1, 1], [], []>} : vector<8x128xf32>, vector<128x256xf32>, vector<8x256xf32> -> vector<8x256xf32>
    %c0_28 = arith.constant 0 : index
    %c0_29 = arith.constant 0 : index
    %56 = vector.load %arg5[%c0_28, %c0_29] : memref<128x256xf32, #tpu.memory_space<vmem>>, vector<128x256xf32>
    %cst_30 = arith.constant dense<0.000000e+00> : vector<8x256xf32>
    %57 = tpu.matmul %53, %56, %cst_30 {dimension_numbers = #tpu.dot_dimension_numbers<[1], [0], [0], [1], [0, 0, 1, 1], [], []>} : vector<8x128xf32>, vector<128x256xf32>, vector<8x256xf32> -> vector<8x256xf32>
    %58 = arith.addf %55, %57 : vector<8x256xf32>
    %59 = vector.extract_strided_slice %58 {offsets = [0, 0], sizes = [8, 128], strides = [1, 1]} : vector<8x256xf32> to vector<8x128xf32>
    %60 = vector.extract_strided_slice %58 {offsets = [0, 128], sizes = [8, 128], strides = [1, 1]} : vector<8x256xf32> to vector<8x128xf32>
    %61 = arith.mulf %59, %59 : vector<8x128xf32>
    %62 = arith.mulf %60, %60 : vector<8x128xf32>
    %63 = arith.addf %61, %62 : vector<8x128xf32>
    %cst_31 = arith.constant 1.000000e-30 : f32
    %64 = vector.broadcast %cst_31 : f32 to vector<8x128xf32>
    %65 = arith.addf %63, %64 : vector<8x128xf32>
    %66 = math.rsqrt %65 : vector<8x128xf32>
    %67 = arith.mulf %0, %59 : vector<8x128xf32>
    %68 = arith.mulf %67, %66 : vector<8x128xf32>
    %69 = arith.mulf %0, %60 : vector<8x128xf32>
    %70 = arith.mulf %69, %66 : vector<8x128xf32>
    %c4_i32 = arith.constant 4 : i32
    %c0_32 = arith.constant 0 : index
    %c0_33 = arith.constant 0 : index
    %71 = vector.load %arg4[%c0_32, %c0_33] : memref<128x256xf32, #tpu.memory_space<vmem>>, vector<128x256xf32>
    %cst_34 = arith.constant dense<0.000000e+00> : vector<8x256xf32>
    %72 = tpu.matmul %68, %71, %cst_34 {dimension_numbers = #tpu.dot_dimension_numbers<[1], [0], [0], [1], [0, 0, 1, 1], [], []>} : vector<8x128xf32>, vector<128x256xf32>, vector<8x256xf32> -> vector<8x256xf32>
    %c0_35 = arith.constant 0 : index
    %c0_36 = arith.constant 0 : index
    %73 = vector.load %arg5[%c0_35, %c0_36] : memref<128x256xf32, #tpu.memory_space<vmem>>, vector<128x256xf32>
    %cst_37 = arith.constant dense<0.000000e+00> : vector<8x256xf32>
    %74 = tpu.matmul %70, %73, %cst_37 {dimension_numbers = #tpu.dot_dimension_numbers<[1], [0], [0], [1], [0, 0, 1, 1], [], []>} : vector<8x128xf32>, vector<128x256xf32>, vector<8x256xf32> -> vector<8x256xf32>
    %75 = arith.addf %72, %74 : vector<8x256xf32>
    %76 = vector.extract_strided_slice %75 {offsets = [0, 0], sizes = [8, 128], strides = [1, 1]} : vector<8x256xf32> to vector<8x128xf32>
    %77 = vector.extract_strided_slice %75 {offsets = [0, 128], sizes = [8, 128], strides = [1, 1]} : vector<8x256xf32> to vector<8x128xf32>
    %78 = arith.mulf %76, %76 : vector<8x128xf32>
    %79 = arith.mulf %77, %77 : vector<8x128xf32>
    %80 = arith.addf %78, %79 : vector<8x128xf32>
    %cst_38 = arith.constant 1.000000e-30 : f32
    %81 = vector.broadcast %cst_38 : f32 to vector<8x128xf32>
    %82 = arith.addf %80, %81 : vector<8x128xf32>
    %83 = math.rsqrt %82 : vector<8x128xf32>
    %84 = arith.mulf %0, %76 : vector<8x128xf32>
    %85 = arith.mulf %84, %83 : vector<8x128xf32>
    %86 = arith.mulf %0, %77 : vector<8x128xf32>
    %87 = arith.mulf %86, %83 : vector<8x128xf32>
    %c5_i32 = arith.constant 5 : i32
    %c0_39 = arith.constant 0 : index
    %c0_40 = arith.constant 0 : index
    %88 = vector.load %arg4[%c0_39, %c0_40] : memref<128x256xf32, #tpu.memory_space<vmem>>, vector<128x256xf32>
    %cst_41 = arith.constant dense<0.000000e+00> : vector<8x256xf32>
    %89 = tpu.matmul %85, %88, %cst_41 {dimension_numbers = #tpu.dot_dimension_numbers<[1], [0], [0], [1], [0, 0, 1, 1], [], []>} : vector<8x128xf32>, vector<128x256xf32>, vector<8x256xf32> -> vector<8x256xf32>
    %c0_42 = arith.constant 0 : index
    %c0_43 = arith.constant 0 : index
    %90 = vector.load %arg5[%c0_42, %c0_43] : memref<128x256xf32, #tpu.memory_space<vmem>>, vector<128x256xf32>
    %cst_44 = arith.constant dense<0.000000e+00> : vector<8x256xf32>
    %91 = tpu.matmul %87, %90, %cst_44 {dimension_numbers = #tpu.dot_dimension_numbers<[1], [0], [0], [1], [0, 0, 1, 1], [], []>} : vector<8x128xf32>, vector<128x256xf32>, vector<8x256xf32> -> vector<8x256xf32>
    %92 = arith.addf %89, %91 : vector<8x256xf32>
    %93 = vector.extract_strided_slice %92 {offsets = [0, 0], sizes = [8, 128], strides = [1, 1]} : vector<8x256xf32> to vector<8x128xf32>
    %94 = vector.extract_strided_slice %92 {offsets = [0, 128], sizes = [8, 128], strides = [1, 1]} : vector<8x256xf32> to vector<8x128xf32>
    %95 = arith.mulf %93, %93 : vector<8x128xf32>
    %96 = arith.mulf %94, %94 : vector<8x128xf32>
    %97 = arith.addf %95, %96 : vector<8x128xf32>
    %cst_45 = arith.constant 1.000000e-30 : f32
    %98 = vector.broadcast %cst_45 : f32 to vector<8x128xf32>
    %99 = arith.addf %97, %98 : vector<8x128xf32>
    %100 = math.rsqrt %99 : vector<8x128xf32>
    %101 = arith.mulf %0, %93 : vector<8x128xf32>
    %102 = arith.mulf %101, %100 : vector<8x128xf32>
    %103 = arith.mulf %0, %94 : vector<8x128xf32>
    %104 = arith.mulf %103, %100 : vector<8x128xf32>
    %c6_i32 = arith.constant 6 : i32
    %c0_46 = arith.constant 0 : index
    %c0_47 = arith.constant 0 : index
    %105 = vector.load %arg4[%c0_46, %c0_47] : memref<128x256xf32, #tpu.memory_space<vmem>>, vector<128x256xf32>
    %cst_48 = arith.constant dense<0.000000e+00> : vector<8x256xf32>
    %106 = tpu.matmul %102, %105, %cst_48 {dimension_numbers = #tpu.dot_dimension_numbers<[1], [0], [0], [1], [0, 0, 1, 1], [], []>} : vector<8x128xf32>, vector<128x256xf32>, vector<8x256xf32> -> vector<8x256xf32>
    %c0_49 = arith.constant 0 : index
    %c0_50 = arith.constant 0 : index
    %107 = vector.load %arg5[%c0_49, %c0_50] : memref<128x256xf32, #tpu.memory_space<vmem>>, vector<128x256xf32>
    %cst_51 = arith.constant dense<0.000000e+00> : vector<8x256xf32>
    %108 = tpu.matmul %104, %107, %cst_51 {dimension_numbers = #tpu.dot_dimension_numbers<[1], [0], [0], [1], [0, 0, 1, 1], [], []>} : vector<8x128xf32>, vector<128x256xf32>, vector<8x256xf32> -> vector<8x256xf32>
    %109 = arith.addf %106, %108 : vector<8x256xf32>
    %110 = vector.extract_strided_slice %109 {offsets = [0, 0], sizes = [8, 128], strides = [1, 1]} : vector<8x256xf32> to vector<8x128xf32>
    %111 = vector.extract_strided_slice %109 {offsets = [0, 128], sizes = [8, 128], strides = [1, 1]} : vector<8x256xf32> to vector<8x128xf32>
    %112 = arith.mulf %110, %110 : vector<8x128xf32>
    %113 = arith.mulf %111, %111 : vector<8x128xf32>
    %114 = arith.addf %112, %113 : vector<8x128xf32>
    %cst_52 = arith.constant 1.000000e-30 : f32
    %115 = vector.broadcast %cst_52 : f32 to vector<8x128xf32>
    %116 = arith.addf %114, %115 : vector<8x128xf32>
    %117 = math.rsqrt %116 : vector<8x128xf32>
    %118 = arith.mulf %0, %110 : vector<8x128xf32>
    %119 = arith.mulf %118, %117 : vector<8x128xf32>
    %120 = arith.mulf %0, %111 : vector<8x128xf32>
    %121 = arith.mulf %120, %117 : vector<8x128xf32>
    %c7_i32 = arith.constant 7 : i32
    %c0_53 = arith.constant 0 : index
    %c0_54 = arith.constant 0 : index
    %122 = vector.load %arg4[%c0_53, %c0_54] : memref<128x256xf32, #tpu.memory_space<vmem>>, vector<128x256xf32>
    %cst_55 = arith.constant dense<0.000000e+00> : vector<8x256xf32>
    %123 = tpu.matmul %119, %122, %cst_55 {dimension_numbers = #tpu.dot_dimension_numbers<[1], [0], [0], [1], [0, 0, 1, 1], [], []>} : vector<8x128xf32>, vector<128x256xf32>, vector<8x256xf32> -> vector<8x256xf32>
    %c0_56 = arith.constant 0 : index
    %c0_57 = arith.constant 0 : index
    %124 = vector.load %arg5[%c0_56, %c0_57] : memref<128x256xf32, #tpu.memory_space<vmem>>, vector<128x256xf32>
    %cst_58 = arith.constant dense<0.000000e+00> : vector<8x256xf32>
    %125 = tpu.matmul %121, %124, %cst_58 {dimension_numbers = #tpu.dot_dimension_numbers<[1], [0], [0], [1], [0, 0, 1, 1], [], []>} : vector<8x128xf32>, vector<128x256xf32>, vector<8x256xf32> -> vector<8x256xf32>
    %126 = arith.addf %123, %125 : vector<8x256xf32>
    %127 = vector.extract_strided_slice %126 {offsets = [0, 0], sizes = [8, 128], strides = [1, 1]} : vector<8x256xf32> to vector<8x128xf32>
    %128 = vector.extract_strided_slice %126 {offsets = [0, 128], sizes = [8, 128], strides = [1, 1]} : vector<8x256xf32> to vector<8x128xf32>
    %129 = arith.mulf %127, %127 : vector<8x128xf32>
    %130 = arith.mulf %128, %128 : vector<8x128xf32>
    %131 = arith.addf %129, %130 : vector<8x128xf32>
    %cst_59 = arith.constant 1.000000e-30 : f32
    %132 = vector.broadcast %cst_59 : f32 to vector<8x128xf32>
    %133 = arith.addf %131, %132 : vector<8x128xf32>
    %134 = math.rsqrt %133 : vector<8x128xf32>
    %135 = arith.mulf %0, %127 : vector<8x128xf32>
    %136 = arith.mulf %135, %134 : vector<8x128xf32>
    %137 = arith.mulf %0, %128 : vector<8x128xf32>
    %138 = arith.mulf %137, %134 : vector<8x128xf32>
    %c0_60 = arith.constant 0 : index
    %c0_61 = arith.constant 0 : index
    %139 = vector.load %arg6[%c0_60, %c0_61] : memref<8x128xf32, #tpu.memory_space<vmem>>, vector<8x128xf32>
    tpu.vector_store %arg6[%c0_60, %c0_61], %136 {strides = array<i32>} : memref<8x128xf32, #tpu.memory_space<vmem>>, vector<8x128xf32>,
    %c0_62 = arith.constant 0 : index
    %c0_63 = arith.constant 0 : index
    %140 = vector.load %arg7[%c0_62, %c0_63] : memref<8x128xf32, #tpu.memory_space<vmem>>, vector<8x128xf32>
    tpu.vector_store %arg7[%c0_62, %c0_63], %138 {strides = array<i32>} : memref<8x128xf32, #tpu.memory_space<vmem>>, vector<8x128xf32>,
    return
  }
  func.func @transform_0(%arg0: i32) -> (i32, i32) {
    %c0_i32 = arith.constant 0 : i32
    %c0_i32_0 = arith.constant 0 : i32
    return %arg0, %c0_i32 : i32, i32
  }
  func.func @transform_1(%arg0: i32) -> (i32, i32) {
    %c0_i32 = arith.constant 0 : i32
    %c0_i32_0 = arith.constant 0 : i32
    return %arg0, %c0_i32 : i32, i32
  }
  func.func @transform_2(%arg0: i32) -> (i32, i32) {
    %c0_i32 = arith.constant 0 : i32
    %c0_i32_0 = arith.constant 0 : i32
    return %arg0, %c0_i32 : i32, i32
  }
  func.func @transform_3(%arg0: i32) -> (i32, i32) {
    %c0_i32 = arith.constant 0 : i32
    %c0_i32_0 = arith.constant 0 : i32
    %c0_i32_1 = arith.constant 0 : i32
    return %c0_i32, %c0_i32_0 : i32, i32
  }
  func.func @transform_4(%arg0: i32) -> (i32, i32) {
    %c0_i32 = arith.constant 0 : i32
    %c0_i32_0 = arith.constant 0 : i32
    %c0_i32_1 = arith.constant 0 : i32
    return %c0_i32, %c0_i32_0 : i32, i32
  }
  func.func @transform_5(%arg0: i32) -> (i32, i32) {
    %c0_i32 = arith.constant 0 : i32
    %c0_i32_0 = arith.constant 0 : i32
    return %arg0, %c0_i32 : i32, i32
  }
  func.func @transform_6(%arg0: i32) -> (i32, i32) {
    %c0_i32 = arith.constant 0 : i32
    %c0_i32_0 = arith.constant 0 : i32
    return %arg0, %c0_i32 : i32, i32
  }
}

</mosaic_0001>

<llo_original>
// kernel: tpu_custom_call.1
$region0: #{tpu_custom_call.1}
  #allocation0 [shape = 'u32[]', space=smem, size = 0x4, offset = 0x4, fixed_abs, tag = 'smem constant byte address 0x4 - core index']
  #allocation1 [shape = 'u32[144,128]{1,0:T(1,128)}', space=vmem, size = 0x12000, scoped, tag = 'internal scratch']
  %s0 = inlined_call_operand.hbm [shape: f32[8,128], index: 0, kind: input, shape index: {}]
  %s1 = inlined_call_operand.hbm [shape: f32[8,128], index: 1, kind: input, shape index: {}]
  %s2 = inlined_call_operand.hbm [shape: f32[8,128], index: 2, kind: input, shape index: {}]
  %s3 = inlined_call_operand.hbm [shape: f32[128,256], index: 3, kind: input, shape index: {}]
  %s4 = inlined_call_operand.hbm [shape: f32[128,256], index: 4, kind: input, shape index: {}]
  %s5 = inlined_call_operand.hbm [shape: f32[8,128], index: 5, kind: output, shape index: {0}]
  %s6 = inlined_call_operand.hbm [shape: f32[8,128], index: 6, kind: output, shape index: {1}]
  %7 = xla_tuple %s5, %s6
  %s8 = sld [smem:[#allocation0]]
  $region58: #{tpu_custom_call.1} parent=0
    _
  %s10 = ssub.s32 1, %s8
  %s11 = scalar_select 0, %s10, %s8
  $region1: #{tpu_custom_call.1} parent=0
    #allocation2 [shape = 'u8[4096]{0}', space=vmem, size = 0x1000, scoped, tag = 'input window, operand 0, single buffered']
    #allocation3 [shape = 's32[1]{0}', space=sflag, size = 0x4, scoped, tag = 'scoped memory for tpu_custom_call.1']
    #allocation4 [shape = 's32[1]{0}', space=sflag, size = 0x4, scoped, tag = 'scoped memory for tpu_custom_call.1']
    #allocation5 [shape = 'u8[4096]{0}', space=vmem, size = 0x1000, scoped, tag = 'input window, operand 1, single buffered']
    #allocation6 [shape = 's32[1]{0}', space=sflag, size = 0x4, scoped, tag = 'scoped memory for tpu_custom_call.1']
    #allocation7 [shape = 'u8[4096]{0}', space=vmem, size = 0x1000, scoped, tag = 'input window, operand 2, single buffered']
    #allocation8 [shape = 'u8[131072]{0}', space=vmem, size = 0x20000, scoped, tag = 'input window, operand 3, single buffered']
    #allocation9 [shape = 's32[1]{0}', space=sflag, size = 0x4, scoped, tag = 'scoped memory for tpu_custom_call.1']
    #allocation10 [shape = 'u8[131072]{0}', space=vmem, size = 0x20000, scoped, tag = 'input window, operand 4, single buffered']
    #allocation11 [shape = 'u8[4096]{0}', space=vmem, size = 0x1000, scoped, tag = 'output window, operand 0, single buffered']
    #allocation12 [shape = 'u8[4096]{0}', space=vmem, size = 0x1000, scoped, tag = 'output window, operand 1, single buffered']
    #allocation13 [shape = 's32[1]{0}', space=sflag, size = 0x4, scoped, tag = 'scoped memory for tpu_custom_call.1']
    %12 = vsyncpa [#allocation3], 0
    %13 = vsyncpa [#allocation6], 0
    %14 = vsyncpa [#allocation9], 0
    %15 = vsyncpa [#allocation4], 0
    %16 = vsyncpa [#allocation13], 0
    // Predicated region
    $region2: #{tpu_custom_call.1} parent=1 // pred_check
      _
    $region3: #{tpu_custom_call.1} parent=1 // pred_check_branch
      %18 = sbr.rel (0) target = $region5
    $region4: #{tpu_custom_call.1} parent=1 // pred_region
      %s20 = ssub.s32 128, 128
      %21 = vsyncadd [#allocation3], %s20
      %s23 = sshll.u32 [#allocation2], 4
      %s24 = int_to_ptr.vmem [resolvable:$true] %s23
      %26 = dma.hbm_to_vmem [thread:$0]  %s0, 128, %s24, [#allocation3]
    $region5: #{tpu_custom_call.1} parent=1 // pred_fallthru
      _
    // Predicated region
    $region6: #{tpu_custom_call.1} parent=1 // pred_check
      _
    $region7: #{tpu_custom_call.1} parent=1 // pred_check_branch
      %28 = sbr.rel (0) target = $region9
    $region8: #{tpu_custom_call.1} parent=1 // pred_region
      %s30 = ssub.s32 128, 128
      %31 = vsyncadd [#allocation6], %s30
      %s33 = sshll.u32 [#allocation5], 4
      %s34 = int_to_ptr.vmem [resolvable:$true] %s33
      %36 = dma.hbm_to_vmem [thread:$0]  %s1, 128, %s34, [#allocation6]
    $region9: #{tpu_custom_call.1} parent=1 // pred_fallthru
      _
    // Predicated region
    $region10: #{tpu_custom_call.1} parent=1 // pred_check
      _
    $region11: #{tpu_custom_call.1} parent=1 // pred_check_branch
      %38 = sbr.rel (0) target = $region13
    $region12: #{tpu_custom_call.1} parent=1 // pred_region
      %s40 = ssub.s32 128, 128
      %41 = vsyncadd [#allocation6], %s40
      %s43 = sshll.u32 [#allocation7], 4
      %s44 = int_to_ptr.vmem [resolvable:$true] %s43
      %46 = dma.hbm_to_vmem [thread:$0]  %s2, 128, %s44, [#allocation6]
    $region13: #{tpu_custom_call.1} parent=1 // pred_fallthru
      _
    // Predicated region
    $region14: #{tpu_custom_call.1} parent=1 // pred_check
      _
    $region15: #{tpu_custom_call.1} parent=1 // pred_check_branch
      %48 = sbr.rel (0) target = $region17
    $region16: #{tpu_custom_call.1} parent=1 // pred_region
      %s50 = ssub.s32 4096, 4096
      %51 = vsyncadd [#allocation9], %s50
      %s52 = sshll.u32 [#allocation8], 4
      %s53 = int_to_ptr.vmem [resolvable:$true] %s52
      %58 = dma.hbm_to_vmem [thread:$0]  %s3, 4096, %s53, [#allocation9], 256, 256, 16
    $region17: #{tpu_custom_call.1} parent=1 // pred_fallthru
      _
    // Predicated region
    $region18: #{tpu_custom_call.1} parent=1 // pred_check
      _
    $region19: #{tpu_custom_call.1} parent=1 // pred_check_branch
      %60 = sbr.rel (0) target = $region21
    $region20: #{tpu_custom_call.1} parent=1 // pred_region
      %s62 = ssub.s32 4096, 4096
      %63 = vsyncadd [#allocation9], %s62
      %s64 = sshll.u32 [#allocation10], 4
      %s65 = int_to_ptr.vmem [resolvable:$true] %s64
      %70 = dma.hbm_to_vmem [thread:$0]  %s4, 4096, %s65, [#allocation9], 256, 256, 16
    $region21: #{tpu_custom_call.1} parent=1 // pred_fallthru
      _
    // Predicated region
    $region22: #{tpu_custom_call.1} parent=1 // pred_check
      _
    $region23: #{tpu_custom_call.1} parent=1 // pred_check_branch
      %72 = sbr.rel (0) target = $region25
    $region24: #{tpu_custom_call.1} parent=1 // pred_region
      %73 = dma.done [#allocation3], 128
    $region25: #{tpu_custom_call.1} parent=1 // pred_fallthru
      _
    // Predicated region
    $region26: #{tpu_custom_call.1} parent=1 // pred_check
      _
    $region27: #{tpu_custom_call.1} parent=1 // pred_check_branch
      %75 = sbr.rel (0) target = $region29
    $region28: #{tpu_custom_call.1} parent=1 // pred_region
      %76 = dma.done [#allocation6], 128
    $region29: #{tpu_custom_call.1} parent=1 // pred_fallthru
      _
    // Predicated region
    $region30: #{tpu_custom_call.1} parent=1 // pred_check
      _
    $region31: #{tpu_custom_call.1} parent=1 // pred_check_branch
      %78 = sbr.rel (0) target = $region33
    $region32: #{tpu_custom_call.1} parent=1 // pred_region
      %79 = dma.done [#allocation6], 128
    $region33: #{tpu_custom_call.1} parent=1 // pred_fallthru
      _
    // Predicated region
    $region34: #{tpu_custom_call.1} parent=1 // pred_check
      _
    $region35: #{tpu_custom_call.1} parent=1 // pred_check_branch
      %81 = sbr.rel (0) target = $region37
    $region36: #{tpu_custom_call.1} parent=1 // pred_region
      %82 = dma.done [#allocation9], 4096
    $region37: #{tpu_custom_call.1} parent=1 // pred_fallthru
      _
    // Predicated region
    $region38: #{tpu_custom_call.1} parent=1 // pred_check
      _
    $region39: #{tpu_custom_call.1} parent=1 // pred_check_branch
      %84 = sbr.rel (0) target = $region41
    $region40: #{tpu_custom_call.1} parent=1 // pred_region
      %85 = dma.done [#allocation9], 4096
    $region41: #{tpu_custom_call.1} parent=1 // pred_fallthru
      _
    %v86 = vld [vmem:[#allocation7] sm:$0xff]
    %v87 = vld [vmem:[#allocation2] sm:$0xff]
    %v88 = vld [vmem:[#allocation5] sm:$0xff]
    %v89 = vld [vmem:[#allocation8] sm:$0xff]
    %v90 = vld [vmem:[#allocation8 + $0x8] sm:$0xff]
    %v91 = vld [vmem:[#allocation8 + $0x10] sm:$0xff]
    %v92 = vld [vmem:[#allocation8 + $0x18] sm:$0xff]
    %v93 = vld [vmem:[#allocation8 + $0x20] sm:$0xff]
    %v94 = vld [vmem:[#allocation8 + $0x28] sm:$0xff]
    %v95 = vld [vmem:[#allocation8 + $0x30] sm:$0xff]
    %v96 = vld [vmem:[#allocation8 + $0x38] sm:$0xff]
    %v97 = vld [vmem:[#allocation8 + $0x40] sm:$0xff]
    %v98 = vld [vmem:[#allocation8 + $0x48] sm:$0xff]
    %v99 = vld [vmem:[#allocation8 + $0x50] sm:$0xff]
    %v100 = vld [vmem:[#allocation8 + $0x58] sm:$0xff]
    %v101 = vld [vmem:[#allocation8 + $0x60] sm:$0xff]
    %v102 = vld [vmem:[#allocation8 + $0x68] sm:$0xff]
    %v103 = vld [vmem:[#allocation8 + $0x70] sm:$0xff]
    %v104 = vld [vmem:[#allocation8 + $0x78] sm:$0xff]
    %v105 = vld [vmem:[#allocation8 + $0x80] sm:$0xff]
    %v106 = vld [vmem:[#allocation8 + $0x88] sm:$0xff]
    %v107 = vld [vmem:[#allocation8 + $0x90] sm:$0xff]
    %v108 = vld [vmem:[#allocation8 + $0x98] sm:$0xff]
    %v109 = vld [vmem:[#allocation8 + $0xa0] sm:$0xff]
    %v110 = vld [vmem:[#allocation8 + $0xa8] sm:$0xff]
    %v111 = vld [vmem:[#allocation8 + $0xb0] sm:$0xff]
    %v112 = vld [vmem:[#allocation8 + $0xb8] sm:$0xff]
    %v113 = vld [vmem:[#allocation8 + $0xc0] sm:$0xff]
    %v114 = vld [vmem:[#allocation8 + $0xc8] sm:$0xff]
    %v115 = vld [vmem:[#allocation8 + $0xd0] sm:$0xff]
    %v116 = vld [vmem:[#allocation8 + $0xd8] sm:$0xff]
    %v117 = vld [vmem:[#allocation8 + $0xe0] sm:$0xff]
    %v118 = vld [vmem:[#allocation8 + $0xe8] sm:$0xff]
    %v119 = vld [vmem:[#allocation8 + $0xf0] sm:$0xff]
    %v120 = vld [vmem:[#allocation8 + $0xf8] sm:$0xff]
    %v121 = vld [vmem:[#allocation10] sm:$0xff]
    %v122 = vld [vmem:[#allocation10 + $0x8] sm:$0xff]
    %v123 = vld [vmem:[#allocation10 + $0x10] sm:$0xff]
    %v124 = vld [vmem:[#allocation10 + $0x18] sm:$0xff]
    %v125 = vld [vmem:[#allocation10 + $0x20] sm:$0xff]
    %v126 = vld [vmem:[#allocation10 + $0x28] sm:$0xff]
    %v127 = vld [vmem:[#allocation10 + $0x30] sm:$0xff]
    %v128 = vld [vmem:[#allocation10 + $0x38] sm:$0xff]
    %v129 = vld [vmem:[#allocation10 + $0x40] sm:$0xff]
    %v130 = vld [vmem:[#allocation10 + $0x48] sm:$0xff]
    %v131 = vld [vmem:[#allocation10 + $0x50] sm:$0xff]
    %v132 = vld [vmem:[#allocation10 + $0x58] sm:$0xff]
    %v133 = vld [vmem:[#allocation10 + $0x60] sm:$0xff]
    %v134 = vld [vmem:[#allocation10 + $0x68] sm:$0xff]
    %v135 = vld [vmem:[#allocation10 + $0x70] sm:$0xff]
    %v136 = vld [vmem:[#allocation10 + $0x78] sm:$0xff]
    %v137 = vld [vmem:[#allocation10 + $0x80] sm:$0xff]
    %v138 = vld [vmem:[#allocation10 + $0x88] sm:$0xff]
    %v139 = vld [vmem:[#allocation10 + $0x90] sm:$0xff]
    %v140 = vld [vmem:[#allocation10 + $0x98] sm:$0xff]
    %v141 = vld [vmem:[#allocation10 + $0xa0] sm:$0xff]
    %v142 = vld [vmem:[#allocation10 + $0xa8] sm:$0xff]
    %v143 = vld [vmem:[#allocation10 + $0xb0] sm:$0xff]
    %v144 = vld [vmem:[#allocation10 + $0xb8] sm:$0xff]
    %v145 = vld [vmem:[#allocation10 + $0xc0] sm:$0xff]
    %v146 = vld [vmem:[#allocation10 + $0xc8] sm:$0xff]
    %v147 = vld [vmem:[#allocation10 + $0xd0] sm:$0xff]
    %v148 = vld [vmem:[#allocation10 + $0xd8] sm:$0xff]
    %v149 = vld [vmem:[#allocation10 + $0xe0] sm:$0xff]
    %v150 = vld [vmem:[#allocation10 + $0xe8] sm:$0xff]
    %v151 = vld [vmem:[#allocation10 + $0xf0] sm:$0xff]
    %v152 = vld [vmem:[#allocation10 + $0xf8] sm:$0xff]
    %153 = vmatprep.subr.mxu0 %v122
    %154 = vmatpush1.msra.mxu0 %v121
    %155 = vmatprep.subr.mxu0 %v124
    %156 = vmatpush1.msra.mxu0 %v123
    %157 = vmatprep.subr.mxu0 %v126
    %158 = vmatpush1.msra.mxu0 %v125
    %159 = vmatprep.subr.mxu0 %v128
    %160 = vmatpush1.msra.mxu0 %v127
    %161 = vmatprep.subr.mxu0 %v130
    %162 = vmatpush1.msra.mxu0 %v129
    %163 = vmatprep.subr.mxu0 %v132
    %164 = vmatpush1.msra.mxu0 %v131
    %165 = vmatprep.subr.mxu0 %v134
    %166 = vmatpush1.msra.mxu0 %v133
    %167 = vmatprep.subr.mxu0 %v136
    %168 = vmatpush1.msra.mxu0 %v135
    %169 = vmatprep.subr.mxu0 %v138
    %170 = vmatpush1.msra.mxu0 %v137
    %171 = vmatprep.subr.mxu0 %v140
    %172 = vmatpush1.msra.mxu0 %v139
    %173 = vmatprep.subr.mxu0 %v142
    %174 = vmatpush1.msra.mxu0 %v141
    %175 = vmatprep.subr.mxu0 %v144
    %176 = vmatpush1.msra.mxu0 %v143
    %177 = vmatprep.subr.mxu0 %v146
    %178 = vmatpush1.msra.mxu0 %v145
    %179 = vmatprep.subr.mxu0 %v148
    %180 = vmatpush1.msra.mxu0 %v147
    %181 = vmatprep.subr.mxu0 %v150
    %182 = vmatpush1.msra.mxu0 %v149
    %183 = vmatprep.subr.mxu0 %v152
    %184 = vmatpush1.msra.mxu0 %v151
    %185 = vmatprep.subr.mxu0 0.0
    %186 = vmatpush1.msra.mxu0 0.0
    %187 = vmatprep.subr.mxu0 0.0
    %188 = vmatpush1.msra.mxu0 0.0
    %189 = vmatprep.subr.mxu0 0.0
    %190 = vmatpush1.msra.mxu0 0.0
    %191 = vmatprep.subr.mxu0 0.0
    %192 = vmatpush1.msra.mxu0 0.0
    %193 = vmatprep.subr.mxu0 0.0
    %194 = vmatpush1.msra.mxu0 0.0
    %195 = vmatprep.subr.mxu0 0.0
    %196 = vmatpush1.msra.mxu0 0.0
    %197 = vmatprep.subr.mxu0 0.0
    %198 = vmatpush1.msra.mxu0 0.0
    %199 = vmatprep.subr.mxu0 0.0
    %200 = vmatpush1.msra.mxu0 0.0
    %201 = vmatprep.subr.mxu0 0.0
    %202 = vmatpush1.msra.mxu0 0.0
    %203 = vmatprep.subr.mxu0 0.0
    %204 = vmatpush1.msra.mxu0 0.0
    %205 = vmatprep.subr.mxu0 0.0
    %206 = vmatpush1.msra.mxu0 0.0
    %207 = vmatprep.subr.mxu0 0.0
    %208 = vmatpush1.msra.mxu0 0.0
    %209 = vmatprep.subr.mxu0 0.0
    %210 = vmatpush1.msra.mxu0 0.0
    %211 = vmatprep.subr.mxu0 0.0
    %212 = vmatpush1.msra.mxu0 0.0
    %213 = vmatprep.subr.mxu0 0.0
    %214 = vmatpush1.msra.mxu0 0.0
    %215 = vmatprep.subr.mxu0 0.0
    %216 = vmatpush1.msra.mxu0 0.0
    %217 = vmatprep.mubr.f32.mxu0 0.0
    %218 = vmatmul.mubr.f32.gmra.mrb[0].mxu0 %v88
    %v219 = vpop.f32.mrb[0].mxu0
    %v220 = vadd.f32 0.0, %v219
    %v221 = vpop.f32.mrb[0].mxu0
    %v222 = vadd.f32 0.0, %v221
    %223 = vdwg.mxu0
    %224 = vmatprep.subr.mxu0 %v90
    %225 = vmatpush1.msra.mxu0 %v89
    %226 = vmatprep.subr.mxu0 %v92
    %227 = vmatpush1.msra.mxu0 %v91
    %228 = vmatprep.subr.mxu0 %v94
    %229 = vmatpush1.msra.mxu0 %v93
    %230 = vmatprep.subr.mxu0 %v96
    %231 = vmatpush1.msra.mxu0 %v95
    %232 = vmatprep.subr.mxu0 %v98
    %233 = vmatpush1.msra.mxu0 %v97
    %234 = vmatprep.subr.mxu0 %v100
    %235 = vmatpush1.msra.mxu0 %v99
    %236 = vmatprep.subr.mxu0 %v102
    %237 = vmatpush1.msra.mxu0 %v101
    %238 = vmatprep.subr.mxu0 %v104
    %239 = vmatpush1.msra.mxu0 %v103
    %240 = vmatprep.subr.mxu0 %v106
    %241 = vmatpush1.msra.mxu0 %v105
    %242 = vmatprep.subr.mxu0 %v108
    %243 = vmatpush1.msra.mxu0 %v107
    %244 = vmatprep.subr.mxu0 %v110
    %245 = vmatpush1.msra.mxu0 %v109
    %246 = vmatprep.subr.mxu0 %v112
    %247 = vmatpush1.msra.mxu0 %v111
    %248 = vmatprep.subr.mxu0 %v114
    %249 = vmatpush1.msra.mxu0 %v113
    %250 = vmatprep.subr.mxu0 %v116
    %251 = vmatpush1.msra.mxu0 %v115
    %252 = vmatprep.subr.mxu0 %v118
    %253 = vmatpush1.msra.mxu0 %v117
    %254 = vmatprep.subr.mxu0 %v120
    %255 = vmatpush1.msra.mxu0 %v119
    %256 = vmatprep.subr.mxu0 0.0
    %257 = vmatpush1.msra.mxu0 0.0
    %258 = vmatprep.subr.mxu0 0.0
    %259 = vmatpush1.msra.mxu0 0.0
    %260 = vmatprep.subr.mxu0 0.0
    %261 = vmatpush1.msra.mxu0 0.0
    %262 = vmatprep.subr.mxu0 0.0
    %263 = vmatpush1.msra.mxu0 0.0
    %264 = vmatprep.subr.mxu0 0.0
    %265 = vmatpush1.msra.mxu0 0.0
    %266 = vmatprep.subr.mxu0 0.0
    %267 = vmatpush1.msra.mxu0 0.0
    %268 = vmatprep.subr.mxu0 0.0
    %269 = vmatpush1.msra.mxu0 0.0
    %270 = vmatprep.subr.mxu0 0.0
    %271 = vmatpush1.msra.mxu0 0.0
    %272 = vmatprep.subr.mxu0 0.0
    %273 = vmatpush1.msra.mxu0 0.0
    %274 = vmatprep.subr.mxu0 0.0
    %275 = vmatpush1.msra.mxu0 0.0
    %276 = vmatprep.subr.mxu0 0.0
    %277 = vmatpush1.msra.mxu0 0.0
    %278 = vmatprep.subr.mxu0 0.0
    %279 = vmatpush1.msra.mxu0 0.0
    %280 = vmatprep.subr.mxu0 0.0
    %281 = vmatpush1.msra.mxu0 0.0
    %282 = vmatprep.subr.mxu0 0.0
    %283 = vmatpush1.msra.mxu0 0.0
    %284 = vmatprep.subr.mxu0 0.0
    %285 = vmatpush1.msra.mxu0 0.0
    %286 = vmatprep.subr.mxu0 0.0
    %287 = vmatpush1.msra.mxu0 0.0
    %288 = vmatprep.mubr.f32.mxu0 0.0
    %289 = vmatmul.mubr.f32.gmra.mrb[0].mxu0 %v87
    %v290 = vpop.f32.mrb[0].mxu0
    %v291 = vadd.f32 %v220, %v290
    %v292 = vpop.f32.mrb[0].mxu0
    %v293 = vadd.f32 %v222, %v292
    %294 = vdwg.mxu0
    %v295 = vmul.f32 %v291, %v291
    %v296 = vmul.f32 %v293, %v293
    %v297 = vadd.f32 %v295, %v296
    %v298 = vadd.f32 %v297, 1e-30
    %v299 = vrsqrt.pop %v298
    %v300 = vmul.f32 %v86, %v291
    %v301 = vmul.f32 %v300, %v299
    %v302 = vmul.f32 %v86, %v293
    %v303 = vmul.f32 %v302, %v299
    %304 = vmatprep.subr.mxu0 %v122
    %305 = vmatpush1.msra.mxu0 %v121
    %306 = vmatprep.subr.mxu0 %v124
    %307 = vmatpush1.msra.mxu0 %v123
    %308 = vmatprep.subr.mxu0 %v126
    %309 = vmatpush1.msra.mxu0 %v125
    %310 = vmatprep.subr.mxu0 %v128
    %311 = vmatpush1.msra.mxu0 %v127
    %312 = vmatprep.subr.mxu0 %v130
    %313 = vmatpush1.msra.mxu0 %v129
    %314 = vmatprep.subr.mxu0 %v132
    %315 = vmatpush1.msra.mxu0 %v131
    %316 = vmatprep.subr.mxu0 %v134
    %317 = vmatpush1.msra.mxu0 %v133
    %318 = vmatprep.subr.mxu0 %v136
    %319 = vmatpush1.msra.mxu0 %v135
    %320 = vmatprep.subr.mxu0 %v138
    %321 = vmatpush1.msra.mxu0 %v137
    %322 = vmatprep.subr.mxu0 %v140
    %323 = vmatpush1.msra.mxu0 %v139
    %324 = vmatprep.subr.mxu0 %v142
    %325 = vmatpush1.msra.mxu0 %v141
    %326 = vmatprep.subr.mxu0 %v144
    %327 = vmatpush1.msra.mxu0 %v143
    %328 = vmatprep.subr.mxu0 %v146
    %329 = vmatpush1.msra.mxu0 %v145
    %330 = vmatprep.subr.mxu0 %v148
    %331 = vmatpush1.msra.mxu0 %v147
    %332 = vmatprep.subr.mxu0 %v150
    %333 = vmatpush1.msra.mxu0 %v149
    %334 = vmatprep.subr.mxu0 %v152
    %335 = vmatpush1.msra.mxu0 %v151
    %336 = vmatprep.subr.mxu0 0.0
    %337 = vmatpush1.msra.mxu0 0.0
    %338 = vmatprep.subr.mxu0 0.0
    %339 = vmatpush1.msra.mxu0 0.0
    %340 = vmatprep.subr.mxu0 0.0
    %341 = vmatpush1.msra.mxu0 0.0
    %342 = vmatprep.subr.mxu0 0.0
    %343 = vmatpush1.msra.mxu0 0.0
    %344 = vmatprep.subr.mxu0 0.0
    %345 = vmatpush1.msra.mxu0 0.0
    %346 = vmatprep.subr.mxu0 0.0
    %347 = vmatpush1.msra.mxu0 0.0
    %348 = vmatprep.subr.mxu0 0.0
    %349 = vmatpush1.msra.mxu0 0.0
    %350 = vmatprep.subr.mxu0 0.0
    %351 = vmatpush1.msra.mxu0 0.0
    %352 = vmatprep.subr.mxu0 0.0
    %353 = vmatpush1.msra.mxu0 0.0
    %354 = vmatprep.subr.mxu0 0.0
    %355 = vmatpush1.msra.mxu0 0.0
    %356 = vmatprep.subr.mxu0 0.0
    %357 = vmatpush1.msra.mxu0 0.0
    %358 = vmatprep.subr.mxu0 0.0
    %359 = vmatpush1.msra.mxu0 0.0
    %360 = vmatprep.subr.mxu0 0.0
    %361 = vmatpush1.msra.mxu0 0.0
    %362 = vmatprep.subr.mxu0 0.0
    %363 = vmatpush1.msra.mxu0 0.0
    %364 = vmatprep.subr.mxu0 0.0
    %365 = vmatpush1.msra.mxu0 0.0
    %366 = vmatprep.subr.mxu0 0.0
    %367 = vmatpush1.msra.mxu0 0.0
    %368 = vmatprep.mubr.f32.mxu0 0.0
    %369 = vmatmul.mubr.f32.gmra.mrb[0].mxu0 %v303
    %v370 = vpop.f32.mrb[0].mxu0
    %v371 = vadd.f32 0.0, %v370
    %v372 = vpop.f32.mrb[0].mxu0
    %v373 = vadd.f32 0.0, %v372
    %374 = vdwg.mxu0
    %375 = vmatprep.subr.mxu0 %v90
    %376 = vmatpush1.msra.mxu0 %v89
    %377 = vmatprep.subr.mxu0 %v92
    %378 = vmatpush1.msra.mxu0 %v91
    %379 = vmatprep.subr.mxu0 %v94
    %380 = vmatpush1.msra.mxu0 %v93
    %381 = vmatprep.subr.mxu0 %v96
    %382 = vmatpush1.msra.mxu0 %v95
    %383 = vmatprep.subr.mxu0 %v98
    %384 = vmatpush1.msra.mxu0 %v97
    %385 = vmatprep.subr.mxu0 %v100
    %386 = vmatpush1.msra.mxu0 %v99
    %387 = vmatprep.subr.mxu0 %v102
    %388 = vmatpush1.msra.mxu0 %v101
    %389 = vmatprep.subr.mxu0 %v104
    %390 = vmatpush1.msra.mxu0 %v103
    %391 = vmatprep.subr.mxu0 %v106
    %392 = vmatpush1.msra.mxu0 %v105
    %393 = vmatprep.subr.mxu0 %v108
    %394 = vmatpush1.msra.mxu0 %v107
    %395 = vmatprep.subr.mxu0 %v110
    %396 = vmatpush1.msra.mxu0 %v109
    %397 = vmatprep.subr.mxu0 %v112
    %398 = vmatpush1.msra.mxu0 %v111
    %399 = vmatprep.subr.mxu0 %v114
    %400 = vmatpush1.msra.mxu0 %v113
    %401 = vmatprep.subr.mxu0 %v116
    %402 = vmatpush1.msra.mxu0 %v115
    %403 = vmatprep.subr.mxu0 %v118
    %404 = vmatpush1.msra.mxu0 %v117
    %405 = vmatprep.subr.mxu0 %v120
    %406 = vmatpush1.msra.mxu0 %v119
    %407 = vmatprep.subr.mxu0 0.0
    %408 = vmatpush1.msra.mxu0 0.0
    %409 = vmatprep.subr.mxu0 0.0
    %410 = vmatpush1.msra.mxu0 0.0
    %411 = vmatprep.subr.mxu0 0.0
    %412 = vmatpush1.msra.mxu0 0.0
    %413 = vmatprep.subr.mxu0 0.0
    %414 = vmatpush1.msra.mxu0 0.0
    %415 = vmatprep.subr.mxu0 0.0
    %416 = vmatpush1.msra.mxu0 0.0
    %417 = vmatprep.subr.mxu0 0.0
    %418 = vmatpush1.msra.mxu0 0.0
    %419 = vmatprep.subr.mxu0 0.0
    %420 = vmatpush1.msra.mxu0 0.0
    %421 = vmatprep.subr.mxu0 0.0
    %422 = vmatpush1.msra.mxu0 0.0
    %423 = vmatprep.subr.mxu0 0.0
    %424 = vmatpush1.msra.mxu0 0.0
    %425 = vmatprep.subr.mxu0 0.0
    %426 = vmatpush1.msra.mxu0 0.0
    %427 = vmatprep.subr.mxu0 0.0
    %428 = vmatpush1.msra.mxu0 0.0
    %429 = vmatprep.subr.mxu0 0.0
    %430 = vmatpush1.msra.mxu0 0.0
    %431 = vmatprep.subr.mxu0 0.0
    %432 = vmatpush1.msra.mxu0 0.0
    %433 = vmatprep.subr.mxu0 0.0
    %434 = vmatpush1.msra.mxu0 0.0
    %435 = vmatprep.subr.mxu0 0.0
    %436 = vmatpush1.msra.mxu0 0.0
    %437 = vmatprep.subr.mxu0 0.0
    %438 = vmatpush1.msra.mxu0 0.0
    %439 = vmatprep.mubr.f32.mxu0 0.0
    %440 = vmatmul.mubr.f32.gmra.mrb[0].mxu0 %v301
    %v441 = vpop.f32.mrb[0].mxu0
    %v442 = vadd.f32 %v371, %v441
    %v443 = vpop.f32.mrb[0].mxu0
    %v444 = vadd.f32 %v373, %v443
    %445 = vdwg.mxu0
    %v446 = vmul.f32 %v442, %v442
    %v447 = vmul.f32 %v444, %v444
    %v448 = vadd.f32 %v446, %v447
    %v449 = vadd.f32 %v448, 1e-30
    %v450 = vrsqrt.pop %v449
    %v451 = vmul.f32 %v86, %v442
    %v452 = vmul.f32 %v451, %v450
    %v453 = vmul.f32 %v86, %v444
    %v454 = vmul.f32 %v453, %v450
    %455 = vmatprep.subr.mxu0 %v122
    %456 = vmatpush1.msra.mxu0 %v121
    %457 = vmatprep.subr.mxu0 %v124
    %458 = vmatpush1.msra.mxu0 %v123
    %459 = vmatprep.subr.mxu0 %v126
    %460 = vmatpush1.msra.mxu0 %v125
    %461 = vmatprep.subr.mxu0 %v128
    %462 = vmatpush1.msra.mxu0 %v127
    %463 = vmatprep.subr.mxu0 %v130
    %464 = vmatpush1.msra.mxu0 %v129
    %465 = vmatprep.subr.mxu0 %v132
    %466 = vmatpush1.msra.mxu0 %v131
    %467 = vmatprep.subr.mxu0 %v134
    %468 = vmatpush1.msra.mxu0 %v133
    %469 = vmatprep.subr.mxu0 %v136
    %470 = vmatpush1.msra.mxu0 %v135
    %471 = vmatprep.subr.mxu0 %v138
    %472 = vmatpush1.msra.mxu0 %v137
    %473 = vmatprep.subr.mxu0 %v140
    %474 = vmatpush1.msra.mxu0 %v139
    %475 = vmatprep.subr.mxu0 %v142
    %476 = vmatpush1.msra.mxu0 %v141
    %477 = vmatprep.subr.mxu0 %v144
    %478 = vmatpush1.msra.mxu0 %v143
    %479 = vmatprep.subr.mxu0 %v146
    %480 = vmatpush1.msra.mxu0 %v145
    %481 = vmatprep.subr.mxu0 %v148
    %482 = vmatpush1.msra.mxu0 %v147
    %483 = vmatprep.subr.mxu0 %v150
    %484 = vmatpush1.msra.mxu0 %v149
    %485 = vmatprep.subr.mxu0 %v152
    %486 = vmatpush1.msra.mxu0 %v151
    %487 = vmatprep.subr.mxu0 0.0
    %488 = vmatpush1.msra.mxu0 0.0
    %489 = vmatprep.subr.mxu0 0.0
    %490 = vmatpush1.msra.mxu0 0.0
    %491 = vmatprep.subr.mxu0 0.0
    %492 = vmatpush1.msra.mxu0 0.0
    %493 = vmatprep.subr.mxu0 0.0
    %494 = vmatpush1.msra.mxu0 0.0
    %495 = vmatprep.subr.mxu0 0.0
    %496 = vmatpush1.msra.mxu0 0.0
    %497 = vmatprep.subr.mxu0 0.0
    %498 = vmatpush1.msra.mxu0 0.0
    %499 = vmatprep.subr.mxu0 0.0
    %500 = vmatpush1.msra.mxu0 0.0
    %501 = vmatprep.subr.mxu0 0.0
    %502 = vmatpush1.msra.mxu0 0.0
    %503 = vmatprep.subr.mxu0 0.0
    %504 = vmatpush1.msra.mxu0 0.0
    %505 = vmatprep.subr.mxu0 0.0
    %506 = vmatpush1.msra.mxu0 0.0
    %507 = vmatprep.subr.mxu0 0.0
    %508 = vmatpush1.msra.mxu0 0.0
    %509 = vmatprep.subr.mxu0 0.0
    %510 = vmatpush1.msra.mxu0 0.0
    %511 = vmatprep.subr.mxu0 0.0
    %512 = vmatpush1.msra.mxu0 0.0
    %513 = vmatprep.subr.mxu0 0.0
    %514 = vmatpush1.msra.mxu0 0.0
    %515 = vmatprep.subr.mxu0 0.0
    %516 = vmatpush1.msra.mxu0 0.0
    %517 = vmatprep.subr.mxu0 0.0
    %518 = vmatpush1.msra.mxu0 0.0
    %519 = vmatprep.mubr.f32.mxu0 0.0
    %520 = vmatmul.mubr.f32.gmra.mrb[0].mxu0 %v454
    %v521 = vpop.f32.mrb[0].mxu0
    %v522 = vadd.f32 0.0, %v521
    %v523 = vpop.f32.mrb[0].mxu0
    %v524 = vadd.f32 0.0, %v523
    %525 = vdwg.mxu0
    %526 = vmatprep.subr.mxu0 %v90
    %527 = vmatpush1.msra.mxu0 %v89
    %528 = vmatprep.subr.mxu0 %v92
    %529 = vmatpush1.msra.mxu0 %v91
    %530 = vmatprep.subr.mxu0 %v94
    %531 = vmatpush1.msra.mxu0 %v93
    %532 = vmatprep.subr.mxu0 %v96
    %533 = vmatpush1.msra.mxu0 %v95
    %534 = vmatprep.subr.mxu0 %v98
    %535 = vmatpush1.msra.mxu0 %v97
    %536 = vmatprep.subr.mxu0 %v100
    %537 = vmatpush1.msra.mxu0 %v99
    %538 = vmatprep.subr.mxu0 %v102
    %539 = vmatpush1.msra.mxu0 %v101
    %540 = vmatprep.subr.mxu0 %v104
    %541 = vmatpush1.msra.mxu0 %v103
    %542 = vmatprep.subr.mxu0 %v106
    %543 = vmatpush1.msra.mxu0 %v105
    %544 = vmatprep.subr.mxu0 %v108
    %545 = vmatpush1.msra.mxu0 %v107
    %546 = vmatprep.subr.mxu0 %v110
    %547 = vmatpush1.msra.mxu0 %v109
    %548 = vmatprep.subr.mxu0 %v112
    %549 = vmatpush1.msra.mxu0 %v111
    %550 = vmatprep.subr.mxu0 %v114
    %551 = vmatpush1.msra.mxu0 %v113
    %552 = vmatprep.subr.mxu0 %v116
    %553 = vmatpush1.msra.mxu0 %v115
    %554 = vmatprep.subr.mxu0 %v118
    %555 = vmatpush1.msra.mxu0 %v117
    %556 = vmatprep.subr.mxu0 %v120
    %557 = vmatpush1.msra.mxu0 %v119
    %558 = vmatprep.subr.mxu0 0.0
    %559 = vmatpush1.msra.mxu0 0.0
    %560 = vmatprep.subr.mxu0 0.0
    %561 = vmatpush1.msra.mxu0 0.0
    %562 = vmatprep.subr.mxu0 0.0
    %563 = vmatpush1.msra.mxu0 0.0
    %564 = vmatprep.subr.mxu0 0.0
    %565 = vmatpush1.msra.mxu0 0.0
    %566 = vmatprep.subr.mxu0 0.0
    %567 = vmatpush1.msra.mxu0 0.0
    %568 = vmatprep.subr.mxu0 0.0
    %569 = vmatpush1.msra.mxu0 0.0
    %570 = vmatprep.subr.mxu0 0.0
    %571 = vmatpush1.msra.mxu0 0.0
    %572 = vmatprep.subr.mxu0 0.0
    %573 = vmatpush1.msra.mxu0 0.0
    %574 = vmatprep.subr.mxu0 0.0
    %575 = vmatpush1.msra.mxu0 0.0
    %576 = vmatprep.subr.mxu0 0.0
    %577 = vmatpush1.msra.mxu0 0.0
    %578 = vmatprep.subr.mxu0 0.0
    %579 = vmatpush1.msra.mxu0 0.0
    %580 = vmatprep.subr.mxu0 0.0
    %581 = vmatpush1.msra.mxu0 0.0
    %582 = vmatprep.subr.mxu0 0.0
    %583 = vmatpush1.msra.mxu0 0.0
    %584 = vmatprep.subr.mxu0 0.0
    %585 = vmatpush1.msra.mxu0 0.0
    %586 = vmatprep.subr.mxu0 0.0
    %587 = vmatpush1.msra.mxu0 0.0
    %588 = vmatprep.subr.mxu0 0.0
    %589 = vmatpush1.msra.mxu0 0.0
    %590 = vmatprep.mubr.f32.mxu0 0.0
    %591 = vmatmul.mubr.f32.gmra.mrb[0].mxu0 %v452
    %v592 = vpop.f32.mrb[0].mxu0
    %v593 = vadd.f32 %v522, %v592
    %v594 = vpop.f32.mrb[0].mxu0
    %v595 = vadd.f32 %v524, %v594
    %596 = vdwg.mxu0
    %v597 = vmul.f32 %v593, %v593
    %v598 = vmul.f32 %v595, %v595
    %v599 = vadd.f32 %v597, %v598
    %v600 = vadd.f32 %v599, 1e-30
    %v601 = vrsqrt.pop %v600
    %v602 = vmul.f32 %v86, %v593
    %v603 = vmul.f32 %v602, %v601
    %v604 = vmul.f32 %v86, %v595
    %v605 = vmul.f32 %v604, %v601
    %606 = vmatprep.subr.mxu0 %v122
    %607 = vmatpush1.msra.mxu0 %v121
    %608 = vmatprep.subr.mxu0 %v124
    %609 = vmatpush1.msra.mxu0 %v123
    %610 = vmatprep.subr.mxu0 %v126
    %611 = vmatpush1.msra.mxu0 %v125
    %612 = vmatprep.subr.mxu0 %v128
    %613 = vmatpush1.msra.mxu0 %v127
    %614 = vmatprep.subr.mxu0 %v130
    %615 = vmatpush1.msra.mxu0 %v129
    %616 = vmatprep.subr.mxu0 %v132
    %617 = vmatpush1.msra.mxu0 %v131
    %618 = vmatprep.subr.mxu0 %v134
    %619 = vmatpush1.msra.mxu0 %v133
    %620 = vmatprep.subr.mxu0 %v136
    %621 = vmatpush1.msra.mxu0 %v135
    %622 = vmatprep.subr.mxu0 %v138
    %623 = vmatpush1.msra.mxu0 %v137
    %624 = vmatprep.subr.mxu0 %v140
    %625 = vmatpush1.msra.mxu0 %v139
    %626 = vmatprep.subr.mxu0 %v142
    %627 = vmatpush1.msra.mxu0 %v141
    %628 = vmatprep.subr.mxu0 %v144
    %629 = vmatpush1.msra.mxu0 %v143
    %630 = vmatprep.subr.mxu0 %v146
    %631 = vmatpush1.msra.mxu0 %v145
    %632 = vmatprep.subr.mxu0 %v148
    %633 = vmatpush1.msra.mxu0 %v147
    %634 = vmatprep.subr.mxu0 %v150
    %635 = vmatpush1.msra.mxu0 %v149
    %636 = vmatprep.subr.mxu0 %v152
    %637 = vmatpush1.msra.mxu0 %v151
    %638 = vmatprep.subr.mxu0 0.0
    %639 = vmatpush1.msra.mxu0 0.0
    %640 = vmatprep.subr.mxu0 0.0
    %641 = vmatpush1.msra.mxu0 0.0
    %642 = vmatprep.subr.mxu0 0.0
    %643 = vmatpush1.msra.mxu0 0.0
    %644 = vmatprep.subr.mxu0 0.0
    %645 = vmatpush1.msra.mxu0 0.0
    %646 = vmatprep.subr.mxu0 0.0
    %647 = vmatpush1.msra.mxu0 0.0
    %648 = vmatprep.subr.mxu0 0.0
    %649 = vmatpush1.msra.mxu0 0.0
    %650 = vmatprep.subr.mxu0 0.0
    %651 = vmatpush1.msra.mxu0 0.0
    %652 = vmatprep.subr.mxu0 0.0
    %653 = vmatpush1.msra.mxu0 0.0
    %654 = vmatprep.subr.mxu0 0.0
    %655 = vmatpush1.msra.mxu0 0.0
    %656 = vmatprep.subr.mxu0 0.0
    %657 = vmatpush1.msra.mxu0 0.0
    %658 = vmatprep.subr.mxu0 0.0
    %659 = vmatpush1.msra.mxu0 0.0
    %660 = vmatprep.subr.mxu0 0.0
    %661 = vmatpush1.msra.mxu0 0.0
    %662 = vmatprep.subr.mxu0 0.0
    %663 = vmatpush1.msra.mxu0 0.0
    %664 = vmatprep.subr.mxu0 0.0
    %665 = vmatpush1.msra.mxu0 0.0
    %666 = vmatprep.subr.mxu0 0.0
    %667 = vmatpush1.msra.mxu0 0.0
    %668 = vmatprep.subr.mxu0 0.0
    %669 = vmatpush1.msra.mxu0 0.0
    %670 = vmatprep.mubr.f32.mxu0 0.0
    %671 = vmatmul.mubr.f32.gmra.mrb[0].mxu0 %v605
    %v672 = vpop.f32.mrb[0].mxu0
    %v673 = vadd.f32 0.0, %v672
    %v674 = vpop.f32.mrb[0].mxu0
    %v675 = vadd.f32 0.0, %v674
    %676 = vdwg.mxu0
    %677 = vmatprep.subr.mxu0 %v90
    %678 = vmatpush1.msra.mxu0 %v89
    %679 = vmatprep.subr.mxu0 %v92
    %680 = vmatpush1.msra.mxu0 %v91
    %681 = vmatprep.subr.mxu0 %v94
    %682 = vmatpush1.msra.mxu0 %v93
    %683 = vmatprep.subr.mxu0 %v96
    %684 = vmatpush1.msra.mxu0 %v95
    %685 = vmatprep.subr.mxu0 %v98
    %686 = vmatpush1.msra.mxu0 %v97
    %687 = vmatprep.subr.mxu0 %v100
    %688 = vmatpush1.msra.mxu0 %v99
    %689 = vmatprep.subr.mxu0 %v102
    %690 = vmatpush1.msra.mxu0 %v101
    %691 = vmatprep.subr.mxu0 %v104
    %692 = vmatpush1.msra.mxu0 %v103
    %693 = vmatprep.subr.mxu0 %v106
    %694 = vmatpush1.msra.mxu0 %v105
    %695 = vmatprep.subr.mxu0 %v108
    %696 = vmatpush1.msra.mxu0 %v107
    %697 = vmatprep.subr.mxu0 %v110
    %698 = vmatpush1.msra.mxu0 %v109
    %699 = vmatprep.subr.mxu0 %v112
    %700 = vmatpush1.msra.mxu0 %v111
    %701 = vmatprep.subr.mxu0 %v114
    %702 = vmatpush1.msra.mxu0 %v113
    %703 = vmatprep.subr.mxu0 %v116
    %704 = vmatpush1.msra.mxu0 %v115
    %705 = vmatprep.subr.mxu0 %v118
    %706 = vmatpush1.msra.mxu0 %v117
    %707 = vmatprep.subr.mxu0 %v120
    %708 = vmatpush1.msra.mxu0 %v119
    %709 = vmatprep.subr.mxu0 0.0
    %710 = vmatpush1.msra.mxu0 0.0
    %711 = vmatprep.subr.mxu0 0.0
    %712 = vmatpush1.msra.mxu0 0.0
    %713 = vmatprep.subr.mxu0 0.0
    %714 = vmatpush1.msra.mxu0 0.0
    %715 = vmatprep.subr.mxu0 0.0
    %716 = vmatpush1.msra.mxu0 0.0
    %717 = vmatprep.subr.mxu0 0.0
    %718 = vmatpush1.msra.mxu0 0.0
    %719 = vmatprep.subr.mxu0 0.0
    %720 = vmatpush1.msra.mxu0 0.0
    %721 = vmatprep.subr.mxu0 0.0
    %722 = vmatpush1.msra.mxu0 0.0
    %723 = vmatprep.subr.mxu0 0.0
    %724 = vmatpush1.msra.mxu0 0.0
    %725 = vmatprep.subr.mxu0 0.0
    %726 = vmatpush1.msra.mxu0 0.0
    %727 = vmatprep.subr.mxu0 0.0
    %728 = vmatpush1.msra.mxu0 0.0
    %729 = vmatprep.subr.mxu0 0.0
    %730 = vmatpush1.msra.mxu0 0.0
    %731 = vmatprep.subr.mxu0 0.0
    %732 = vmatpush1.msra.mxu0 0.0
    %733 = vmatprep.subr.mxu0 0.0
    %734 = vmatpush1.msra.mxu0 0.0
    %735 = vmatprep.subr.mxu0 0.0
    %736 = vmatpush1.msra.mxu0 0.0
    %737 = vmatprep.subr.mxu0 0.0
    %738 = vmatpush1.msra.mxu0 0.0
    %739 = vmatprep.subr.mxu0 0.0
    %740 = vmatpush1.msra.mxu0 0.0
    %741 = vmatprep.mubr.f32.mxu0 0.0
    %742 = vmatmul.mubr.f32.gmra.mrb[0].mxu0 %v603
    %v743 = vpop.f32.mrb[0].mxu0
    %v744 = vadd.f32 %v673, %v743
    %v745 = vpop.f32.mrb[0].mxu0
    %v746 = vadd.f32 %v675, %v745
    %747 = vdwg.mxu0
    %v748 = vmul.f32 %v744, %v744
    %v749 = vmul.f32 %v746, %v746
    %v750 = vadd.f32 %v748, %v749
    %v751 = vadd.f32 %v750, 1e-30
    %v752 = vrsqrt.pop %v751
    %v753 = vmul.f32 %v86, %v744
    %v754 = vmul.f32 %v753, %v752
    %v755 = vmul.f32 %v86, %v746
    %v756 = vmul.f32 %v755, %v752
    %757 = vmatprep.subr.mxu0 %v122
    %758 = vmatpush1.msra.mxu0 %v121
    %759 = vmatprep.subr.mxu0 %v124
    %760 = vmatpush1.msra.mxu0 %v123
    %761 = vmatprep.subr.mxu0 %v126
    %762 = vmatpush1.msra.mxu0 %v125
    %763 = vmatprep.subr.mxu0 %v128
    %764 = vmatpush1.msra.mxu0 %v127
    %765 = vmatprep.subr.mxu0 %v130
    %766 = vmatpush1.msra.mxu0 %v129
    %767 = vmatprep.subr.mxu0 %v132
    %768 = vmatpush1.msra.mxu0 %v131
    %769 = vmatprep.subr.mxu0 %v134
    %770 = vmatpush1.msra.mxu0 %v133
    %771 = vmatprep.subr.mxu0 %v136
    %772 = vmatpush1.msra.mxu0 %v135
    %773 = vmatprep.subr.mxu0 %v138
    %774 = vmatpush1.msra.mxu0 %v137
    %775 = vmatprep.subr.mxu0 %v140
    %776 = vmatpush1.msra.mxu0 %v139
    %777 = vmatprep.subr.mxu0 %v142
    %778 = vmatpush1.msra.mxu0 %v141
    %779 = vmatprep.subr.mxu0 %v144
    %780 = vmatpush1.msra.mxu0 %v143
    %781 = vmatprep.subr.mxu0 %v146
    %782 = vmatpush1.msra.mxu0 %v145
    %783 = vmatprep.subr.mxu0 %v148
    %784 = vmatpush1.msra.mxu0 %v147
    %785 = vmatprep.subr.mxu0 %v150
    %786 = vmatpush1.msra.mxu0 %v149
    %787 = vmatprep.subr.mxu0 %v152
    %788 = vmatpush1.msra.mxu0 %v151
    %789 = vmatprep.subr.mxu0 0.0
    %790 = vmatpush1.msra.mxu0 0.0
    %791 = vmatprep.subr.mxu0 0.0
    %792 = vmatpush1.msra.mxu0 0.0
    %793 = vmatprep.subr.mxu0 0.0
    %794 = vmatpush1.msra.mxu0 0.0
    %795 = vmatprep.subr.mxu0 0.0
    %796 = vmatpush1.msra.mxu0 0.0
    %797 = vmatprep.subr.mxu0 0.0
    %798 = vmatpush1.msra.mxu0 0.0
    %799 = vmatprep.subr.mxu0 0.0
    %800 = vmatpush1.msra.mxu0 0.0
    %801 = vmatprep.subr.mxu0 0.0
    %802 = vmatpush1.msra.mxu0 0.0
    %803 = vmatprep.subr.mxu0 0.0
    %804 = vmatpush1.msra.mxu0 0.0
    %805 = vmatprep.subr.mxu0 0.0
    %806 = vmatpush1.msra.mxu0 0.0
    %807 = vmatprep.subr.mxu0 0.0
    %808 = vmatpush1.msra.mxu0 0.0
    %809 = vmatprep.subr.mxu0 0.0
    %810 = vmatpush1.msra.mxu0 0.0
    %811 = vmatprep.subr.mxu0 0.0
    %812 = vmatpush1.msra.mxu0 0.0
    %813 = vmatprep.subr.mxu0 0.0
    %814 = vmatpush1.msra.mxu0 0.0
    %815 = vmatprep.subr.mxu0 0.0
    %816 = vmatpush1.msra.mxu0 0.0
    %817 = vmatprep.subr.mxu0 0.0
    %818 = vmatpush1.msra.mxu0 0.0
    %819 = vmatprep.subr.mxu0 0.0
    %820 = vmatpush1.msra.mxu0 0.0
    %821 = vmatprep.mubr.f32.mxu0 0.0
    %822 = vmatmul.mubr.f32.gmra.mrb[0].mxu0 %v756
    %v823 = vpop.f32.mrb[0].mxu0
    %v824 = vadd.f32 0.0, %v823
    %v825 = vpop.f32.mrb[0].mxu0
    %v826 = vadd.f32 0.0, %v825
    %827 = vdwg.mxu0
    %828 = vmatprep.subr.mxu0 %v90
    %829 = vmatpush1.msra.mxu0 %v89
    %830 = vmatprep.subr.mxu0 %v92
    %831 = vmatpush1.msra.mxu0 %v91
    %832 = vmatprep.subr.mxu0 %v94
    %833 = vmatpush1.msra.mxu0 %v93
    %834 = vmatprep.subr.mxu0 %v96
    %835 = vmatpush1.msra.mxu0 %v95
    %836 = vmatprep.subr.mxu0 %v98
    %837 = vmatpush1.msra.mxu0 %v97
    %838 = vmatprep.subr.mxu0 %v100
    %839 = vmatpush1.msra.mxu0 %v99
    %840 = vmatprep.subr.mxu0 %v102
    %841 = vmatpush1.msra.mxu0 %v101
    %842 = vmatprep.subr.mxu0 %v104
    %843 = vmatpush1.msra.mxu0 %v103
    %844 = vmatprep.subr.mxu0 %v106
    %845 = vmatpush1.msra.mxu0 %v105
    %846 = vmatprep.subr.mxu0 %v108
    %847 = vmatpush1.msra.mxu0 %v107
    %848 = vmatprep.subr.mxu0 %v110
    %849 = vmatpush1.msra.mxu0 %v109
    %850 = vmatprep.subr.mxu0 %v112
    %851 = vmatpush1.msra.mxu0 %v111
    %852 = vmatprep.subr.mxu0 %v114
    %853 = vmatpush1.msra.mxu0 %v113
    %854 = vmatprep.subr.mxu0 %v116
    %855 = vmatpush1.msra.mxu0 %v115
    %856 = vmatprep.subr.mxu0 %v118
    %857 = vmatpush1.msra.mxu0 %v117
    %858 = vmatprep.subr.mxu0 %v120
    %859 = vmatpush1.msra.mxu0 %v119
    %860 = vmatprep.subr.mxu0 0.0
    %861 = vmatpush1.msra.mxu0 0.0
    %862 = vmatprep.subr.mxu0 0.0
    %863 = vmatpush1.msra.mxu0 0.0
    %864 = vmatprep.subr.mxu0 0.0
    %865 = vmatpush1.msra.mxu0 0.0
    %866 = vmatprep.subr.mxu0 0.0
    %867 = vmatpush1.msra.mxu0 0.0
    %868 = vmatprep.subr.mxu0 0.0
    %869 = vmatpush1.msra.mxu0 0.0
    %870 = vmatprep.subr.mxu0 0.0
    %871 = vmatpush1.msra.mxu0 0.0
    %872 = vmatprep.subr.mxu0 0.0
    %873 = vmatpush1.msra.mxu0 0.0
    %874 = vmatprep.subr.mxu0 0.0
    %875 = vmatpush1.msra.mxu0 0.0
    %876 = vmatprep.subr.mxu0 0.0
    %877 = vmatpush1.msra.mxu0 0.0
    %878 = vmatprep.subr.mxu0 0.0
    %879 = vmatpush1.msra.mxu0 0.0
    %880 = vmatprep.subr.mxu0 0.0
    %881 = vmatpush1.msra.mxu0 0.0
    %882 = vmatprep.subr.mxu0 0.0
    %883 = vmatpush1.msra.mxu0 0.0
    %884 = vmatprep.subr.mxu0 0.0
    %885 = vmatpush1.msra.mxu0 0.0
    %886 = vmatprep.subr.mxu0 0.0
    %887 = vmatpush1.msra.mxu0 0.0
    %888 = vmatprep.subr.mxu0 0.0
    %889 = vmatpush1.msra.mxu0 0.0
    %890 = vmatprep.subr.mxu0 0.0
    %891 = vmatpush1.msra.mxu0 0.0
    %892 = vmatprep.mubr.f32.mxu0 0.0
    %893 = vmatmul.mubr.f32.gmra.mrb[0].mxu0 %v754
    %v894 = vpop.f32.mrb[0].mxu0
    %v895 = vadd.f32 %v824, %v894
    %v896 = vpop.f32.mrb[0].mxu0
    %v897 = vadd.f32 %v826, %v896
    %898 = vdwg.mxu0
    %v899 = vmul.f32 %v895, %v895
    %v900 = vmul.f32 %v897, %v897
    %v901 = vadd.f32 %v899, %v900
    %v902 = vadd.f32 %v901, 1e-30
    %v903 = vrsqrt.pop %v902
    %v904 = vmul.f32 %v86, %v895
    %v905 = vmul.f32 %v904, %v903
    %v906 = vmul.f32 %v86, %v897
    %v907 = vmul.f32 %v906, %v903
    %908 = vmatprep.subr.mxu0 %v122
    %909 = vmatpush1.msra.mxu0 %v121
    %910 = vmatprep.subr.mxu0 %v124
    %911 = vmatpush1.msra.mxu0 %v123
    %912 = vmatprep.subr.mxu0 %v126
    %913 = vmatpush1.msra.mxu0 %v125
    %914 = vmatprep.subr.mxu0 %v128
    %915 = vmatpush1.msra.mxu0 %v127
    %916 = vmatprep.subr.mxu0 %v130
    %917 = vmatpush1.msra.mxu0 %v129
    %918 = vmatprep.subr.mxu0 %v132
    %919 = vmatpush1.msra.mxu0 %v131
    %920 = vmatprep.subr.mxu0 %v134
    %921 = vmatpush1.msra.mxu0 %v133
    %922 = vmatprep.subr.mxu0 %v136
    %923 = vmatpush1.msra.mxu0 %v135
    %924 = vmatprep.subr.mxu0 %v138
    %925 = vmatpush1.msra.mxu0 %v137
    %926 = vmatprep.subr.mxu0 %v140
    %927 = vmatpush1.msra.mxu0 %v139
    %928 = vmatprep.subr.mxu0 %v142
    %929 = vmatpush1.msra.mxu0 %v141
    %930 = vmatprep.subr.mxu0 %v144
    %931 = vmatpush1.msra.mxu0 %v143
    %932 = vmatprep.subr.mxu0 %v146
    %933 = vmatpush1.msra.mxu0 %v145
    %934 = vmatprep.subr.mxu0 %v148
    %935 = vmatpush1.msra.mxu0 %v147
    %936 = vmatprep.subr.mxu0 %v150
    %937 = vmatpush1.msra.mxu0 %v149
    %938 = vmatprep.subr.mxu0 %v152
    %939 = vmatpush1.msra.mxu0 %v151
    %940 = vmatprep.subr.mxu0 0.0
    %941 = vmatpush1.msra.mxu0 0.0
    %942 = vmatprep.subr.mxu0 0.0
    %943 = vmatpush1.msra.mxu0 0.0
    %944 = vmatprep.subr.mxu0 0.0
    %945 = vmatpush1.msra.mxu0 0.0
    %946 = vmatprep.subr.mxu0 0.0
    %947 = vmatpush1.msra.mxu0 0.0
    %948 = vmatprep.subr.mxu0 0.0
    %949 = vmatpush1.msra.mxu0 0.0
    %950 = vmatprep.subr.mxu0 0.0
    %951 = vmatpush1.msra.mxu0 0.0
    %952 = vmatprep.subr.mxu0 0.0
    %953 = vmatpush1.msra.mxu0 0.0
    %954 = vmatprep.subr.mxu0 0.0
    %955 = vmatpush1.msra.mxu0 0.0
    %956 = vmatprep.subr.mxu0 0.0
    %957 = vmatpush1.msra.mxu0 0.0
    %958 = vmatprep.subr.mxu0 0.0
    %959 = vmatpush1.msra.mxu0 0.0
    %960 = vmatprep.subr.mxu0 0.0
    %961 = vmatpush1.msra.mxu0 0.0
    %962 = vmatprep.subr.mxu0 0.0
    %963 = vmatpush1.msra.mxu0 0.0
    %964 = vmatprep.subr.mxu0 0.0
    %965 = vmatpush1.msra.mxu0 0.0
    %966 = vmatprep.subr.mxu0 0.0
    %967 = vmatpush1.msra.mxu0 0.0
    %968 = vmatprep.subr.mxu0 0.0
    %969 = vmatpush1.msra.mxu0 0.0
    %970 = vmatprep.subr.mxu0 0.0
    %971 = vmatpush1.msra.mxu0 0.0
    %972 = vmatprep.mubr.f32.mxu0 0.0
    %973 = vmatmul.mubr.f32.gmra.mrb[0].mxu0 %v907
    %v974 = vpop.f32.mrb[0].mxu0
    %v975 = vadd.f32 0.0, %v974
    %v976 = vpop.f32.mrb[0].mxu0
    %v977 = vadd.f32 0.0, %v976
    %978 = vdwg.mxu0
    %979 = vmatprep.subr.mxu0 %v90
    %980 = vmatpush1.msra.mxu0 %v89
    %981 = vmatprep.subr.mxu0 %v92
    %982 = vmatpush1.msra.mxu0 %v91
    %983 = vmatprep.subr.mxu0 %v94
    %984 = vmatpush1.msra.mxu0 %v93
    %985 = vmatprep.subr.mxu0 %v96
    %986 = vmatpush1.msra.mxu0 %v95
    %987 = vmatprep.subr.mxu0 %v98
    %988 = vmatpush1.msra.mxu0 %v97
    %989 = vmatprep.subr.mxu0 %v100
    %990 = vmatpush1.msra.mxu0 %v99
    %991 = vmatprep.subr.mxu0 %v102
    %992 = vmatpush1.msra.mxu0 %v101
    %993 = vmatprep.subr.mxu0 %v104
    %994 = vmatpush1.msra.mxu0 %v103
    %995 = vmatprep.subr.mxu0 %v106
    %996 = vmatpush1.msra.mxu0 %v105
    %997 = vmatprep.subr.mxu0 %v108
    %998 = vmatpush1.msra.mxu0 %v107
    %999 = vmatprep.subr.mxu0 %v110
    %1000 = vmatpush1.msra.mxu0 %v109
    %1001 = vmatprep.subr.mxu0 %v112
    %1002 = vmatpush1.msra.mxu0 %v111
    %1003 = vmatprep.subr.mxu0 %v114
    %1004 = vmatpush1.msra.mxu0 %v113
    %1005 = vmatprep.subr.mxu0 %v116
    %1006 = vmatpush1.msra.mxu0 %v115
    %1007 = vmatprep.subr.mxu0 %v118
    %1008 = vmatpush1.msra.mxu0 %v117
    %1009 = vmatprep.subr.mxu0 %v120
    %1010 = vmatpush1.msra.mxu0 %v119
    %1011 = vmatprep.subr.mxu0 0.0
    %1012 = vmatpush1.msra.mxu0 0.0
    %1013 = vmatprep.subr.mxu0 0.0
    %1014 = vmatpush1.msra.mxu0 0.0
    %1015 = vmatprep.subr.mxu0 0.0
    %1016 = vmatpush1.msra.mxu0 0.0
    %1017 = vmatprep.subr.mxu0 0.0
    %1018 = vmatpush1.msra.mxu0 0.0
    %1019 = vmatprep.subr.mxu0 0.0
    %1020 = vmatpush1.msra.mxu0 0.0
    %1021 = vmatprep.subr.mxu0 0.0
    %1022 = vmatpush1.msra.mxu0 0.0
    %1023 = vmatprep.subr.mxu0 0.0
    %1024 = vmatpush1.msra.mxu0 0.0
    %1025 = vmatprep.subr.mxu0 0.0
    %1026 = vmatpush1.msra.mxu0 0.0
    %1027 = vmatprep.subr.mxu0 0.0
    %1028 = vmatpush1.msra.mxu0 0.0
    %1029 = vmatprep.subr.mxu0 0.0
    %1030 = vmatpush1.msra.mxu0 0.0
    %1031 = vmatprep.subr.mxu0 0.0
    %1032 = vmatpush1.msra.mxu0 0.0
    %1033 = vmatprep.subr.mxu0 0.0
    %1034 = vmatpush1.msra.mxu0 0.0
    %1035 = vmatprep.subr.mxu0 0.0
    %1036 = vmatpush1.msra.mxu0 0.0
    %1037 = vmatprep.subr.mxu0 0.0
    %1038 = vmatpush1.msra.mxu0 0.0
    %1039 = vmatprep.subr.mxu0 0.0
    %1040 = vmatpush1.msra.mxu0 0.0
    %1041 = vmatprep.subr.mxu0 0.0
    %1042 = vmatpush1.msra.mxu0 0.0
    %1043 = vmatprep.mubr.f32.mxu0 0.0
    %1044 = vmatmul.mubr.f32.gmra.mrb[0].mxu0 %v905
    %v1045 = vpop.f32.mrb[0].mxu0
    %v1046 = vadd.f32 %v975, %v1045
    %v1047 = vpop.f32.mrb[0].mxu0
    %v1048 = vadd.f32 %v977, %v1047
    %1049 = vdwg.mxu0
    %v1050 = vmul.f32 %v1046, %v1046
    %v1051 = vmul.f32 %v1048, %v1048
    %v1052 = vadd.f32 %v1050, %v1051
    %v1053 = vadd.f32 %v1052, 1e-30
    %v1054 = vrsqrt.pop %v1053
    %v1055 = vmul.f32 %v86, %v1046
    %v1056 = vmul.f32 %v1055, %v1054
    %v1057 = vmul.f32 %v86, %v1048
    %v1058 = vmul.f32 %v1057, %v1054
    %1059 = vmatprep.subr.mxu0 %v122
    %1060 = vmatpush1.msra.mxu0 %v121
    %1061 = vmatprep.subr.mxu0 %v124
    %1062 = vmatpush1.msra.mxu0 %v123
    %1063 = vmatprep.subr.mxu0 %v126
    %1064 = vmatpush1.msra.mxu0 %v125
    %1065 = vmatprep.subr.mxu0 %v128
    %1066 = vmatpush1.msra.mxu0 %v127
    %1067 = vmatprep.subr.mxu0 %v130
    %1068 = vmatpush1.msra.mxu0 %v129
    %1069 = vmatprep.subr.mxu0 %v132
    %1070 = vmatpush1.msra.mxu0 %v131
    %1071 = vmatprep.subr.mxu0 %v134
    %1072 = vmatpush1.msra.mxu0 %v133
    %1073 = vmatprep.subr.mxu0 %v136
    %1074 = vmatpush1.msra.mxu0 %v135
    %1075 = vmatprep.subr.mxu0 %v138
    %1076 = vmatpush1.msra.mxu0 %v137
    %1077 = vmatprep.subr.mxu0 %v140
    %1078 = vmatpush1.msra.mxu0 %v139
    %1079 = vmatprep.subr.mxu0 %v142
    %1080 = vmatpush1.msra.mxu0 %v141
    %1081 = vmatprep.subr.mxu0 %v144
    %1082 = vmatpush1.msra.mxu0 %v143
    %1083 = vmatprep.subr.mxu0 %v146
    %1084 = vmatpush1.msra.mxu0 %v145
    %1085 = vmatprep.subr.mxu0 %v148
    %1086 = vmatpush1.msra.mxu0 %v147
    %1087 = vmatprep.subr.mxu0 %v150
    %1088 = vmatpush1.msra.mxu0 %v149
    %1089 = vmatprep.subr.mxu0 %v152
    %1090 = vmatpush1.msra.mxu0 %v151
    %1091 = vmatprep.subr.mxu0 0.0
    %1092 = vmatpush1.msra.mxu0 0.0
    %1093 = vmatprep.subr.mxu0 0.0
    %1094 = vmatpush1.msra.mxu0 0.0
    %1095 = vmatprep.subr.mxu0 0.0
    %1096 = vmatpush1.msra.mxu0 0.0
    %1097 = vmatprep.subr.mxu0 0.0
    %1098 = vmatpush1.msra.mxu0 0.0
    %1099 = vmatprep.subr.mxu0 0.0
    %1100 = vmatpush1.msra.mxu0 0.0
    %1101 = vmatprep.subr.mxu0 0.0
    %1102 = vmatpush1.msra.mxu0 0.0
    %1103 = vmatprep.subr.mxu0 0.0
    %1104 = vmatpush1.msra.mxu0 0.0
    %1105 = vmatprep.subr.mxu0 0.0
    %1106 = vmatpush1.msra.mxu0 0.0
    %1107 = vmatprep.subr.mxu0 0.0
    %1108 = vmatpush1.msra.mxu0 0.0
    %1109 = vmatprep.subr.mxu0 0.0
    %1110 = vmatpush1.msra.mxu0 0.0
    %1111 = vmatprep.subr.mxu0 0.0
    %1112 = vmatpush1.msra.mxu0 0.0
    %1113 = vmatprep.subr.mxu0 0.0
    %1114 = vmatpush1.msra.mxu0 0.0
    %1115 = vmatprep.subr.mxu0 0.0
    %1116 = vmatpush1.msra.mxu0 0.0
    %1117 = vmatprep.subr.mxu0 0.0
    %1118 = vmatpush1.msra.mxu0 0.0
    %1119 = vmatprep.subr.mxu0 0.0
    %1120 = vmatpush1.msra.mxu0 0.0
    %1121 = vmatprep.subr.mxu0 0.0
    %1122 = vmatpush1.msra.mxu0 0.0
    %1123 = vmatprep.mubr.f32.mxu0 0.0
    %1124 = vmatmul.mubr.f32.gmra.mrb[0].mxu0 %v1058
    %v1125 = vpop.f32.mrb[0].mxu0
    %v1126 = vadd.f32 0.0, %v1125
    %v1127 = vpop.f32.mrb[0].mxu0
    %v1128 = vadd.f32 0.0, %v1127
    %1129 = vdwg.mxu0
    %1130 = vmatprep.subr.mxu0 %v90
    %1131 = vmatpush1.msra.mxu0 %v89
    %1132 = vmatprep.subr.mxu0 %v92
    %1133 = vmatpush1.msra.mxu0 %v91
    %1134 = vmatprep.subr.mxu0 %v94
    %1135 = vmatpush1.msra.mxu0 %v93
    %1136 = vmatprep.subr.mxu0 %v96
    %1137 = vmatpush1.msra.mxu0 %v95
    %1138 = vmatprep.subr.mxu0 %v98
    %1139 = vmatpush1.msra.mxu0 %v97
    %1140 = vmatprep.subr.mxu0 %v100
    %1141 = vmatpush1.msra.mxu0 %v99
    %1142 = vmatprep.subr.mxu0 %v102
    %1143 = vmatpush1.msra.mxu0 %v101
    %1144 = vmatprep.subr.mxu0 %v104
    %1145 = vmatpush1.msra.mxu0 %v103
    %1146 = vmatprep.subr.mxu0 %v106
    %1147 = vmatpush1.msra.mxu0 %v105
    %1148 = vmatprep.subr.mxu0 %v108
    %1149 = vmatpush1.msra.mxu0 %v107
    %1150 = vmatprep.subr.mxu0 %v110
    %1151 = vmatpush1.msra.mxu0 %v109
    %1152 = vmatprep.subr.mxu0 %v112
    %1153 = vmatpush1.msra.mxu0 %v111
    %1154 = vmatprep.subr.mxu0 %v114
    %1155 = vmatpush1.msra.mxu0 %v113
    %1156 = vmatprep.subr.mxu0 %v116
    %1157 = vmatpush1.msra.mxu0 %v115
    %1158 = vmatprep.subr.mxu0 %v118
    %1159 = vmatpush1.msra.mxu0 %v117
    %1160 = vmatprep.subr.mxu0 %v120
    %1161 = vmatpush1.msra.mxu0 %v119
    %1162 = vmatprep.subr.mxu0 0.0
    %1163 = vmatpush1.msra.mxu0 0.0
    %1164 = vmatprep.subr.mxu0 0.0
    %1165 = vmatpush1.msra.mxu0 0.0
    %1166 = vmatprep.subr.mxu0 0.0
    %1167 = vmatpush1.msra.mxu0 0.0
    %1168 = vmatprep.subr.mxu0 0.0
    %1169 = vmatpush1.msra.mxu0 0.0
    %1170 = vmatprep.subr.mxu0 0.0
    %1171 = vmatpush1.msra.mxu0 0.0
    %1172 = vmatprep.subr.mxu0 0.0
    %1173 = vmatpush1.msra.mxu0 0.0
    %1174 = vmatprep.subr.mxu0 0.0
    %1175 = vmatpush1.msra.mxu0 0.0
    %1176 = vmatprep.subr.mxu0 0.0
    %1177 = vmatpush1.msra.mxu0 0.0
    %1178 = vmatprep.subr.mxu0 0.0
    %1179 = vmatpush1.msra.mxu0 0.0
    %1180 = vmatprep.subr.mxu0 0.0
    %1181 = vmatpush1.msra.mxu0 0.0
    %1182 = vmatprep.subr.mxu0 0.0
    %1183 = vmatpush1.msra.mxu0 0.0
    %1184 = vmatprep.subr.mxu0 0.0
    %1185 = vmatpush1.msra.mxu0 0.0
    %1186 = vmatprep.subr.mxu0 0.0
    %1187 = vmatpush1.msra.mxu0 0.0
    %1188 = vmatprep.subr.mxu0 0.0
    %1189 = vmatpush1.msra.mxu0 0.0
    %1190 = vmatprep.subr.mxu0 0.0
    %1191 = vmatpush1.msra.mxu0 0.0
    %1192 = vmatprep.subr.mxu0 0.0
    %1193 = vmatpush1.msra.mxu0 0.0
    %1194 = vmatprep.mubr.f32.mxu0 0.0
    %1195 = vmatmul.mubr.f32.gmra.mrb[0].mxu0 %v1056
    %v1196 = vpop.f32.mrb[0].mxu0
    %v1197 = vadd.f32 %v1126, %v1196
    %v1198 = vpop.f32.mrb[0].mxu0
    %v1199 = vadd.f32 %v1128, %v1198
    %1200 = vdwg.mxu0
    %v1201 = vmul.f32 %v1197, %v1197
    %v1202 = vmul.f32 %v1199, %v1199
    %v1203 = vadd.f32 %v1201, %v1202
    %v1204 = vadd.f32 %v1203, 1e-30
    %v1205 = vrsqrt.pop %v1204
    %v1206 = vmul.f32 %v86, %v1197
    %v1207 = vmul.f32 %v1206, %v1205
    %v1208 = vmul.f32 %v86, %v1199
    %v1209 = vmul.f32 %v1208, %v1205
    %1210 = vmatprep.subr.mxu0 %v122
    %1211 = vmatpush1.msra.mxu0 %v121
    %1212 = vmatprep.subr.mxu0 %v124
    %1213 = vmatpush1.msra.mxu0 %v123
    %1214 = vmatprep.subr.mxu0 %v126
    %1215 = vmatpush1.msra.mxu0 %v125
    %1216 = vmatprep.subr.mxu0 %v128
    %1217 = vmatpush1.msra.mxu0 %v127
    %1218 = vmatprep.subr.mxu0 %v130
    %1219 = vmatpush1.msra.mxu0 %v129
    %1220 = vmatprep.subr.mxu0 %v132
    %1221 = vmatpush1.msra.mxu0 %v131
    %1222 = vmatprep.subr.mxu0 %v134
    %1223 = vmatpush1.msra.mxu0 %v133
    %1224 = vmatprep.subr.mxu0 %v136
    %1225 = vmatpush1.msra.mxu0 %v135
    %1226 = vmatprep.subr.mxu0 %v138
    %1227 = vmatpush1.msra.mxu0 %v137
    %1228 = vmatprep.subr.mxu0 %v140
    %1229 = vmatpush1.msra.mxu0 %v139
    %1230 = vmatprep.subr.mxu0 %v142
    %1231 = vmatpush1.msra.mxu0 %v141
    %1232 = vmatprep.subr.mxu0 %v144
    %1233 = vmatpush1.msra.mxu0 %v143
    %1234 = vmatprep.subr.mxu0 %v146
    %1235 = vmatpush1.msra.mxu0 %v145
    %1236 = vmatprep.subr.mxu0 %v148
    %1237 = vmatpush1.msra.mxu0 %v147
    %1238 = vmatprep.subr.mxu0 %v150
    %1239 = vmatpush1.msra.mxu0 %v149
    %1240 = vmatprep.subr.mxu0 %v152
    %1241 = vmatpush1.msra.mxu0 %v151
    %1242 = vmatprep.subr.mxu0 0.0
    %1243 = vmatpush1.msra.mxu0 0.0
    %1244 = vmatprep.subr.mxu0 0.0
    %1245 = vmatpush1.msra.mxu0 0.0
    %1246 = vmatprep.subr.mxu0 0.0
    %1247 = vmatpush1.msra.mxu0 0.0
    %1248 = vmatprep.subr.mxu0 0.0
    %1249 = vmatpush1.msra.mxu0 0.0
    %1250 = vmatprep.subr.mxu0 0.0
    %1251 = vmatpush1.msra.mxu0 0.0
    %1252 = vmatprep.subr.mxu0 0.0
    %1253 = vmatpush1.msra.mxu0 0.0
    %1254 = vmatprep.subr.mxu0 0.0
    %1255 = vmatpush1.msra.mxu0 0.0
    %1256 = vmatprep.subr.mxu0 0.0
    %1257 = vmatpush1.msra.mxu0 0.0
    %1258 = vmatprep.subr.mxu0 0.0
    %1259 = vmatpush1.msra.mxu0 0.0
    %1260 = vmatprep.subr.mxu0 0.0
    %1261 = vmatpush1.msra.mxu0 0.0
    %1262 = vmatprep.subr.mxu0 0.0
    %1263 = vmatpush1.msra.mxu0 0.0
    %1264 = vmatprep.subr.mxu0 0.0
    %1265 = vmatpush1.msra.mxu0 0.0
    %1266 = vmatprep.subr.mxu0 0.0
    %1267 = vmatpush1.msra.mxu0 0.0
    %1268 = vmatprep.subr.mxu0 0.0
    %1269 = vmatpush1.msra.mxu0 0.0
    %1270 = vmatprep.subr.mxu0 0.0
    %1271 = vmatpush1.msra.mxu0 0.0
    %1272 = vmatprep.subr.mxu0 0.0
    %1273 = vmatpush1.msra.mxu0 0.0
    %1274 = vmatprep.mubr.f32.mxu0 0.0
    %1275 = vmatmul.mubr.f32.gmra.mrb[0].mxu0 %v1209
    %v1276 = vpop.f32.mrb[0].mxu0
    %v1277 = vadd.f32 0.0, %v1276
    %v1278 = vpop.f32.mrb[0].mxu0
    %v1279 = vadd.f32 0.0, %v1278
    %1280 = vdwg.mxu0
    %1281 = vmatprep.subr.mxu0 %v90
    %1282 = vmatpush1.msra.mxu0 %v89
    %1283 = vmatprep.subr.mxu0 %v92
    %1284 = vmatpush1.msra.mxu0 %v91
    %1285 = vmatprep.subr.mxu0 %v94
    %1286 = vmatpush1.msra.mxu0 %v93
    %1287 = vmatprep.subr.mxu0 %v96
    %1288 = vmatpush1.msra.mxu0 %v95
    %1289 = vmatprep.subr.mxu0 %v98
    %1290 = vmatpush1.msra.mxu0 %v97
    %1291 = vmatprep.subr.mxu0 %v100
    %1292 = vmatpush1.msra.mxu0 %v99
    %1293 = vmatprep.subr.mxu0 %v102
    %1294 = vmatpush1.msra.mxu0 %v101
    %1295 = vmatprep.subr.mxu0 %v104
    %1296 = vmatpush1.msra.mxu0 %v103
    %1297 = vmatprep.subr.mxu0 %v106
    %1298 = vmatpush1.msra.mxu0 %v105
    %1299 = vmatprep.subr.mxu0 %v108
    %1300 = vmatpush1.msra.mxu0 %v107
    %1301 = vmatprep.subr.mxu0 %v110
    %1302 = vmatpush1.msra.mxu0 %v109
    %1303 = vmatprep.subr.mxu0 %v112
    %1304 = vmatpush1.msra.mxu0 %v111
    %1305 = vmatprep.subr.mxu0 %v114
    %1306 = vmatpush1.msra.mxu0 %v113
    %1307 = vmatprep.subr.mxu0 %v116
    %1308 = vmatpush1.msra.mxu0 %v115
    %1309 = vmatprep.subr.mxu0 %v118
    %1310 = vmatpush1.msra.mxu0 %v117
    %1311 = vmatprep.subr.mxu0 %v120
    %1312 = vmatpush1.msra.mxu0 %v119
    %1313 = vmatprep.subr.mxu0 0.0
    %1314 = vmatpush1.msra.mxu0 0.0
    %1315 = vmatprep.subr.mxu0 0.0
    %1316 = vmatpush1.msra.mxu0 0.0
    %1317 = vmatprep.subr.mxu0 0.0
    %1318 = vmatpush1.msra.mxu0 0.0
    %1319 = vmatprep.subr.mxu0 0.0
    %1320 = vmatpush1.msra.mxu0 0.0
    %1321 = vmatprep.subr.mxu0 0.0
    %1322 = vmatpush1.msra.mxu0 0.0
    %1323 = vmatprep.subr.mxu0 0.0
    %1324 = vmatpush1.msra.mxu0 0.0
    %1325 = vmatprep.subr.mxu0 0.0
    %1326 = vmatpush1.msra.mxu0 0.0
    %1327 = vmatprep.subr.mxu0 0.0
    %1328 = vmatpush1.msra.mxu0 0.0
    %1329 = vmatprep.subr.mxu0 0.0
    %1330 = vmatpush1.msra.mxu0 0.0
    %1331 = vmatprep.subr.mxu0 0.0
    %1332 = vmatpush1.msra.mxu0 0.0
    %1333 = vmatprep.subr.mxu0 0.0
    %1334 = vmatpush1.msra.mxu0 0.0
    %1335 = vmatprep.subr.mxu0 0.0
    %1336 = vmatpush1.msra.mxu0 0.0
    %1337 = vmatprep.subr.mxu0 0.0
    %1338 = vmatpush1.msra.mxu0 0.0
    %1339 = vmatprep.subr.mxu0 0.0
    %1340 = vmatpush1.msra.mxu0 0.0
    %1341 = vmatprep.subr.mxu0 0.0
    %1342 = vmatpush1.msra.mxu0 0.0
    %1343 = vmatprep.subr.mxu0 0.0
    %1344 = vmatpush1.msra.mxu0 0.0
    %1345 = vmatprep.mubr.f32.mxu0 0.0
    %1346 = vmatmul.mubr.f32.gmra.mrb[0].mxu0 %v1207
    %v1347 = vpop.f32.mrb[0].mxu0
    %v1348 = vadd.f32 %v1277, %v1347
    %v1349 = vpop.f32.mrb[0].mxu0
    %v1350 = vadd.f32 %v1279, %v1349
    %1351 = vdwg.mxu0
    %v1352 = vmul.f32 %v1348, %v1348
    %v1353 = vmul.f32 %v1350, %v1350
    %v1354 = vadd.f32 %v1352, %v1353
    %v1355 = vadd.f32 %v1354, 1e-30
    %v1356 = vrsqrt.pop %v1355
    %v1357 = vmul.f32 %v86, %v1348
    %v1358 = vmul.f32 %v1357, %v1356
    %v1359 = vmul.f32 %v86, %v1350
    %v1360 = vmul.f32 %v1359, %v1356
    %1361 = vst [vmem:[#allocation11] sm:$0xff] %v1358
    %1362 = vst [vmem:[#allocation12] sm:$0xff] %v1360
    // Predicated region
    $region42: #{tpu_custom_call.1} parent=1 // pred_check
      _
    $region43: #{tpu_custom_call.1} parent=1 // pred_check_branch
      %1364 = sbr.rel (0) target = $region45
    $region44: #{tpu_custom_call.1} parent=1 // pred_region
      %s1366 = ssub.s32 128, 128
      %1367 = vsyncadd [#allocation4], %s1366
      %s1369 = sshll.u32 [#allocation11], 4
      %s1370 = int_to_ptr.vmem [resolvable:$true] %s1369
      %1372 = dma.vmem_to_hbm [thread:$0]  %s1370, 128, %s5, [#allocation4]
    $region45: #{tpu_custom_call.1} parent=1 // pred_fallthru
      _
    // Predicated region
    $region46: #{tpu_custom_call.1} parent=1 // pred_check
      _
    $region47: #{tpu_custom_call.1} parent=1 // pred_check_branch
      %1374 = sbr.rel (0) target = $region49
    $region48: #{tpu_custom_call.1} parent=1 // pred_region
      %s1376 = ssub.s32 128, 128
      %1377 = vsyncadd [#allocation13], %s1376
      %s1379 = sshll.u32 [#allocation12], 4
      %s1380 = int_to_ptr.vmem [resolvable:$true] %s1379
      %1382 = dma.vmem_to_hbm [thread:$0]  %s1380, 128, %s6, [#allocation13]
    $region49: #{tpu_custom_call.1} parent=1 // pred_fallthru
      _
    // Predicated region
    $region50: #{tpu_custom_call.1} parent=1 // pred_check
      _
    $region51: #{tpu_custom_call.1} parent=1 // pred_check_branch
      %1384 = sbr.rel (0) target = $region53
    $region52: #{tpu_custom_call.1} parent=1 // pred_region
      %1385 = dma.done [#allocation4], 128
    $region53: #{tpu_custom_call.1} parent=1 // pred_fallthru
      _
    // Predicated region
    $region54: #{tpu_custom_call.1} parent=1 // pred_check
      _
    $region55: #{tpu_custom_call.1} parent=1 // pred_check_branch
      %1387 = sbr.rel (0) target = $region57
    $region56: #{tpu_custom_call.1} parent=1 // pred_region
      %1388 = dma.done [#allocation13], 128
    $region57: #{tpu_custom_call.1} parent=1 // pred_fallthru
      _
    %1389 = vsyncpa [#allocation3], 1
    %1390 = vsyncpa [#allocation6], 1
    %1391 = vsyncpa [#allocation9], 1
    %1392 = vsyncpa [#allocation4], 1
    %1393 = vsyncpa [#allocation13], 1

// kernel: tpu_custom_call.1
$region0: #{tpu_custom_call.1}
  #allocation0 [shape = 'u32[]', space=smem, size = 0x4, offset = 0x4, fixed_abs, tag = 'smem constant byte address 0x4 - core index']
  #allocation1 [shape = 'u32[144,128]{1,0:T(1,128)}', space=vmem, size = 0x12000, scoped, tag = 'internal scratch']
  %s0 = inlined_call_operand.hbm [shape: f32[8,128], index: 0, kind: input, shape index: {}]
  %s1 = inlined_call_operand.hbm [shape: f32[8,128], index: 1, kind: input, shape index: {}]
  %s2 = inlined_call_operand.hbm [shape: f32[8,128], index: 2, kind: input, shape index: {}]
  %s3 = inlined_call_operand.hbm [shape: f32[128,256], index: 3, kind: input, shape index: {}]
  %s4 = inlined_call_operand.hbm [shape: f32[128,256], index: 4, kind: input, shape index: {}]
  %s5 = inlined_call_operand.hbm [shape: f32[8,128], index: 5, kind: output, shape index: {0}]
  %s6 = inlined_call_operand.hbm [shape: f32[8,128], index: 6, kind: output, shape index: {1}]
  %7 = xla_tuple %s5, %s6
  %s8 = sld [smem:[#allocation0]]
  $region58: #{tpu_custom_call.1} parent=0
    _
  %s10 = ssub.s32 1, %s8
  %s11 = scalar_select 0, %s10, %s8
  $region1: #{tpu_custom_call.1} parent=0
    #allocation2 [shape = 'u8[4096]{0}', space=vmem, size = 0x1000, scoped, tag = 'input window, operand 0, single buffered']
    #allocation3 [shape = 's32[1]{0}', space=sflag, size = 0x4, scoped, tag = 'scoped memory for tpu_custom_call.1']
    #allocation4 [shape = 's32[1]{0}', space=sflag, size = 0x4, scoped, tag = 'scoped memory for tpu_custom_call.1']
    #allocation5 [shape = 'u8[4096]{0}', space=vmem, size = 0x1000, scoped, tag = 'input window, operand 1, single buffered']
    #allocation6 [shape = 's32[1]{0}', space=sflag, size = 0x4, scoped, tag = 'scoped memory for tpu_custom_call.1']
    #allocation7 [shape = 'u8[4096]{0}', space=vmem, size = 0x1000, scoped, tag = 'input window, operand 2, single buffered']
    #allocation8 [shape = 'u8[131072]{0}', space=vmem, size = 0x20000, scoped, tag = 'input window, operand 3, single buffered']
    #allocation9 [shape = 's32[1]{0}', space=sflag, size = 0x4, scoped, tag = 'scoped memory for tpu_custom_call.1']
    #allocation10 [shape = 'u8[131072]{0}', space=vmem, size = 0x20000, scoped, tag = 'input window, operand 4, single buffered']
    #allocation11 [shape = 'u8[4096]{0}', space=vmem, size = 0x1000, scoped, tag = 'output window, operand 0, single buffered']
    #allocation12 [shape = 'u8[4096]{0}', space=vmem, size = 0x1000, scoped, tag = 'output window, operand 1, single buffered']
    #allocation13 [shape = 's32[1]{0}', space=sflag, size = 0x4, scoped, tag = 'scoped memory for tpu_custom_call.1']
    %12 = vsyncpa [#allocation3], 0
    %13 = vsyncpa [#allocation6], 0
    %14 = vsyncpa [#allocation9], 0
    %15 = vsyncpa [#allocation4], 0
    %16 = vsyncpa [#allocation13], 0
    // Predicated region
    $region2: #{tpu_custom_call.1} parent=1 // pred_check
      _
    $region3: #{tpu_custom_call.1} parent=1 // pred_check_branch
      %18 = sbr.rel (0) target = $region5
    $region4: #{tpu_custom_call.1} parent=1 // pred_region
      %s20 = ssub.s32 128, 128
      %21 = vsyncadd [#allocation3], %s20
      %s23 = sshll.u32 [#allocation2], 4
      %s24 = int_to_ptr.vmem [resolvable:$true] %s23
      %26 = dma.hbm_to_vmem [thread:$0]  %s0, 128, %s24, [#allocation3]
    $region5: #{tpu_custom_call.1} parent=1 // pred_fallthru
      _
    // Predicated region
    $region6: #{tpu_custom_call.1} parent=1 // pred_check
      _
    $region7: #{tpu_custom_call.1} parent=1 // pred_check_branch
      %28 = sbr.rel (0) target = $region9
    $region8: #{tpu_custom_call.1} parent=1 // pred_region
      %s30 = ssub.s32 128, 128
      %31 = vsyncadd [#allocation6], %s30
      %s33 = sshll.u32 [#allocation5], 4
      %s34 = int_to_ptr.vmem [resolvable:$true] %s33
      %36 = dma.hbm_to_vmem [thread:$0]  %s1, 128, %s34, [#allocation6]
    $region9: #{tpu_custom_call.1} parent=1 // pred_fallthru
      _
    // Predicated region
    $region10: #{tpu_custom_call.1} parent=1 // pred_check
      _
    $region11: #{tpu_custom_call.1} parent=1 // pred_check_branch
      %38 = sbr.rel (0) target = $region13
    $region12: #{tpu_custom_call.1} parent=1 // pred_region
      %s40 = ssub.s32 128, 128
      %41 = vsyncadd [#allocation6], %s40
      %s43 = sshll.u32 [#allocation7], 4
      %s44 = int_to_ptr.vmem [resolvable:$true] %s43
      %46 = dma.hbm_to_vmem [thread:$0]  %s2, 128, %s44, [#allocation6]
    $region13: #{tpu_custom_call.1} parent=1 // pred_fallthru
      _
    // Predicated region
    $region14: #{tpu_custom_call.1} parent=1 // pred_check
      _
    $region15: #{tpu_custom_call.1} parent=1 // pred_check_branch
      %48 = sbr.rel (0) target = $region17
    $region16: #{tpu_custom_call.1} parent=1 // pred_region
      %s50 = ssub.s32 4096, 4096
      %51 = vsyncadd [#allocation9], %s50
      %s52 = sshll.u32 [#allocation8], 4
      %s53 = int_to_ptr.vmem [resolvable:$true] %s52
      %58 = dma.hbm_to_vmem [thread:$0]  %s3, 4096, %s53, [#allocation9], 256, 256, 16
    $region17: #{tpu_custom_call.1} parent=1 // pred_fallthru
      _
    // Predicated region
    $region18: #{tpu_custom_call.1} parent=1 // pred_check
      _
    $region19: #{tpu_custom_call.1} parent=1 // pred_check_branch
      %60 = sbr.rel (0) target = $region21
    $region20: #{tpu_custom_call.1} parent=1 // pred_region
      %s62 = ssub.s32 4096, 4096
      %63 = vsyncadd [#allocation9], %s62
      %s64 = sshll.u32 [#allocation10], 4
      %s65 = int_to_ptr.vmem [resolvable:$true] %s64
      %70 = dma.hbm_to_vmem [thread:$0]  %s4, 4096, %s65, [#allocation9], 256, 256, 16
    $region21: #{tpu_custom_call.1} parent=1 // pred_fallthru
      _
    // Predicated region
    $region22: #{tpu_custom_call.1} parent=1 // pred_check
      _
    $region23: #{tpu_custom_call.1} parent=1 // pred_check_branch
      %72 = sbr.rel (0) target = $region25
    $region24: #{tpu_custom_call.1} parent=1 // pred_region
      %73 = dma.done [#allocation3], 128
    $region25: #{tpu_custom_call.1} parent=1 // pred_fallthru
      _
    // Predicated region
    $region26: #{tpu_custom_call.1} parent=1 // pred_check
      _
    $region27: #{tpu_custom_call.1} parent=1 // pred_check_branch
      %75 = sbr.rel (0) target = $region29
    $region28: #{tpu_custom_call.1} parent=1 // pred_region
      %76 = dma.done [#allocation6], 128
    $region29: #{tpu_custom_call.1} parent=1 // pred_fallthru
      _
    // Predicated region
    $region30: #{tpu_custom_call.1} parent=1 // pred_check
      _
    $region31: #{tpu_custom_call.1} parent=1 // pred_check_branch
      %78 = sbr.rel (0) target = $region33
    $region32: #{tpu_custom_call.1} parent=1 // pred_region
      %79 = dma.done [#allocation6], 128
    $region33: #{tpu_custom_call.1} parent=1 // pred_fallthru
      _
    // Predicated region
    $region34: #{tpu_custom_call.1} parent=1 // pred_check
      _
    $region35: #{tpu_custom_call.1} parent=1 // pred_check_branch
      %81 = sbr.rel (0) target = $region37
    $region36: #{tpu_custom_call.1} parent=1 // pred_region
      %82 = dma.done [#allocation9], 4096
    $region37: #{tpu_custom_call.1} parent=1 // pred_fallthru
      _
    // Predicated region
    $region38: #{tpu_custom_call.1} parent=1 // pred_check
      _
    $region39: #{tpu_custom_call.1} parent=1 // pred_check_branch
      %84 = sbr.rel (0) target = $region41
    $region40: #{tpu_custom_call.1} parent=1 // pred_region
      %85 = dma.done [#allocation9], 4096
    $region41: #{tpu_custom_call.1} parent=1 // pred_fallthru
      _
    %v86 = vld [vmem:[#allocation7] sm:$0xff]
    %v87 = vld [vmem:[#allocation2] sm:$0xff]
    %v88 = vld [vmem:[#allocation5] sm:$0xff]
    %v89 = vld [vmem:[#allocation8] sm:$0xff]
    %v90 = vld [vmem:[#allocation8 + $0x8] sm:$0xff]
    %v91 = vld [vmem:[#allocation8 + $0x10] sm:$0xff]
    %v92 = vld [vmem:[#allocation8 + $0x18] sm:$0xff]
    %v93 = vld [vmem:[#allocation8 + $0x20] sm:$0xff]
    %v94 = vld [vmem:[#allocation8 + $0x28] sm:$0xff]
    %v95 = vld [vmem:[#allocation8 + $0x30] sm:$0xff]
    %v96 = vld [vmem:[#allocation8 + $0x38] sm:$0xff]
    %v97 = vld [vmem:[#allocation8 + $0x40] sm:$0xff]
    %v98 = vld [vmem:[#allocation8 + $0x48] sm:$0xff]
    %v99 = vld [vmem:[#allocation8 + $0x50] sm:$0xff]
    %v100 = vld [vmem:[#allocation8 + $0x58] sm:$0xff]
    %v101 = vld [vmem:[#allocation8 + $0x60] sm:$0xff]
    %v102 = vld [vmem:[#allocation8 + $0x68] sm:$0xff]
    %v103 = vld [vmem:[#allocation8 + $0x70] sm:$0xff]
    %v104 = vld [vmem:[#allocation8 + $0x78] sm:$0xff]
    %v105 = vld [vmem:[#allocation8 + $0x80] sm:$0xff]
    %v106 = vld [vmem:[#allocation8 + $0x88] sm:$0xff]
    %v107 = vld [vmem:[#allocation8 + $0x90] sm:$0xff]
    %v108 = vld [vmem:[#allocation8 + $0x98] sm:$0xff]
    %v109 = vld [vmem:[#allocation8 + $0xa0] sm:$0xff]
    %v110 = vld [vmem:[#allocation8 + $0xa8] sm:$0xff]
    %v111 = vld [vmem:[#allocation8 + $0xb0] sm:$0xff]
    %v112 = vld [vmem:[#allocation8 + $0xb8] sm:$0xff]
    %v113 = vld [vmem:[#allocation8 + $0xc0] sm:$0xff]
    %v114 = vld [vmem:[#allocation8 + $0xc8] sm:$0xff]
    %v115 = vld [vmem:[#allocation8 + $0xd0] sm:$0xff]
    %v116 = vld [vmem:[#allocation8 + $0xd8] sm:$0xff]
    %v117 = vld [vmem:[#allocation8 + $0xe0] sm:$0xff]
    %v118 = vld [vmem:[#allocation8 + $0xe8] sm:$0xff]
    %v119 = vld [vmem:[#allocation8 + $0xf0] sm:$0xff]
    %v120 = vld [vmem:[#allocation8 + $0xf8] sm:$0xff]
    %v121 = vld [vmem:[#allocation10] sm:$0xff]
    %v122 = vld [vmem:[#allocation10 + $0x8] sm:$0xff]
    %v123 = vld [vmem:[#allocation10 + $0x10] sm:$0xff]
    %v124 = vld [vmem:[#allocation10 + $0x18] sm:$0xff]
    %v125 = vld [vmem:[#allocation10 + $0x20] sm:$0xff]
    %v126 = vld [vmem:[#allocation10 + $0x28] sm:$0xff]
    %v127 = vld [vmem:[#allocation10 + $0x30] sm:$0xff]
    %v128 = vld [vmem:[#allocation10 + $0x38] sm:$0xff]
    %v129 = vld [vmem:[#allocation10 + $0x40] sm:$0xff]
    %v130 = vld [vmem:[#allocation10 + $0x48] sm:$0xff]
    %v131 = vld [vmem:[#allocation10 + $0x50] sm:$0xff]
    %v132 = vld [vmem:[#allocation10 + $0x58] sm:$0xff]
    %v133 = vld [vmem:[#allocation10 + $0x60] sm:$0xff]
    %v134 = vld [vmem:[#allocation10 + $0x68] sm:$0xff]
    %v135 = vld [vmem:[#allocation10 + $0x70] sm:$0xff]
    %v136 = vld [vmem:[#allocation10 + $0x78] sm:$0xff]
    %v137 = vld [vmem:[#allocation10 + $0x80] sm:$0xff]
    %v138 = vld [vmem:[#allocation10 + $0x88] sm:$0xff]
    %v139 = vld [vmem:[#allocation10 + $0x90] sm:$0xff]
    %v140 = vld [vmem:[#allocation10 + $0x98] sm:$0xff]
    %v141 = vld [vmem:[#allocation10 + $0xa0] sm:$0xff]
    %v142 = vld [vmem:[#allocation10 + $0xa8] sm:$0xff]
    %v143 = vld [vmem:[#allocation10 + $0xb0] sm:$0xff]
    %v144 = vld [vmem:[#allocation10 + $0xb8] sm:$0xff]
    %v145 = vld [vmem:[#allocation10 + $0xc0] sm:$0xff]
    %v146 = vld [vmem:[#allocation10 + $0xc8] sm:$0xff]
    %v147 = vld [vmem:[#allocation10 + $0xd0] sm:$0xff]
    %v148 = vld [vmem:[#allocation10 + $0xd8] sm:$0xff]
    %v149 = vld [vmem:[#allocation10 + $0xe0] sm:$0xff]
    %v150 = vld [vmem:[#allocation10 + $0xe8] sm:$0xff]
    %v151 = vld [vmem:[#allocation10 + $0xf0] sm:$0xff]
    %v152 = vld [vmem:[#allocation10 + $0xf8] sm:$0xff]
    %153 = vmatprep.subr.mxu0 %v122
    %154 = vmatpush1.msra.mxu0 %v121
    %155 = vmatprep.subr.mxu0 %v124
    %156 = vmatpush1.msra.mxu0 %v123
    %157 = vmatprep.subr.mxu0 %v126
    %158 = vmatpush1.msra.mxu0 %v125
    %159 = vmatprep.subr.mxu0 %v128
    %160 = vmatpush1.msra.mxu0 %v127
    %161 = vmatprep.subr.mxu0 %v130
    %162 = vmatpush1.msra.mxu0 %v129
    %163 = vmatprep.subr.mxu0 %v132
    %164 = vmatpush1.msra.mxu0 %v131
    %165 = vmatprep.subr.mxu0 %v134
    %166 = vmatpush1.msra.mxu0 %v133
    %167 = vmatprep.subr.mxu0 %v136
    %168 = vmatpush1.msra.mxu0 %v135
    %169 = vmatprep.subr.mxu0 %v138
    %170 = vmatpush1.msra.mxu0 %v137
    %171 = vmatprep.subr.mxu0 %v140
    %172 = vmatpush1.msra.mxu0 %v139
    %173 = vmatprep.subr.mxu0 %v142
    %174 = vmatpush1.msra.mxu0 %v141
    %175 = vmatprep.subr.mxu0 %v144
    %176 = vmatpush1.msra.mxu0 %v143
    %177 = vmatprep.subr.mxu0 %v146
    %178 = vmatpush1.msra.mxu0 %v145
    %179 = vmatprep.subr.mxu0 %v148
    %180 = vmatpush1.msra.mxu0 %v147
    %181 = vmatprep.subr.mxu0 %v150
    %182 = vmatpush1.msra.mxu0 %v149
    %183 = vmatprep.subr.mxu0 %v152
    %184 = vmatpush1.msra.mxu0 %v151
    %185 = vmatprep.subr.mxu0 0.0
    %186 = vmatpush1.msra.mxu0 0.0
    %187 = vmatprep.subr.mxu0 0.0
    %188 = vmatpush1.msra.mxu0 0.0
    %189 = vmatprep.subr.mxu0 0.0
    %190 = vmatpush1.msra.mxu0 0.0
    %191 = vmatprep.subr.mxu0 0.0
    %192 = vmatpush1.msra.mxu0 0.0
    %193 = vmatprep.subr.mxu0 0.0
    %194 = vmatpush1.msra.mxu0 0.0
    %195 = vmatprep.subr.mxu0 0.0
    %196 = vmatpush1.msra.mxu0 0.0
    %197 = vmatprep.subr.mxu0 0.0
    %198 = vmatpush1.msra.mxu0 0.0
    %199 = vmatprep.subr.mxu0 0.0
    %200 = vmatpush1.msra.mxu0 0.0
    %201 = vmatprep.subr.mxu0 0.0
    %202 = vmatpush1.msra.mxu0 0.0
    %203 = vmatprep.subr.mxu0 0.0
    %204 = vmatpush1.msra.mxu0 0.0
    %205 = vmatprep.subr.mxu0 0.0
    %206 = vmatpush1.msra.mxu0 0.0
    %207 = vmatprep.subr.mxu0 0.0
    %208 = vmatpush1.msra.mxu0 0.0
    %209 = vmatprep.subr.mxu0 0.0
    %210 = vmatpush1.msra.mxu0 0.0
    %211 = vmatprep.subr.mxu0 0.0
    %212 = vmatpush1.msra.mxu0 0.0
    %213 = vmatprep.subr.mxu0 0.0
    %214 = vmatpush1.msra.mxu0 0.0
    %215 = vmatprep.subr.mxu0 0.0
    %216 = vmatpush1.msra.mxu0 0.0
    %217 = vmatprep.mubr.f32.mxu0 0.0
    %218 = vmatmul.mubr.f32.gmra.mrb[0].mxu0 %v88
    %v219 = vpop.f32.mrb[0].mxu0
    %v220 = vadd.f32 0.0, %v219
    %v221 = vpop.f32.mrb[0].mxu0
    %v222 = vadd.f32 0.0, %v221
    %223 = vdwg.mxu0
    %224 = vmatprep.subr.mxu0 %v90
    %225 = vmatpush1.msra.mxu0 %v89
    %226 = vmatprep.subr.mxu0 %v92
    %227 = vmatpush1.msra.mxu0 %v91
    %228 = vmatprep.subr.mxu0 %v94
    %229 = vmatpush1.msra.mxu0 %v93
    %230 = vmatprep.subr.mxu0 %v96
    %231 = vmatpush1.msra.mxu0 %v95
    %232 = vmatprep.subr.mxu0 %v98
    %233 = vmatpush1.msra.mxu0 %v97
    %234 = vmatprep.subr.mxu0 %v100
    %235 = vmatpush1.msra.mxu0 %v99
    %236 = vmatprep.subr.mxu0 %v102
    %237 = vmatpush1.msra.mxu0 %v101
    %238 = vmatprep.subr.mxu0 %v104
    %239 = vmatpush1.msra.mxu0 %v103
    %240 = vmatprep.subr.mxu0 %v106
    %241 = vmatpush1.msra.mxu0 %v105
    %242 = vmatprep.subr.mxu0 %v108
    %243 = vmatpush1.msra.mxu0 %v107
    %244 = vmatprep.subr.mxu0 %v110
    %245 = vmatpush1.msra.mxu0 %v109
    %246 = vmatprep.subr.mxu0 %v112
    %247 = vmatpush1.msra.mxu0 %v111
    %248 = vmatprep.subr.mxu0 %v114
    %249 = vmatpush1.msra.mxu0 %v113
    %250 = vmatprep.subr.mxu0 %v116
    %251 = vmatpush1.msra.mxu0 %v115
    %252 = vmatprep.subr.mxu0 %v118
    %253 = vmatpush1.msra.mxu0 %v117
    %254 = vmatprep.subr.mxu0 %v120
    %255 = vmatpush1.msra.mxu0 %v119
    %256 = vmatprep.subr.mxu0 0.0
    %257 = vmatpush1.msra.mxu0 0.0
    %258 = vmatprep.subr.mxu0 0.0
    %259 = vmatpush1.msra.mxu0 0.0
    %260 = vmatprep.subr.mxu0 0.0
    %261 = vmatpush1.msra.mxu0 0.0
    %262 = vmatprep.subr.mxu0 0.0
    %263 = vmatpush1.msra.mxu0 0.0
    %264 = vmatprep.subr.mxu0 0.0
    %265 = vmatpush1.msra.mxu0 0.0
    %266 = vmatprep.subr.mxu0 0.0
    %267 = vmatpush1.msra.mxu0 0.0
    %268 = vmatprep.subr.mxu0 0.0
    %269 = vmatpush1.msra.mxu0 0.0
    %270 = vmatprep.subr.mxu0 0.0
    %271 = vmatpush1.msra.mxu0 0.0
    %272 = vmatprep.subr.mxu0 0.0
    %273 = vmatpush1.msra.mxu0 0.0
    %274 = vmatprep.subr.mxu0 0.0
    %275 = vmatpush1.msra.mxu0 0.0
    %276 = vmatprep.subr.mxu0 0.0
    %277 = vmatpush1.msra.mxu0 0.0
    %278 = vmatprep.subr.mxu0 0.0
    %279 = vmatpush1.msra.mxu0 0.0
    %280 = vmatprep.subr.mxu0 0.0
    %281 = vmatpush1.msra.mxu0 0.0
    %282 = vmatprep.subr.mxu0 0.0
    %283 = vmatpush1.msra.mxu0 0.0
    %284 = vmatprep.subr.mxu0 0.0
    %285 = vmatpush1.msra.mxu0 0.0
    %286 = vmatprep.subr.mxu0 0.0
    %287 = vmatpush1.msra.mxu0 0.0
    %288 = vmatprep.mubr.f32.mxu0 0.0
    %289 = vmatmul.mubr.f32.gmra.mrb[0].mxu0 %v87
    %v290 = vpop.f32.mrb[0].mxu0
    %v291 = vadd.f32 %v220, %v290
    %v292 = vpop.f32.mrb[0].mxu0
    %v293 = vadd.f32 %v222, %v292
    %294 = vdwg.mxu0
    %v295 = vmul.f32 %v291, %v291
    %v296 = vmul.f32 %v293, %v293
    %v297 = vadd.f32 %v295, %v296
    %v298 = vadd.f32 %v297, 1e-30
    %v299 = vrsqrt.pop %v298
    %v300 = vmul.f32 %v86, %v291
    %v301 = vmul.f32 %v300, %v299
    %v302 = vmul.f32 %v86, %v293
    %v303 = vmul.f32 %v302, %v299
    %304 = vmatprep.subr.mxu0 %v122
    %305 = vmatpush1.msra.mxu0 %v121
    %306 = vmatprep.subr.mxu0 %v124
    %307 = vmatpush1.msra.mxu0 %v123
    %308 = vmatprep.subr.mxu0 %v126
    %309 = vmatpush1.msra.mxu0 %v125
    %310 = vmatprep.subr.mxu0 %v128
    %311 = vmatpush1.msra.mxu0 %v127
    %312 = vmatprep.subr.mxu0 %v130
    %313 = vmatpush1.msra.mxu0 %v129
    %314 = vmatprep.subr.mxu0 %v132
    %315 = vmatpush1.msra.mxu0 %v131
    %316 = vmatprep.subr.mxu0 %v134
    %317 = vmatpush1.msra.mxu0 %v133
    %318 = vmatprep.subr.mxu0 %v136
    %319 = vmatpush1.msra.mxu0 %v135
    %320 = vmatprep.subr.mxu0 %v138
    %321 = vmatpush1.msra.mxu0 %v137
    %322 = vmatprep.subr.mxu0 %v140
    %323 = vmatpush1.msra.mxu0 %v139
    %324 = vmatprep.subr.mxu0 %v142
    %325 = vmatpush1.msra.mxu0 %v141
    %326 = vmatprep.subr.mxu0 %v144
    %327 = vmatpush1.msra.mxu0 %v143
    %328 = vmatprep.subr.mxu0 %v146
    %329 = vmatpush1.msra.mxu0 %v145
    %330 = vmatprep.subr.mxu0 %v148
    %331 = vmatpush1.msra.mxu0 %v147
    %332 = vmatprep.subr.mxu0 %v150
    %333 = vmatpush1.msra.mxu0 %v149
    %334 = vmatprep.subr.mxu0 %v152
    %335 = vmatpush1.msra.mxu0 %v151
    %336 = vmatprep.subr.mxu0 0.0
    %337 = vmatpush1.msra.mxu0 0.0
    %338 = vmatprep.subr.mxu0 0.0
    %339 = vmatpush1.msra.mxu0 0.0
    %340 = vmatprep.subr.mxu0 0.0
    %341 = vmatpush1.msra.mxu0 0.0
    %342 = vmatprep.subr.mxu0 0.0
    %343 = vmatpush1.msra.mxu0 0.0
    %344 = vmatprep.subr.mxu0 0.0
    %345 = vmatpush1.msra.mxu0 0.0
    %346 = vmatprep.subr.mxu0 0.0
    %347 = vmatpush1.msra.mxu0 0.0
    %348 = vmatprep.subr.mxu0 0.0
    %349 = vmatpush1.msra.mxu0 0.0
    %350 = vmatprep.subr.mxu0 0.0
    %351 = vmatpush1.msra.mxu0 0.0
    %352 = vmatprep.subr.mxu0 0.0
    %353 = vmatpush1.msra.mxu0 0.0
    %354 = vmatprep.subr.mxu0 0.0
    %355 = vmatpush1.msra.mxu0 0.0
    %356 = vmatprep.subr.mxu0 0.0
    %357 = vmatpush1.msra.mxu0 0.0
    %358 = vmatprep.subr.mxu0 0.0
    %359 = vmatpush1.msra.mxu0 0.0
    %360 = vmatprep.subr.mxu0 0.0
    %361 = vmatpush1.msra.mxu0 0.0
    %362 = vmatprep.subr.mxu0 0.0
    %363 = vmatpush1.msra.mxu0 0.0
    %364 = vmatprep.subr.mxu0 0.0
    %365 = vmatpush1.msra.mxu0 0.0
    %366 = vmatprep.subr.mxu0 0.0
    %367 = vmatpush1.msra.mxu0 0.0
    %368 = vmatprep.mubr.f32.mxu0 0.0
    %369 = vmatmul.mubr.f32.gmra.mrb[0].mxu0 %v303
    %v370 = vpop.f32.mrb[0].mxu0
    %v371 = vadd.f32 0.0, %v370
    %v372 = vpop.f32.mrb[0].mxu0
    %v373 = vadd.f32 0.0, %v372
    %374 = vdwg.mxu0
    %375 = vmatprep.subr.mxu0 %v90
    %376 = vmatpush1.msra.mxu0 %v89
    %377 = vmatprep.subr.mxu0 %v92
    %378 = vmatpush1.msra.mxu0 %v91
    %379 = vmatprep.subr.mxu0 %v94
    %380 = vmatpush1.msra.mxu0 %v93
    %381 = vmatprep.subr.mxu0 %v96
    %382 = vmatpush1.msra.mxu0 %v95
    %383 = vmatprep.subr.mxu0 %v98
    %384 = vmatpush1.msra.mxu0 %v97
    %385 = vmatprep.subr.mxu0 %v100
    %386 = vmatpush1.msra.mxu0 %v99
    %387 = vmatprep.subr.mxu0 %v102
    %388 = vmatpush1.msra.mxu0 %v101
    %389 = vmatprep.subr.mxu0 %v104
    %390 = vmatpush1.msra.mxu0 %v103
    %391 = vmatprep.subr.mxu0 %v106
    %392 = vmatpush1.msra.mxu0 %v105
    %393 = vmatprep.subr.mxu0 %v108
    %394 = vmatpush1.msra.mxu0 %v107
    %395 = vmatprep.subr.mxu0 %v110
    %396 = vmatpush1.msra.mxu0 %v109
    %397 = vmatprep.subr.mxu0 %v112
    %398 = vmatpush1.msra.mxu0 %v111
    %399 = vmatprep.subr.mxu0 %v114
    %400 = vmatpush1.msra.mxu0 %v113
    %401 = vmatprep.subr.mxu0 %v116
    %402 = vmatpush1.msra.mxu0 %v115
    %403 = vmatprep.subr.mxu0 %v118
    %404 = vmatpush1.msra.mxu0 %v117
    %405 = vmatprep.subr.mxu0 %v120
    %406 = vmatpush1.msra.mxu0 %v119
    %407 = vmatprep.subr.mxu0 0.0
    %408 = vmatpush1.msra.mxu0 0.0
    %409 = vmatprep.subr.mxu0 0.0
    %410 = vmatpush1.msra.mxu0 0.0
    %411 = vmatprep.subr.mxu0 0.0
    %412 = vmatpush1.msra.mxu0 0.0
    %413 = vmatprep.subr.mxu0 0.0
    %414 = vmatpush1.msra.mxu0 0.0
    %415 = vmatprep.subr.mxu0 0.0
    %416 = vmatpush1.msra.mxu0 0.0
    %417 = vmatprep.subr.mxu0 0.0
    %418 = vmatpush1.msra.mxu0 0.0
    %419 = vmatprep.subr.mxu0 0.0
    %420 = vmatpush1.msra.mxu0 0.0
    %421 = vmatprep.subr.mxu0 0.0
    %422 = vmatpush1.msra.mxu0 0.0
    %423 = vmatprep.subr.mxu0 0.0
    %424 = vmatpush1.msra.mxu0 0.0
    %425 = vmatprep.subr.mxu0 0.0
    %426 = vmatpush1.msra.mxu0 0.0
    %427 = vmatprep.subr.mxu0 0.0
    %428 = vmatpush1.msra.mxu0 0.0
    %429 = vmatprep.subr.mxu0 0.0
    %430 = vmatpush1.msra.mxu0 0.0
    %431 = vmatprep.subr.mxu0 0.0
    %432 = vmatpush1.msra.mxu0 0.0
    %433 = vmatprep.subr.mxu0 0.0
    %434 = vmatpush1.msra.mxu0 0.0
    %435 = vmatprep.subr.mxu0 0.0
    %436 = vmatpush1.msra.mxu0 0.0
    %437 = vmatprep.subr.mxu0 0.0
    %438 = vmatpush1.msra.mxu0 0.0
    %439 = vmatprep.mubr.f32.mxu0 0.0
    %440 = vmatmul.mubr.f32.gmra.mrb[0].mxu0 %v301
    %v441 = vpop.f32.mrb[0].mxu0
    %v442 = vadd.f32 %v371, %v441
    %v443 = vpop.f32.mrb[0].mxu0
    %v444 = vadd.f32 %v373, %v443
    %445 = vdwg.mxu0
    %v446 = vmul.f32 %v442, %v442
    %v447 = vmul.f32 %v444, %v444
    %v448 = vadd.f32 %v446, %v447
    %v449 = vadd.f32 %v448, 1e-30
    %v450 = vrsqrt.pop %v449
    %v451 = vmul.f32 %v86, %v442
    %v452 = vmul.f32 %v451, %v450
    %v453 = vmul.f32 %v86, %v444
    %v454 = vmul.f32 %v453, %v450
    %455 = vmatprep.subr.mxu0 %v122
    %456 = vmatpush1.msra.mxu0 %v121
    %457 = vmatprep.subr.mxu0 %v124
    %458 = vmatpush1.msra.mxu0 %v123
    %459 = vmatprep.subr.mxu0 %v126
    %460 = vmatpush1.msra.mxu0 %v125
    %461 = vmatprep.subr.mxu0 %v128
    %462 = vmatpush1.msra.mxu0 %v127
    %463 = vmatprep.subr.mxu0 %v130
    %464 = vmatpush1.msra.mxu0 %v129
    %465 = vmatprep.subr.mxu0 %v132
    %466 = vmatpush1.msra.mxu0 %v131
    %467 = vmatprep.subr.mxu0 %v134
    %468 = vmatpush1.msra.mxu0 %v133
    %469 = vmatprep.subr.mxu0 %v136
    %470 = vmatpush1.msra.mxu0 %v135
    %471 = vmatprep.subr.mxu0 %v138
    %472 = vmatpush1.msra.mxu0 %v137
    %473 = vmatprep.subr.mxu0 %v140
    %474 = vmatpush1.msra.mxu0 %v139
    %475 = vmatprep.subr.mxu0 %v142
    %476 = vmatpush1.msra.mxu0 %v141
    %477 = vmatprep.subr.mxu0 %v144
    %478 = vmatpush1.msra.mxu0 %v143
    %479 = vmatprep.subr.mxu0 %v146
    %480 = vmatpush1.msra.mxu0 %v145
    %481 = vmatprep.subr.mxu0 %v148
    %482 = vmatpush1.msra.mxu0 %v147
    %483 = vmatprep.subr.mxu0 %v150
    %484 = vmatpush1.msra.mxu0 %v149
    %485 = vmatprep.subr.mxu0 %v152
    %486 = vmatpush1.msra.mxu0 %v151
    %487 = vmatprep.subr.mxu0 0.0
    %488 = vmatpush1.msra.mxu0 0.0
    %489 = vmatprep.subr.mxu0 0.0
    %490 = vmatpush1.msra.mxu0 0.0
    %491 = vmatprep.subr.mxu0 0.0
    %492 = vmatpush1.msra.mxu0 0.0
    %493 = vmatprep.subr.mxu0 0.0
    %494 = vmatpush1.msra.mxu0 0.0
    %495 = vmatprep.subr.mxu0 0.0
    %496 = vmatpush1.msra.mxu0 0.0
    %497 = vmatprep.subr.mxu0 0.0
    %498 = vmatpush1.msra.mxu0 0.0
    %499 = vmatprep.subr.mxu0 0.0
    %500 = vmatpush1.msra.mxu0 0.0
    %501 = vmatprep.subr.mxu0 0.0
    %502 = vmatpush1.msra.mxu0 0.0
    %503 = vmatprep.subr.mxu0 0.0
    %504 = vmatpush1.msra.mxu0 0.0
    %505 = vmatprep.subr.mxu0 0.0
    %506 = vmatpush1.msra.mxu0 0.0
    %507 = vmatprep.subr.mxu0 0.0
    %508 = vmatpush1.msra.mxu0 0.0
    %509 = vmatprep.subr.mxu0 0.0
    %510 = vmatpush1.msra.mxu0 0.0
    %511 = vmatprep.subr.mxu0 0.0
    %512 = vmatpush1.msra.mxu0 0.0
    %513 = vmatprep.subr.mxu0 0.0
    %514 = vmatpush1.msra.mxu0 0.0
    %515 = vmatprep.subr.mxu0 0.0
    %516 = vmatpush1.msra.mxu0 0.0
    %517 = vmatprep.subr.mxu0 0.0
    %518 = vmatpush1.msra.mxu0 0.0
    %519 = vmatprep.mubr.f32.mxu0 0.0
    %520 = vmatmul.mubr.f32.gmra.mrb[0].mxu0 %v454
    %v521 = vpop.f32.mrb[0].mxu0
    %v522 = vadd.f32 0.0, %v521
    %v523 = vpop.f32.mrb[0].mxu0
    %v524 = vadd.f32 0.0, %v523
    %525 = vdwg.mxu0
    %526 = vmatprep.subr.mxu0 %v90
    %527 = vmatpush1.msra.mxu0 %v89
    %528 = vmatprep.subr.mxu0 %v92
    %529 = vmatpush1.msra.mxu0 %v91
    %530 = vmatprep.subr.mxu0 %v94
    %531 = vmatpush1.msra.mxu0 %v93
    %532 = vmatprep.subr.mxu0 %v96
    %533 = vmatpush1.msra.mxu0 %v95
    %534 = vmatprep.subr.mxu0 %v98
    %535 = vmatpush1.msra.mxu0 %v97
    %536 = vmatprep.subr.mxu0 %v100
    %537 = vmatpush1.msra.mxu0 %v99
    %538 = vmatprep.subr.mxu0 %v102
    %539 = vmatpush1.msra.mxu0 %v101
    %540 = vmatprep.subr.mxu0 %v104
    %541 = vmatpush1.msra.mxu0 %v103
    %542 = vmatprep.subr.mxu0 %v106
    %543 = vmatpush1.msra.mxu0 %v105
    %544 = vmatprep.subr.mxu0 %v108
    %545 = vmatpush1.msra.mxu0 %v107
    %546 = vmatprep.subr.mxu0 %v110
    %547 = vmatpush1.msra.mxu0 %v109
    %548 = vmatprep.subr.mxu0 %v112
    %549 = vmatpush1.msra.mxu0 %v111
    %550 = vmatprep.subr.mxu0 %v114
    %551 = vmatpush1.msra.mxu0 %v113
    %552 = vmatprep.subr.mxu0 %v116
    %553 = vmatpush1.msra.mxu0 %v115
    %554 = vmatprep.subr.mxu0 %v118
    %555 = vmatpush1.msra.mxu0 %v117
    %556 = vmatprep.subr.mxu0 %v120
    %557 = vmatpush1.msra.mxu0 %v119
    %558 = vmatprep.subr.mxu0 0.0
    %559 = vmatpush1.msra.mxu0 0.0
    %560 = vmatprep.subr.mxu0 0.0
    %561 = vmatpush1.msra.mxu0 0.0
    %562 = vmatprep.subr.mxu0 0.0
    %563 = vmatpush1.msra.mxu0 0.0
    %564 = vmatprep.subr.mxu0 0.0
    %565 = vmatpush1.msra.mxu0 0.0
    %566 = vmatprep.subr.mxu0 0.0
    %567 = vmatpush1.msra.mxu0 0.0
    %568 = vmatprep.subr.mxu0 0.0
    %569 = vmatpush1.msra.mxu0 0.0
    %570 = vmatprep.subr.mxu0 0.0
    %571 = vmatpush1.msra.mxu0 0.0
    %572 = vmatprep.subr.mxu0 0.0
    %573 = vmatpush1.msra.mxu0 0.0
    %574 = vmatprep.subr.mxu0 0.0
    %575 = vmatpush1.msra.mxu0 0.0
    %576 = vmatprep.subr.mxu0 0.0
    %577 = vmatpush1.msra.mxu0 0.0
    %578 = vmatprep.subr.mxu0 0.0
    %579 = vmatpush1.msra.mxu0 0.0
    %580 = vmatprep.subr.mxu0 0.0
    %581 = vmatpush1.msra.mxu0 0.0
    %582 = vmatprep.subr.mxu0 0.0
    %583 = vmatpush1.msra.mxu0 0.0
    %584 = vmatprep.subr.mxu0 0.0
    %585 = vmatpush1.msra.mxu0 0.0
    %586 = vmatprep.subr.mxu0 0.0
    %587 = vmatpush1.msra.mxu0 0.0
    %588 = vmatprep.subr.mxu0 0.0
    %589 = vmatpush1.msra.mxu0 0.0
    %590 = vmatprep.mubr.f32.mxu0 0.0
    %591 = vmatmul.mubr.f32.gmra.mrb[0].mxu0 %v452
    %v592 = vpop.f32.mrb[0].mxu0
    %v593 = vadd.f32 %v522, %v592
    %v594 = vpop.f32.mrb[0].mxu0
    %v595 = vadd.f32 %v524, %v594
    %596 = vdwg.mxu0
    %v597 = vmul.f32 %v593, %v593
    %v598 = vmul.f32 %v595, %v595
    %v599 = vadd.f32 %v597, %v598
    %v600 = vadd.f32 %v599, 1e-30
    %v601 = vrsqrt.pop %v600
    %v602 = vmul.f32 %v86, %v593
    %v603 = vmul.f32 %v602, %v601
    %v604 = vmul.f32 %v86, %v595
    %v605 = vmul.f32 %v604, %v601
    %606 = vmatprep.subr.mxu0 %v122
    %607 = vmatpush1.msra.mxu0 %v121
    %608 = vmatprep.subr.mxu0 %v124
    %609 = vmatpush1.msra.mxu0 %v123
    %610 = vmatprep.subr.mxu0 %v126
    %611 = vmatpush1.msra.mxu0 %v125
    %612 = vmatprep.subr.mxu0 %v128
    %613 = vmatpush1.msra.mxu0 %v127
    %614 = vmatprep.subr.mxu0 %v130
    %615 = vmatpush1.msra.mxu0 %v129
    %616 = vmatprep.subr.mxu0 %v132
    %617 = vmatpush1.msra.mxu0 %v131
    %618 = vmatprep.subr.mxu0 %v134
    %619 = vmatpush1.msra.mxu0 %v133
    %620 = vmatprep.subr.mxu0 %v136
    %621 = vmatpush1.msra.mxu0 %v135
    %622 = vmatprep.subr.mxu0 %v138
    %623 = vmatpush1.msra.mxu0 %v137
    %624 = vmatprep.subr.mxu0 %v140
    %625 = vmatpush1.msra.mxu0 %v139
    %626 = vmatprep.subr.mxu0 %v142
    %627 = vmatpush1.msra.mxu0 %v141
    %628 = vmatprep.subr.mxu0 %v144
    %629 = vmatpush1.msra.mxu0 %v143
    %630 = vmatprep.subr.mxu0 %v146
    %631 = vmatpush1.msra.mxu0 %v145
    %632 = vmatprep.subr.mxu0 %v148
    %633 = vmatpush1.msra.mxu0 %v147
    %634 = vmatprep.subr.mxu0 %v150
    %635 = vmatpush1.msra.mxu0 %v149
    %636 = vmatprep.subr.mxu0 %v152
    %637 = vmatpush1.msra.mxu0 %v151
    %638 = vmatprep.subr.mxu0 0.0
    %639 = vmatpush1.msra.mxu0 0.0
    %640 = vmatprep.subr.mxu0 0.0
    %641 = vmatpush1.msra.mxu0 0.0
    %642 = vmatprep.subr.mxu0 0.0
    %643 = vmatpush1.msra.mxu0 0.0
    %644 = vmatprep.subr.mxu0 0.0
    %645 = vmatpush1.msra.mxu0 0.0
    %646 = vmatprep.subr.mxu0 0.0
    %647 = vmatpush1.msra.mxu0 0.0
    %648 = vmatprep.subr.mxu0 0.0
    %649 = vmatpush1.msra.mxu0 0.0
    %650 = vmatprep.subr.mxu0 0.0
    %651 = vmatpush1.msra.mxu0 0.0
    %652 = vmatprep.subr.mxu0 0.0
    %653 = vmatpush1.msra.mxu0 0.0
    %654 = vmatprep.subr.mxu0 0.0
    %655 = vmatpush1.msra.mxu0 0.0
    %656 = vmatprep.subr.mxu0 0.0
    %657 = vmatpush1.msra.mxu0 0.0
    %658 = vmatprep.subr.mxu0 0.0
    %659 = vmatpush1.msra.mxu0 0.0
    %660 = vmatprep.subr.mxu0 0.0
    %661 = vmatpush1.msra.mxu0 0.0
    %662 = vmatprep.subr.mxu0 0.0
    %663 = vmatpush1.msra.mxu0 0.0
    %664 = vmatprep.subr.mxu0 0.0
    %665 = vmatpush1.msra.mxu0 0.0
    %666 = vmatprep.subr.mxu0 0.0
    %667 = vmatpush1.msra.mxu0 0.0
    %668 = vmatprep.subr.mxu0 0.0
    %669 = vmatpush1.msra.mxu0 0.0
    %670 = vmatprep.mubr.f32.mxu0 0.0
    %671 = vmatmul.mubr.f32.gmra.mrb[0].mxu0 %v605
    %v672 = vpop.f32.mrb[0].mxu0
    %v673 = vadd.f32 0.0, %v672
    %v674 = vpop.f32.mrb[0].mxu0
    %v675 = vadd.f32 0.0, %v674
    %676 = vdwg.mxu0
    %677 = vmatprep.subr.mxu0 %v90
    %678 = vmatpush1.msra.mxu0 %v89
    %679 = vmatprep.subr.mxu0 %v92
    %680 = vmatpush1.msra.mxu0 %v91
    %681 = vmatprep.subr.mxu0 %v94
    %682 = vmatpush1.msra.mxu0 %v93
    %683 = vmatprep.subr.mxu0 %v96
    %684 = vmatpush1.msra.mxu0 %v95
    %685 = vmatprep.subr.mxu0 %v98
    %686 = vmatpush1.msra.mxu0 %v97
    %687 = vmatprep.subr.mxu0 %v100
    %688 = vmatpush1.msra.mxu0 %v99
    %689 = vmatprep.subr.mxu0 %v102
    %690 = vmatpush1.msra.mxu0 %v101
    %691 = vmatprep.subr.mxu0 %v104
    %692 = vmatpush1.msra.mxu0 %v103
    %693 = vmatprep.subr.mxu0 %v106
    %694 = vmatpush1.msra.mxu0 %v105
    %695 = vmatprep.subr.mxu0 %v108
    %696 = vmatpush1.msra.mxu0 %v107
    %697 = vmatprep.subr.mxu0 %v110
    %698 = vmatpush1.msra.mxu0 %v109
    %699 = vmatprep.subr.mxu0 %v112
    %700 = vmatpush1.msra.mxu0 %v111
    %701 = vmatprep.subr.mxu0 %v114
    %702 = vmatpush1.msra.mxu0 %v113
    %703 = vmatprep.subr.mxu0 %v116
    %704 = vmatpush1.msra.mxu0 %v115
    %705 = vmatprep.subr.mxu0 %v118
    %706 = vmatpush1.msra.mxu0 %v117
    %707 = vmatprep.subr.mxu0 %v120
    %708 = vmatpush1.msra.mxu0 %v119
    %709 = vmatprep.subr.mxu0 0.0
    %710 = vmatpush1.msra.mxu0 0.0
    %711 = vmatprep.subr.mxu0 0.0
    %712 = vmatpush1.msra.mxu0 0.0
    %713 = vmatprep.subr.mxu0 0.0
    %714 = vmatpush1.msra.mxu0 0.0
    %715 = vmatprep.subr.mxu0 0.0
    %716 = vmatpush1.msra.mxu0 0.0
    %717 = vmatprep.subr.mxu0 0.0
    %718 = vmatpush1.msra.mxu0 0.0
    %719 = vmatprep.subr.mxu0 0.0
    %720 = vmatpush1.msra.mxu0 0.0
    %721 = vmatprep.subr.mxu0 0.0
    %722 = vmatpush1.msra.mxu0 0.0
    %723 = vmatprep.subr.mxu0 0.0
    %724 = vmatpush1.msra.mxu0 0.0
    %725 = vmatprep.subr.mxu0 0.0
    %726 = vmatpush1.msra.mxu0 0.0
    %727 = vmatprep.subr.mxu0 0.0
    %728 = vmatpush1.msra.mxu0 0.0
    %729 = vmatprep.subr.mxu0 0.0
    %730 = vmatpush1.msra.mxu0 0.0
    %731 = vmatprep.subr.mxu0 0.0
    %732 = vmatpush1.msra.mxu0 0.0
    %733 = vmatprep.subr.mxu0 0.0
    %734 = vmatpush1.msra.mxu0 0.0
    %735 = vmatprep.subr.mxu0 0.0
    %736 = vmatpush1.msra.mxu0 0.0
    %737 = vmatprep.subr.mxu0 0.0
    %738 = vmatpush1.msra.mxu0 0.0
    %739 = vmatprep.subr.mxu0 0.0
    %740 = vmatpush1.msra.mxu0 0.0
    %741 = vmatprep.mubr.f32.mxu0 0.0
    %742 = vmatmul.mubr.f32.gmra.mrb[0].mxu0 %v603
    %v743 = vpop.f32.mrb[0].mxu0
    %v744 = vadd.f32 %v673, %v743
    %v745 = vpop.f32.mrb[0].mxu0
    %v746 = vadd.f32 %v675, %v745
    %747 = vdwg.mxu0
    %v748 = vmul.f32 %v744, %v744
    %v749 = vmul.f32 %v746, %v746
    %v750 = vadd.f32 %v748, %v749
    %v751 = vadd.f32 %v750, 1e-30
    %v752 = vrsqrt.pop %v751
    %v753 = vmul.f32 %v86, %v744
    %v754 = vmul.f32 %v753, %v752
    %v755 = vmul.f32 %v86, %v746
    %v756 = vmul.f32 %v755, %v752
    %757 = vmatprep.subr.mxu0 %v122
    %758 = vmatpush1.msra.mxu0 %v121
    %759 = vmatprep.subr.mxu0 %v124
    %760 = vmatpush1.msra.mxu0 %v123
    %761 = vmatprep.subr.mxu0 %v126
    %762 = vmatpush1.msra.mxu0 %v125
    %763 = vmatprep.subr.mxu0 %v128
    %764 = vmatpush1.msra.mxu0 %v127
    %765 = vmatprep.subr.mxu0 %v130
    %766 = vmatpush1.msra.mxu0 %v129
    %767 = vmatprep.subr.mxu0 %v132
    %768 = vmatpush1.msra.mxu0 %v131
    %769 = vmatprep.subr.mxu0 %v134
    %770 = vmatpush1.msra.mxu0 %v133
    %771 = vmatprep.subr.mxu0 %v136
    %772 = vmatpush1.msra.mxu0 %v135
    %773 = vmatprep.subr.mxu0 %v138
    %774 = vmatpush1.msra.mxu0 %v137
    %775 = vmatprep.subr.mxu0 %v140
    %776 = vmatpush1.msra.mxu0 %v139
    %777 = vmatprep.subr.mxu0 %v142
    %778 = vmatpush1.msra.mxu0 %v141
    %779 = vmatprep.subr.mxu0 %v144
    %780 = vmatpush1.msra.mxu0 %v143
    %781 = vmatprep.subr.mxu0 %v146
    %782 = vmatpush1.msra.mxu0 %v145
    %783 = vmatprep.subr.mxu0 %v148
    %784 = vmatpush1.msra.mxu0 %v147
    %785 = vmatprep.subr.mxu0 %v150
    %786 = vmatpush1.msra.mxu0 %v149
    %787 = vmatprep.subr.mxu0 %v152
    %788 = vmatpush1.msra.mxu0 %v151
    %789 = vmatprep.subr.mxu0 0.0
    %790 = vmatpush1.msra.mxu0 0.0
    %791 = vmatprep.subr.mxu0 0.0
    %792 = vmatpush1.msra.mxu0 0.0
    %793 = vmatprep.subr.mxu0 0.0
    %794 = vmatpush1.msra.mxu0 0.0
    %795 = vmatprep.subr.mxu0 0.0
    %796 = vmatpush1.msra.mxu0 0.0
    %797 = vmatprep.subr.mxu0 0.0
    %798 = vmatpush1.msra.mxu0 0.0
    %799 = vmatprep.subr.mxu0 0.0
    %800 = vmatpush1.msra.mxu0 0.0
    %801 = vmatprep.subr.mxu0 0.0
    %802 = vmatpush1.msra.mxu0 0.0
    %803 = vmatprep.subr.mxu0 0.0
    %804 = vmatpush1.msra.mxu0 0.0
    %805 = vmatprep.subr.mxu0 0.0
    %806 = vmatpush1.msra.mxu0 0.0
    %807 = vmatprep.subr.mxu0 0.0
    %808 = vmatpush1.msra.mxu0 0.0
    %809 = vmatprep.subr.mxu0 0.0
    %810 = vmatpush1.msra.mxu0 0.0
    %811 = vmatprep.subr.mxu0 0.0
    %812 = vmatpush1.msra.mxu0 0.0
    %813 = vmatprep.subr.mxu0 0.0
    %814 = vmatpush1.msra.mxu0 0.0
    %815 = vmatprep.subr.mxu0 0.0
    %816 = vmatpush1.msra.mxu0 0.0
    %817 = vmatprep.subr.mxu0 0.0
    %818 = vmatpush1.msra.mxu0 0.0
    %819 = vmatprep.subr.mxu0 0.0
    %820 = vmatpush1.msra.mxu0 0.0
    %821 = vmatprep.mubr.f32.mxu0 0.0
    %822 = vmatmul.mubr.f32.gmra.mrb[0].mxu0 %v756
    %v823 = vpop.f32.mrb[0].mxu0
    %v824 = vadd.f32 0.0, %v823
    %v825 = vpop.f32.mrb[0].mxu0
    %v826 = vadd.f32 0.0, %v825
    %827 = vdwg.mxu0
    %828 = vmatprep.subr.mxu0 %v90
    %829 = vmatpush1.msra.mxu0 %v89
    %830 = vmatprep.subr.mxu0 %v92
    %831 = vmatpush1.msra.mxu0 %v91
    %832 = vmatprep.subr.mxu0 %v94
    %833 = vmatpush1.msra.mxu0 %v93
    %834 = vmatprep.subr.mxu0 %v96
    %835 = vmatpush1.msra.mxu0 %v95
    %836 = vmatprep.subr.mxu0 %v98
    %837 = vmatpush1.msra.mxu0 %v97
    %838 = vmatprep.subr.mxu0 %v100
    %839 = vmatpush1.msra.mxu0 %v99
    %840 = vmatprep.subr.mxu0 %v102
    %841 = vmatpush1.msra.mxu0 %v101
    %842 = vmatprep.subr.mxu0 %v104
    %843 = vmatpush1.msra.mxu0 %v103
    %844 = vmatprep.subr.mxu0 %v106
    %845 = vmatpush1.msra.mxu0 %v105
    %846 = vmatprep.subr.mxu0 %v108
    %847 = vmatpush1.msra.mxu0 %v107
    %848 = vmatprep.subr.mxu0 %v110
    %849 = vmatpush1.msra.mxu0 %v109
    %850 = vmatprep.subr.mxu0 %v112
    %851 = vmatpush1.msra.mxu0 %v111
    %852 = vmatprep.subr.mxu0 %v114
    %853 = vmatpush1.msra.mxu0 %v113
    %854 = vmatprep.subr.mxu0 %v116
    %855 = vmatpush1.msra.mxu0 %v115
    %856 = vmatprep.subr.mxu0 %v118
    %857 = vmatpush1.msra.mxu0 %v117
    %858 = vmatprep.subr.mxu0 %v120
    %859 = vmatpush1.msra.mxu0 %v119
    %860 = vmatprep.subr.mxu0 0.0
    %861 = vmatpush1.msra.mxu0 0.0
    %862 = vmatprep.subr.mxu0 0.0
    %863 = vmatpush1.msra.mxu0 0.0
    %864 = vmatprep.subr.mxu0 0.0
    %865 = vmatpush1.msra.mxu0 0.0
    %866 = vmatprep.subr.mxu0 0.0
    %867 = vmatpush1.msra.mxu0 0.0
    %868 = vmatprep.subr.mxu0 0.0
    %869 = vmatpush1.msra.mxu0 0.0
    %870 = vmatprep.subr.mxu0 0.0
    %871 = vmatpush1.msra.mxu0 0.0
    %872 = vmatprep.subr.mxu0 0.0
    %873 = vmatpush1.msra.mxu0 0.0
    %874 = vmatprep.subr.mxu0 0.0
    %875 = vmatpush1.msra.mxu0 0.0
    %876 = vmatprep.subr.mxu0 0.0
    %877 = vmatpush1.msra.mxu0 0.0
    %878 = vmatprep.subr.mxu0 0.0
    %879 = vmatpush1.msra.mxu0 0.0
    %880 = vmatprep.subr.mxu0 0.0
    %881 = vmatpush1.msra.mxu0 0.0
    %882 = vmatprep.subr.mxu0 0.0
    %883 = vmatpush1.msra.mxu0 0.0
    %884 = vmatprep.subr.mxu0 0.0
    %885 = vmatpush1.msra.mxu0 0.0
    %886 = vmatprep.subr.mxu0 0.0
    %887 = vmatpush1.msra.mxu0 0.0
    %888 = vmatprep.subr.mxu0 0.0
    %889 = vmatpush1.msra.mxu0 0.0
    %890 = vmatprep.subr.mxu0 0.0
    %891 = vmatpush1.msra.mxu0 0.0
    %892 = vmatprep.mubr.f32.mxu0 0.0
    %893 = vmatmul.mubr.f32.gmra.mrb[0].mxu0 %v754
    %v894 = vpop.f32.mrb[0].mxu0
    %v895 = vadd.f32 %v824, %v894
    %v896 = vpop.f32.mrb[0].mxu0
    %v897 = vadd.f32 %v826, %v896
    %898 = vdwg.mxu0
    %v899 = vmul.f32 %v895, %v895
    %v900 = vmul.f32 %v897, %v897
    %v901 = vadd.f32 %v899, %v900
    %v902 = vadd.f32 %v901, 1e-30
    %v903 = vrsqrt.pop %v902
    %v904 = vmul.f32 %v86, %v895
    %v905 = vmul.f32 %v904, %v903
    %v906 = vmul.f32 %v86, %v897
    %v907 = vmul.f32 %v906, %v903
    %908 = vmatprep.subr.mxu0 %v122
    %909 = vmatpush1.msra.mxu0 %v121
    %910 = vmatprep.subr.mxu0 %v124
    %911 = vmatpush1.msra.mxu0 %v123
    %912 = vmatprep.subr.mxu0 %v126
    %913 = vmatpush1.msra.mxu0 %v125
    %914 = vmatprep.subr.mxu0 %v128
    %915 = vmatpush1.msra.mxu0 %v127
    %916 = vmatprep.subr.mxu0 %v130
    %917 = vmatpush1.msra.mxu0 %v129
    %918 = vmatprep.subr.mxu0 %v132
    %919 = vmatpush1.msra.mxu0 %v131
    %920 = vmatprep.subr.mxu0 %v134
    %921 = vmatpush1.msra.mxu0 %v133
    %922 = vmatprep.subr.mxu0 %v136
    %923 = vmatpush1.msra.mxu0 %v135
    %924 = vmatprep.subr.mxu0 %v138
    %925 = vmatpush1.msra.mxu0 %v137
    %926 = vmatprep.subr.mxu0 %v140
    %927 = vmatpush1.msra.mxu0 %v139
    %928 = vmatprep.subr.mxu0 %v142
    %929 = vmatpush1.msra.mxu0 %v141
    %930 = vmatprep.subr.mxu0 %v144
    %931 = vmatpush1.msra.mxu0 %v143
    %932 = vmatprep.subr.mxu0 %v146
    %933 = vmatpush1.msra.mxu0 %v145
    %934 = vmatprep.subr.mxu0 %v148
    %935 = vmatpush1.msra.mxu0 %v147
    %936 = vmatprep.subr.mxu0 %v150
    %937 = vmatpush1.msra.mxu0 %v149
    %938 = vmatprep.subr.mxu0 %v152
    %939 = vmatpush1.msra.mxu0 %v151
    %940 = vmatprep.subr.mxu0 0.0
    %941 = vmatpush1.msra.mxu0 0.0
    %942 = vmatprep.subr.mxu0 0.0
    %943 = vmatpush1.msra.mxu0 0.0
    %944 = vmatprep.subr.mxu0 0.0
    %945 = vmatpush1.msra.mxu0 0.0
    %946 = vmatprep.subr.mxu0 0.0
    %947 = vmatpush1.msra.mxu0 0.0
    %948 = vmatprep.subr.mxu0 0.0
    %949 = vmatpush1.msra.mxu0 0.0
    %950 = vmatprep.subr.mxu0 0.0
    %951 = vmatpush1.msra.mxu0 0.0
    %952 = vmatprep.subr.mxu0 0.0
    %953 = vmatpush1.msra.mxu0 0.0
    %954 = vmatprep.subr.mxu0 0.0
    %955 = vmatpush1.msra.mxu0 0.0
    %956 = vmatprep.subr.mxu0 0.0
    %957 = vmatpush1.msra.mxu0 0.0
    %958 = vmatprep.subr.mxu0 0.0
    %959 = vmatpush1.msra.mxu0 0.0
    %960 = vmatprep.subr.mxu0 0.0
    %961 = vmatpush1.msra.mxu0 0.0
    %962 = vmatprep.subr.mxu0 0.0
    %963 = vmatpush1.msra.mxu0 0.0
    %964 = vmatprep.subr.mxu0 0.0
    %965 = vmatpush1.msra.mxu0 0.0
    %966 = vmatprep.subr.mxu0 0.0
    %967 = vmatpush1.msra.mxu0 0.0
    %968 = vmatprep.subr.mxu0 0.0
    %969 = vmatpush1.msra.mxu0 0.0
    %970 = vmatprep.subr.mxu0 0.0
    %971 = vmatpush1.msra.mxu0 0.0
    %972 = vmatprep.mubr.f32.mxu0 0.0
    %973 = vmatmul.mubr.f32.gmra.mrb[0].mxu0 %v907
    %v974 = vpop.f32.mrb[0].mxu0
    %v975 = vadd.f32 0.0, %v974
    %v976 = vpop.f32.mrb[0].mxu0
    %v977 = vadd.f32 0.0, %v976
    %978 = vdwg.mxu0
    %979 = vmatprep.subr.mxu0 %v90
    %980 = vmatpush1.msra.mxu0 %v89
    %981 = vmatprep.subr.mxu0 %v92
    %982 = vmatpush1.msra.mxu0 %v91
    %983 = vmatprep.subr.mxu0 %v94
    %984 = vmatpush1.msra.mxu0 %v93
    %985 = vmatprep.subr.mxu0 %v96
    %986 = vmatpush1.msra.mxu0 %v95
    %987 = vmatprep.subr.mxu0 %v98
    %988 = vmatpush1.msra.mxu0 %v97
    %989 = vmatprep.subr.mxu0 %v100
    %990 = vmatpush1.msra.mxu0 %v99
    %991 = vmatprep.subr.mxu0 %v102
    %992 = vmatpush1.msra.mxu0 %v101
    %993 = vmatprep.subr.mxu0 %v104
    %994 = vmatpush1.msra.mxu0 %v103
    %995 = vmatprep.subr.mxu0 %v106
    %996 = vmatpush1.msra.mxu0 %v105
    %997 = vmatprep.subr.mxu0 %v108
    %998 = vmatpush1.msra.mxu0 %v107
    %999 = vmatprep.subr.mxu0 %v110
    %1000 = vmatpush1.msra.mxu0 %v109
    %1001 = vmatprep.subr.mxu0 %v112
    %1002 = vmatpush1.msra.mxu0 %v111
    %1003 = vmatprep.subr.mxu0 %v114
    %1004 = vmatpush1.msra.mxu0 %v113
    %1005 = vmatprep.subr.mxu0 %v116
    %1006 = vmatpush1.msra.mxu0 %v115
    %1007 = vmatprep.subr.mxu0 %v118
    %1008 = vmatpush1.msra.mxu0 %v117
    %1009 = vmatprep.subr.mxu0 %v120
    %1010 = vmatpush1.msra.mxu0 %v119
    %1011 = vmatprep.subr.mxu0 0.0
    %1012 = vmatpush1.msra.mxu0 0.0
    %1013 = vmatprep.subr.mxu0 0.0
    %1014 = vmatpush1.msra.mxu0 0.0
    %1015 = vmatprep.subr.mxu0 0.0
    %1016 = vmatpush1.msra.mxu0 0.0
    %1017 = vmatprep.subr.mxu0 0.0
    %1018 = vmatpush1.msra.mxu0 0.0
    %1019 = vmatprep.subr.mxu0 0.0
    %1020 = vmatpush1.msra.mxu0 0.0
    %1021 = vmatprep.subr.mxu0 0.0
    %1022 = vmatpush1.msra.mxu0 0.0
    %1023 = vmatprep.subr.mxu0 0.0
    %1024 = vmatpush1.msra.mxu0 0.0
    %1025 = vmatprep.subr.mxu0 0.0
    %1026 = vmatpush1.msra.mxu0 0.0
    %1027 = vmatprep.subr.mxu0 0.0
    %1028 = vmatpush1.msra.mxu0 0.0
    %1029 = vmatprep.subr.mxu0 0.0
    %1030 = vmatpush1.msra.mxu0 0.0
    %1031 = vmatprep.subr.mxu0 0.0
    %1032 = vmatpush1.msra.mxu0 0.0
    %1033 = vmatprep.subr.mxu0 0.0
    %1034 = vmatpush1.msra.mxu0 0.0
    %1035 = vmatprep.subr.mxu0 0.0
    %1036 = vmatpush1.msra.mxu0 0.0
    %1037 = vmatprep.subr.mxu0 0.0
    %1038 = vmatpush1.msra.mxu0 0.0
    %1039 = vmatprep.subr.mxu0 0.0
    %1040 = vmatpush1.msra.mxu0 0.0
    %1041 = vmatprep.subr.mxu0 0.0
    %1042 = vmatpush1.msra.mxu0 0.0
    %1043 = vmatprep.mubr.f32.mxu0 0.0
    %1044 = vmatmul.mubr.f32.gmra.mrb[0].mxu0 %v905
    %v1045 = vpop.f32.mrb[0].mxu0
    %v1046 = vadd.f32 %v975, %v1045
    %v1047 = vpop.f32.mrb[0].mxu0
    %v1048 = vadd.f32 %v977, %v1047
    %1049 = vdwg.mxu0
    %v1050 = vmul.f32 %v1046, %v1046
    %v1051 = vmul.f32 %v1048, %v1048
    %v1052 = vadd.f32 %v1050, %v1051
    %v1053 = vadd.f32 %v1052, 1e-30
    %v1054 = vrsqrt.pop %v1053
    %v1055 = vmul.f32 %v86, %v1046
    %v1056 = vmul.f32 %v1055, %v1054
    %v1057 = vmul.f32 %v86, %v1048
    %v1058 = vmul.f32 %v1057, %v1054
    %1059 = vmatprep.subr.mxu0 %v122
    %1060 = vmatpush1.msra.mxu0 %v121
    %1061 = vmatprep.subr.mxu0 %v124
    %1062 = vmatpush1.msra.mxu0 %v123
    %1063 = vmatprep.subr.mxu0 %v126
    %1064 = vmatpush1.msra.mxu0 %v125
    %1065 = vmatprep.subr.mxu0 %v128
    %1066 = vmatpush1.msra.mxu0 %v127
    %1067 = vmatprep.subr.mxu0 %v130
    %1068 = vmatpush1.msra.mxu0 %v129
    %1069 = vmatprep.subr.mxu0 %v132
    %1070 = vmatpush1.msra.mxu0 %v131
    %1071 = vmatprep.subr.mxu0 %v134
    %1072 = vmatpush1.msra.mxu0 %v133
    %1073 = vmatprep.subr.mxu0 %v136
    %1074 = vmatpush1.msra.mxu0 %v135
    %1075 = vmatprep.subr.mxu0 %v138
    %1076 = vmatpush1.msra.mxu0 %v137
    %1077 = vmatprep.subr.mxu0 %v140
    %1078 = vmatpush1.msra.mxu0 %v139
    %1079 = vmatprep.subr.mxu0 %v142
    %1080 = vmatpush1.msra.mxu0 %v141
    %1081 = vmatprep.subr.mxu0 %v144
    %1082 = vmatpush1.msra.mxu0 %v143
    %1083 = vmatprep.subr.mxu0 %v146
    %1084 = vmatpush1.msra.mxu0 %v145
    %1085 = vmatprep.subr.mxu0 %v148
    %1086 = vmatpush1.msra.mxu0 %v147
    %1087 = vmatprep.subr.mxu0 %v150
    %1088 = vmatpush1.msra.mxu0 %v149
    %1089 = vmatprep.subr.mxu0 %v152
    %1090 = vmatpush1.msra.mxu0 %v151
    %1091 = vmatprep.subr.mxu0 0.0
    %1092 = vmatpush1.msra.mxu0 0.0
    %1093 = vmatprep.subr.mxu0 0.0
    %1094 = vmatpush1.msra.mxu0 0.0
    %1095 = vmatprep.subr.mxu0 0.0
    %1096 = vmatpush1.msra.mxu0 0.0
    %1097 = vmatprep.subr.mxu0 0.0
    %1098 = vmatpush1.msra.mxu0 0.0
    %1099 = vmatprep.subr.mxu0 0.0
    %1100 = vmatpush1.msra.mxu0 0.0
    %1101 = vmatprep.subr.mxu0 0.0
    %1102 = vmatpush1.msra.mxu0 0.0
    %1103 = vmatprep.subr.mxu0 0.0
    %1104 = vmatpush1.msra.mxu0 0.0
    %1105 = vmatprep.subr.mxu0 0.0
    %1106 = vmatpush1.msra.mxu0 0.0
    %1107 = vmatprep.subr.mxu0 0.0
    %1108 = vmatpush1.msra.mxu0 0.0
    %1109 = vmatprep.subr.mxu0 0.0
    %1110 = vmatpush1.msra.mxu0 0.0
    %1111 = vmatprep.subr.mxu0 0.0
    %1112 = vmatpush1.msra.mxu0 0.0
    %1113 = vmatprep.subr.mxu0 0.0
    %1114 = vmatpush1.msra.mxu0 0.0
    %1115 = vmatprep.subr.mxu0 0.0
    %1116 = vmatpush1.msra.mxu0 0.0
    %1117 = vmatprep.subr.mxu0 0.0
    %1118 = vmatpush1.msra.mxu0 0.0
    %1119 = vmatprep.subr.mxu0 0.0
    %1120 = vmatpush1.msra.mxu0 0.0
    %1121 = vmatprep.subr.mxu0 0.0
    %1122 = vmatpush1.msra.mxu0 0.0
    %1123 = vmatprep.mubr.f32.mxu0 0.0
    %1124 = vmatmul.mubr.f32.gmra.mrb[0].mxu0 %v1058
    %v1125 = vpop.f32.mrb[0].mxu0
    %v1126 = vadd.f32 0.0, %v1125
    %v1127 = vpop.f32.mrb[0].mxu0
    %v1128 = vadd.f32 0.0, %v1127
    %1129 = vdwg.mxu0
    %1130 = vmatprep.subr.mxu0 %v90
    %1131 = vmatpush1.msra.mxu0 %v89
    %1132 = vmatprep.subr.mxu0 %v92
    %1133 = vmatpush1.msra.mxu0 %v91
    %1134 = vmatprep.subr.mxu0 %v94
    %1135 = vmatpush1.msra.mxu0 %v93
    %1136 = vmatprep.subr.mxu0 %v96
    %1137 = vmatpush1.msra.mxu0 %v95
    %1138 = vmatprep.subr.mxu0 %v98
    %1139 = vmatpush1.msra.mxu0 %v97
    %1140 = vmatprep.subr.mxu0 %v100
    %1141 = vmatpush1.msra.mxu0 %v99
    %1142 = vmatprep.subr.mxu0 %v102
    %1143 = vmatpush1.msra.mxu0 %v101
    %1144 = vmatprep.subr.mxu0 %v104
    %1145 = vmatpush1.msra.mxu0 %v103
    %1146 = vmatprep.subr.mxu0 %v106
    %1147 = vmatpush1.msra.mxu0 %v105
    %1148 = vmatprep.subr.mxu0 %v108
    %1149 = vmatpush1.msra.mxu0 %v107
    %1150 = vmatprep.subr.mxu0 %v110
    %1151 = vmatpush1.msra.mxu0 %v109
    %1152 = vmatprep.subr.mxu0 %v112
    %1153 = vmatpush1.msra.mxu0 %v111
    %1154 = vmatprep.subr.mxu0 %v114
    %1155 = vmatpush1.msra.mxu0 %v113
    %1156 = vmatprep.subr.mxu0 %v116
    %1157 = vmatpush1.msra.mxu0 %v115
    %1158 = vmatprep.subr.mxu0 %v118
    %1159 = vmatpush1.msra.mxu0 %v117
    %1160 = vmatprep.subr.mxu0 %v120
    %1161 = vmatpush1.msra.mxu0 %v119
    %1162 = vmatprep.subr.mxu0 0.0
    %1163 = vmatpush1.msra.mxu0 0.0
    %1164 = vmatprep.subr.mxu0 0.0
    %1165 = vmatpush1.msra.mxu0 0.0
    %1166 = vmatprep.subr.mxu0 0.0
    %1167 = vmatpush1.msra.mxu0 0.0
    %1168 = vmatprep.subr.mxu0 0.0
    %1169 = vmatpush1.msra.mxu0 0.0
    %1170 = vmatprep.subr.mxu0 0.0
    %1171 = vmatpush1.msra.mxu0 0.0
    %1172 = vmatprep.subr.mxu0 0.0
    %1173 = vmatpush1.msra.mxu0 0.0
    %1174 = vmatprep.subr.mxu0 0.0
    %1175 = vmatpush1.msra.mxu0 0.0
    %1176 = vmatprep.subr.mxu0 0.0
    %1177 = vmatpush1.msra.mxu0 0.0
    %1178 = vmatprep.subr.mxu0 0.0
    %1179 = vmatpush1.msra.mxu0 0.0
    %1180 = vmatprep.subr.mxu0 0.0
    %1181 = vmatpush1.msra.mxu0 0.0
    %1182 = vmatprep.subr.mxu0 0.0
    %1183 = vmatpush1.msra.mxu0 0.0
    %1184 = vmatprep.subr.mxu0 0.0
    %1185 = vmatpush1.msra.mxu0 0.0
    %1186 = vmatprep.subr.mxu0 0.0
    %1187 = vmatpush1.msra.mxu0 0.0
    %1188 = vmatprep.subr.mxu0 0.0
    %1189 = vmatpush1.msra.mxu0 0.0
    %1190 = vmatprep.subr.mxu0 0.0
    %1191 = vmatpush1.msra.mxu0 0.0
    %1192 = vmatprep.subr.mxu0 0.0
    %1193 = vmatpush1.msra.mxu0 0.0
    %1194 = vmatprep.mubr.f32.mxu0 0.0
    %1195 = vmatmul.mubr.f32.gmra.mrb[0].mxu0 %v1056
    %v1196 = vpop.f32.mrb[0].mxu0
    %v1197 = vadd.f32 %v1126, %v1196
    %v1198 = vpop.f32.mrb[0].mxu0
    %v1199 = vadd.f32 %v1128, %v1198
    %1200 = vdwg.mxu0
    %v1201 = vmul.f32 %v1197, %v1197
    %v1202 = vmul.f32 %v1199, %v1199
    %v1203 = vadd.f32 %v1201, %v1202
    %v1204 = vadd.f32 %v1203, 1e-30
    %v1205 = vrsqrt.pop %v1204
    %v1206 = vmul.f32 %v86, %v1197
    %v1207 = vmul.f32 %v1206, %v1205
    %v1208 = vmul.f32 %v86, %v1199
    %v1209 = vmul.f32 %v1208, %v1205
    %1210 = vmatprep.subr.mxu0 %v122
    %1211 = vmatpush1.msra.mxu0 %v121
    %1212 = vmatprep.subr.mxu0 %v124
    %1213 = vmatpush1.msra.mxu0 %v123
    %1214 = vmatprep.subr.mxu0 %v126
    %1215 = vmatpush1.msra.mxu0 %v125
    %1216 = vmatprep.subr.mxu0 %v128
    %1217 = vmatpush1.msra.mxu0 %v127
    %1218 = vmatprep.subr.mxu0 %v130
    %1219 = vmatpush1.msra.mxu0 %v129
    %1220 = vmatprep.subr.mxu0 %v132
    %1221 = vmatpush1.msra.mxu0 %v131
    %1222 = vmatprep.subr.mxu0 %v134
    %1223 = vmatpush1.msra.mxu0 %v133
    %1224 = vmatprep.subr.mxu0 %v136
    %1225 = vmatpush1.msra.mxu0 %v135
    %1226 = vmatprep.subr.mxu0 %v138
    %1227 = vmatpush1.msra.mxu0 %v137
    %1228 = vmatprep.subr.mxu0 %v140
    %1229 = vmatpush1.msra.mxu0 %v139
    %1230 = vmatprep.subr.mxu0 %v142
    %1231 = vmatpush1.msra.mxu0 %v141
    %1232 = vmatprep.subr.mxu0 %v144
    %1233 = vmatpush1.msra.mxu0 %v143
    %1234 = vmatprep.subr.mxu0 %v146
    %1235 = vmatpush1.msra.mxu0 %v145
    %1236 = vmatprep.subr.mxu0 %v148
    %1237 = vmatpush1.msra.mxu0 %v147
    %1238 = vmatprep.subr.mxu0 %v150
    %1239 = vmatpush1.msra.mxu0 %v149
    %1240 = vmatprep.subr.mxu0 %v152
    %1241 = vmatpush1.msra.mxu0 %v151
    %1242 = vmatprep.subr.mxu0 0.0
    %1243 = vmatpush1.msra.mxu0 0.0
    %1244 = vmatprep.subr.mxu0 0.0
    %1245 = vmatpush1.msra.mxu0 0.0
    %1246 = vmatprep.subr.mxu0 0.0
    %1247 = vmatpush1.msra.mxu0 0.0
    %1248 = vmatprep.subr.mxu0 0.0
    %1249 = vmatpush1.msra.mxu0 0.0
    %1250 = vmatprep.subr.mxu0 0.0
    %1251 = vmatpush1.msra.mxu0 0.0
    %1252 = vmatprep.subr.mxu0 0.0
    %1253 = vmatpush1.msra.mxu0 0.0
    %1254 = vmatprep.subr.mxu0 0.0
    %1255 = vmatpush1.msra.mxu0 0.0
    %1256 = vmatprep.subr.mxu0 0.0
    %1257 = vmatpush1.msra.mxu0 0.0
    %1258 = vmatprep.subr.mxu0 0.0
    %1259 = vmatpush1.msra.mxu0 0.0
    %1260 = vmatprep.subr.mxu0 0.0
    %1261 = vmatpush1.msra.mxu0 0.0
    %1262 = vmatprep.subr.mxu0 0.0
    %1263 = vmatpush1.msra.mxu0 0.0
    %1264 = vmatprep.subr.mxu0 0.0
    %1265 = vmatpush1.msra.mxu0 0.0
    %1266 = vmatprep.subr.mxu0 0.0
    %1267 = vmatpush1.msra.mxu0 0.0
    %1268 = vmatprep.subr.mxu0 0.0
    %1269 = vmatpush1.msra.mxu0 0.0
    %1270 = vmatprep.subr.mxu0 0.0
    %1271 = vmatpush1.msra.mxu0 0.0
    %1272 = vmatprep.subr.mxu0 0.0
    %1273 = vmatpush1.msra.mxu0 0.0
    %1274 = vmatprep.mubr.f32.mxu0 0.0
    %1275 = vmatmul.mubr.f32.gmra.mrb[0].mxu0 %v1209
    %v1276 = vpop.f32.mrb[0].mxu0
    %v1277 = vadd.f32 0.0, %v1276
    %v1278 = vpop.f32.mrb[0].mxu0
    %v1279 = vadd.f32 0.0, %v1278
    %1280 = vdwg.mxu0
    %1281 = vmatprep.subr.mxu0 %v90
    %1282 = vmatpush1.msra.mxu0 %v89
    %1283 = vmatprep.subr.mxu0 %v92
    %1284 = vmatpush1.msra.mxu0 %v91
    %1285 = vmatprep.subr.mxu0 %v94
    %1286 = vmatpush1.msra.mxu0 %v93
    %1287 = vmatprep.subr.mxu0 %v96
    %1288 = vmatpush1.msra.mxu0 %v95
    %1289 = vmatprep.subr.mxu0 %v98
    %1290 = vmatpush1.msra.mxu0 %v97
    %1291 = vmatprep.subr.mxu0 %v100
    %1292 = vmatpush1.msra.mxu0 %v99
    %1293 = vmatprep.subr.mxu0 %v102
    %1294 = vmatpush1.msra.mxu0 %v101
    %1295 = vmatprep.subr.mxu0 %v104
    %1296 = vmatpush1.msra.mxu0 %v103
    %1297 = vmatprep.subr.mxu0 %v106
    %1298 = vmatpush1.msra.mxu0 %v105
    %1299 = vmatprep.subr.mxu0 %v108
    %1300 = vmatpush1.msra.mxu0 %v107
    %1301 = vmatprep.subr.mxu0 %v110
    %1302 = vmatpush1.msra.mxu0 %v109
    %1303 = vmatprep.subr.mxu0 %v112
    %1304 = vmatpush1.msra.mxu0 %v111
    %1305 = vmatprep.subr.mxu0 %v114
    %1306 = vmatpush1.msra.mxu0 %v113
    %1307 = vmatprep.subr.mxu0 %v116
    %1308 = vmatpush1.msra.mxu0 %v115
    %1309 = vmatprep.subr.mxu0 %v118
    %1310 = vmatpush1.msra.mxu0 %v117
    %1311 = vmatprep.subr.mxu0 %v120
    %1312 = vmatpush1.msra.mxu0 %v119
    %1313 = vmatprep.subr.mxu0 0.0
    %1314 = vmatpush1.msra.mxu0 0.0
    %1315 = vmatprep.subr.mxu0 0.0
    %1316 = vmatpush1.msra.mxu0 0.0
    %1317 = vmatprep.subr.mxu0 0.0
    %1318 = vmatpush1.msra.mxu0 0.0
    %1319 = vmatprep.subr.mxu0 0.0
    %1320 = vmatpush1.msra.mxu0 0.0
    %1321 = vmatprep.subr.mxu0 0.0
    %1322 = vmatpush1.msra.mxu0 0.0
    %1323 = vmatprep.subr.mxu0 0.0
    %1324 = vmatpush1.msra.mxu0 0.0
    %1325 = vmatprep.subr.mxu0 0.0
    %1326 = vmatpush1.msra.mxu0 0.0
    %1327 = vmatprep.subr.mxu0 0.0
    %1328 = vmatpush1.msra.mxu0 0.0
    %1329 = vmatprep.subr.mxu0 0.0
    %1330 = vmatpush1.msra.mxu0 0.0
    %1331 = vmatprep.subr.mxu0 0.0
    %1332 = vmatpush1.msra.mxu0 0.0
    %1333 = vmatprep.subr.mxu0 0.0
    %1334 = vmatpush1.msra.mxu0 0.0
    %1335 = vmatprep.subr.mxu0 0.0
    %1336 = vmatpush1.msra.mxu0 0.0
    %1337 = vmatprep.subr.mxu0 0.0
    %1338 = vmatpush1.msra.mxu0 0.0
    %1339 = vmatprep.subr.mxu0 0.0
    %1340 = vmatpush1.msra.mxu0 0.0
    %1341 = vmatprep.subr.mxu0 0.0
    %1342 = vmatpush1.msra.mxu0 0.0
    %1343 = vmatprep.subr.mxu0 0.0
    %1344 = vmatpush1.msra.mxu0 0.0
    %1345 = vmatprep.mubr.f32.mxu0 0.0
    %1346 = vmatmul.mubr.f32.gmra.mrb[0].mxu0 %v1207
    %v1347 = vpop.f32.mrb[0].mxu0
    %v1348 = vadd.f32 %v1277, %v1347
    %v1349 = vpop.f32.mrb[0].mxu0
    %v1350 = vadd.f32 %v1279, %v1349
    %1351 = vdwg.mxu0
    %v1352 = vmul.f32 %v1348, %v1348
    %v1353 = vmul.f32 %v1350, %v1350
    %v1354 = vadd.f32 %v1352, %v1353
    %v1355 = vadd.f32 %v1354, 1e-30
    %v1356 = vrsqrt.pop %v1355
    %v1357 = vmul.f32 %v86, %v1348
    %v1358 = vmul.f32 %v1357, %v1356
    %v1359 = vmul.f32 %v86, %v1350
    %v1360 = vmul.f32 %v1359, %v1356
    %1361 = vst [vmem:[#allocation11] sm:$0xff] %v1358
    %1362 = vst [vmem:[#allocation12] sm:$0xff] %v1360
    // Predicated region
    $region42: #{tpu_custom_call.1} parent=1 // pred_check
      _
    $region43: #{tpu_custom_call.1} parent=1 // pred_check_branch
      %1364 = sbr.rel (0) target = $region45
    $region44: #{tpu_custom_call.1} parent=1 // pred_region
      %s1366 = ssub.s32 128, 128
      %1367 = vsyncadd [#allocation4], %s1366
      %s1369 = sshll.u32 [#allocation11], 4
      %s1370 = int_to_ptr.vmem [resolvable:$true] %s1369
      %1372 = dma.vmem_to_hbm [thread:$0]  %s1370, 128, %s5, [#allocation4]
    $region45: #{tpu_custom_call.1} parent=1 // pred_fallthru
      _
    // Predicated region
    $region46: #{tpu_custom_call.1} parent=1 // pred_check
      _
    $region47: #{tpu_custom_call.1} parent=1 // pred_check_branch
      %1374 = sbr.rel (0) target = $region49
    $region48: #{tpu_custom_call.1} parent=1 // pred_region
      %s1376 = ssub.s32 128, 128
      %1377 = vsyncadd [#allocation13], %s1376
      %s1379 = sshll.u32 [#allocation12], 4
      %s1380 = int_to_ptr.vmem [resolvable:$true] %s1379
      %1382 = dma.vmem_to_hbm [thread:$0]  %s1380, 128, %s6, [#allocation13]
    $region49: #{tpu_custom_call.1} parent=1 // pred_fallthru
      _
    // Predicated region
    $region50: #{tpu_custom_call.1} parent=1 // pred_check
      _
    $region51: #{tpu_custom_call.1} parent=1 // pred_check_branch
      %1384 = sbr.rel (0) target = $region53
    $region52: #{tpu_custom_call.1} parent=1 // pred_region
      %1385 = dma.done [#allocation4], 128
    $region53: #{tpu_custom_call.1} parent=1 // pred_fallthru
      _
    // Predicated region
    $region54: #{tpu_custom_call.1} parent=1 // pred_check
      _
    $region55: #{tpu_custom_call.1} parent=1 // pred_check_branch
      %1387 = sbr.rel (0) target = $region57
    $region56: #{tpu_custom_call.1} parent=1 // pred_region
      %1388 = dma.done [#allocation13], 128
    $region57: #{tpu_custom_call.1} parent=1 // pred_fallthru
      _
    %1389 = vsyncpa [#allocation3], 1
    %1390 = vsyncpa [#allocation6], 1
    %1391 = vsyncpa [#allocation9], 1
    %1392 = vsyncpa [#allocation4], 1
    %1393 = vsyncpa [#allocation13], 1

</llo_original>
